<compile_context>
chip_gen: v5e
topology: v5e:2x2
jax: 0.10.0
libtpu: 0.0.40
codegen_flags: <defaults>
</compile_context>

<pallas_src>
import functools

import jax
import jax.numpy as jnp
from jax.experimental import pallas as pl
from jax.experimental.pallas import tpu as pltpu


def _cbam_kernel(x_ref, cm_ref, w1_ref, b1_ref, w2_ref, b2_ref, wsp_ref,
                 bsp_ref, o_ref, *, W):
    # x_ref block: (1, C, H*W) float32 -- channels on sublanes, pixels on lanes.
    x = x_ref[0]                                   # (C, HW)
    C, HW = x.shape

    # ---- channel attention: global avg pool -> 1x1 -> ReLU -> 1x1 -> sigmoid
    # All VPU multiplies + small lane/sublane reductions (no MXU).
    pooled = jnp.sum(x, axis=1, keepdims=True) * (1.0 / HW)                   # (C, 1)
    h = jnp.sum(pooled * w1_ref[...], axis=0, keepdims=True) + b1_ref[...]    # (1, Cr)
    h = jnp.maximum(h, 0.0)
    ca = jnp.sum(w2_ref[...] * h, axis=1, keepdims=True) + b2_ref[...]        # (C, 1)
    ca = jax.nn.sigmoid(ca)

    x_ch = x * ca                                  # (C, HW), lane-broadcast of ca

    # ---- spatial attention: per-pixel channel max & sum (1/C folded into wsp)
    max_map = jnp.max(x_ch, axis=0, keepdims=True)   # (1, HW)
    sum_map = jnp.sum(x_ch, axis=0, keepdims=True)   # (1, HW)

    # Flat zero pad of 3*W+3 on both sides: a flat shift by (ki-3)*W + (kj-3)
    # lands row-out-of-range taps in the zero pad automatically; only column
    # validity needs masking (precomputed cm_ref, one mask per kernel column).
    PAD = 3 * W + 3
    zpad = jnp.zeros((1, PAD), jnp.float32)
    pmax = jnp.concatenate([zpad, max_map, zpad], axis=1)   # (1, HW + 2*PAD)
    psum = jnp.concatenate([zpad, sum_map, zpad], axis=1)

    cmask = cm_ref[...]                             # (7, HW) float32 column masks
    acc = jnp.zeros((1, HW), jnp.float32)
    for kj in range(7):
        # Accumulate both input maps for this kernel column, then apply the
        # column-validity mask once (7 mask multiplies total per image).
        part = jnp.zeros((1, HW), jnp.float32)
        for ki in range(7):
            off = (ki - 3) * W + (kj - 3)
            t = ki * 7 + kj
            tap_max = pmax[:, PAD + off:PAD + off + HW]       # (1, HW)
            tap_sum = psum[:, PAD + off:PAD + off + HW]       # (1, HW)
            part = part + wsp_ref[t] * tap_max + wsp_ref[49 + t] * tap_sum
        acc = acc + cmask[kj:kj + 1, :] * part

    sa = jax.nn.sigmoid(acc + bsp_ref[0])           # (1, HW)

    # Lane-dense store: last dim HW is a multiple of 128 at these sizes.
    o_ref[0] = x_ch * sa


@jax.jit
def cbam_pallas(x_nchw, w1, b1, w2, b2, wsp, bsp):
    """x_nchw: (N, C, H, W) float32.  Weights in PyTorch conv shapes."""
    N, C, H, W = x_nchw.shape
    Cr = w1.shape[0]
    HW = H * W

    # Layout-preserving view; no HBM transpose/copy.
    x_flat = x_nchw.reshape(N, C, HW).astype(jnp.float32)

    w1_t = jnp.transpose(w1.reshape(Cr, C)).astype(jnp.float32)     # (C, Cr)
    b1_2d = b1.reshape(1, Cr).astype(jnp.float32)
    w2_2d = w2.reshape(C, Cr).astype(jnp.float32)                   # (C, Cr)
    b2_2d = b2.reshape(C, 1).astype(jnp.float32)

    # Flatten spatial-conv weights to 1D SMEM; fold 1/C of the channel-mean
    # into the 'mean' input-channel taps so the kernel only computes a sum.
    wsp2 = wsp.reshape(2, 49).astype(jnp.float32)
    wsp_flat = jnp.concatenate([wsp2[0], wsp2[1] * (1.0 / C)])      # (98,)
    bsp_1d = bsp.reshape(1).astype(jnp.float32)

    # Column-validity masks for the 7 kernel columns, in flat pixel space.
    col = jnp.arange(HW, dtype=jnp.int32) % W                       # (HW,)
    src_col = col[None, :] + jnp.arange(7, dtype=jnp.int32)[:, None] - 3
    cmask = ((src_col >= 0) & (src_col < W)).astype(jnp.float32)    # (7, HW)

    kernel = functools.partial(_cbam_kernel, W=W)

    block_bytes = C * HW * 4
    vmem_limit = min(32 * 1024 * 1024, max(4 * 1024 * 1024, 8 * block_bytes))

    out_flat = pl.pallas_call(
        kernel,
        out_shape=jax.ShapeDtypeStruct((N, C, HW), jnp.float32),
        grid_spec=pltpu.PrefetchScalarGridSpec(
            num_scalar_prefetch=0,
            grid=(N,),
            in_specs=[
                pl.BlockSpec((1, C, HW), lambda n: (n, 0, 0)),
                pl.BlockSpec((7, HW), lambda n: (0, 0)),
                pl.BlockSpec((C, Cr), lambda n: (0, 0)),
                pl.BlockSpec((1, Cr), lambda n: (0, 0)),
                pl.BlockSpec((C, Cr), lambda n: (0, 0)),
                pl.BlockSpec((C, 1), lambda n: (0, 0)),
                pl.BlockSpec(memory_space=pltpu.MemorySpace.SMEM),
                pl.BlockSpec(memory_space=pltpu.MemorySpace.SMEM),
            ],
            out_specs=pl.BlockSpec((1, C, HW), lambda n: (n, 0, 0)),
        ),
        compiler_params=pltpu.CompilerParams(
            dimension_semantics=("parallel",),
            vmem_limit_bytes=vmem_limit,
        ),
    )(x_flat, cmask, w1_t, b1_2d, w2_2d, b2_2d, wsp_flat, bsp_1d)

    return out_flat.reshape(N, C, H, W)   # layout-preserving


def cbam_reference(x, w1, b1, w2, b2, wsp, bsp):
    """Pure-JAX reference mirroring the PyTorch forward (NCHW)."""
    N, C, H, W = x.shape
    Cr = w1.shape[0]
    pooled = x.mean(axis=(2, 3))                                        # (N, C)
    h = jnp.maximum(pooled @ w1.reshape(Cr, C).T + b1, 0.0)
    ca = jax.nn.sigmoid(h @ w2.reshape(C, Cr).T + b2)                   # (N, C)
    x_ch = x * ca[:, :, None, None]
    sp_in = jnp.concatenate(
        [x_ch.max(axis=1, keepdims=True), x_ch.mean(axis=1, keepdims=True)],
        axis=1)                                                         # (N, 2, H, W)
    sa = jax.lax.conv_general_dilated(
        sp_in, wsp, window_strides=(1, 1), padding=((3, 3), (3, 3)),
        dimension_numbers=("NCHW", "OIHW", "NCHW")) + bsp.reshape(1, 1, 1, 1)
    sa = jax.nn.sigmoid(sa)
    return x_ch * sa


if __name__ == "__main__":
    N, C, H, W = 2, 32, 16, 16
    reduction_ratio = 16
    Cr = C // reduction_ratio

    key = jax.random.PRNGKey(0)
    kx, k1, k2, k3, k4, k5, k6 = jax.random.split(key, 7)

    x = jax.random.normal(kx, (N, C, H, W), jnp.float32)
    # Parameters in PyTorch conv shapes, deterministic init.
    w1 = 0.1 * jax.random.normal(k1, (Cr, C, 1, 1), jnp.float32)   # Conv2d(C, Cr, 1)
    b1 = 0.1 * jax.random.normal(k2, (Cr,), jnp.float32)
    w2 = 0.1 * jax.random.normal(k3, (C, Cr, 1, 1), jnp.float32)   # Conv2d(Cr, C, 1)
    b2 = 0.1 * jax.random.normal(k4, (C,), jnp.float32)
    wsp = 0.1 * jax.random.normal(k5, (1, 2, 7, 7), jnp.float32)   # Conv2d(2, 1, 7, pad=3)
    bsp = 0.1 * jax.random.normal(k6, (1,), jnp.float32)

    out = cbam_pallas(x, w1, b1, w2, b2, wsp, bsp)
    out = jax.block_until_ready(out)

    ref = jax.block_until_ready(cbam_reference(x, w1, b1, w2, b2, wsp, bsp))
    assert out.shape == (N, C, H, W)
    assert jnp.allclose(out, ref, rtol=2e-3, atol=2e-3), float(jnp.abs(out - ref).max())

    print("KERNEL_OK")
</pallas_src>

<mosaic_0001>
module attributes {stable_mosaic.version = 11 : i64} {
  func.func @_cbam_kernel(%arg0: i32, %arg1: memref<1x32x256xf32, #tpu.memory_space<vmem>>, %arg2: memref<7x256xf32, #tpu.memory_space<vmem>>, %arg3: memref<32x2xf32, #tpu.memory_space<vmem>>, %arg4: memref<1x2xf32, #tpu.memory_space<vmem>>, %arg5: memref<32x2xf32, #tpu.memory_space<vmem>>, %arg6: memref<32x1xf32, #tpu.memory_space<vmem>>, %arg7: memref<98xf32, #tpu.memory_space<smem>>, %arg8: memref<1xf32, #tpu.memory_space<smem>>, %arg9: memref<1x32x256xf32, #tpu.memory_space<vmem>>) attributes {dimension_semantics = [#tpu.dimension_semantics<parallel>], iteration_bounds = array<i64: 2>, scalar_prefetch = 0 : i64, scratch_operands = 0 : i64, tpu.core_type = #tpu.core_type<tc>, window_params = [{transform_indices = @transform_0, window_bounds = array<i64: 1, 32, 256>}, {pipeline_mode = #tpu.pipeline_mode<synchronous>, transform_indices = @transform_1, window_bounds = array<i64: 7, 256>}, {pipeline_mode = #tpu.pipeline_mode<synchronous>, transform_indices = @transform_2, window_bounds = array<i64: 32, 2>}, {pipeline_mode = #tpu.pipeline_mode<synchronous>, transform_indices = @transform_3, window_bounds = array<i64: 1, 2>}, {pipeline_mode = #tpu.pipeline_mode<synchronous>, transform_indices = @transform_4, window_bounds = array<i64: 32, 2>}, {pipeline_mode = #tpu.pipeline_mode<synchronous>, transform_indices = @transform_5, window_bounds = array<i64: 32, 1>}, {transform_indices = @transform_6, window_bounds = array<i64: 98>}, {transform_indices = @transform_7, window_bounds = array<i64: 1>}, {transform_indices = @transform_8, window_bounds = array<i64: 1, 32, 256>}]} {
    %c0 = arith.constant 0 : index
    %c0_0 = arith.constant 0 : index
    %c0_1 = arith.constant 0 : index
    %0 = vector.load %arg1[%c0, %c0_0, %c0_1] : memref<1x32x256xf32, #tpu.memory_space<vmem>>, vector<1x32x256xf32>
    %1 = vector.shape_cast %0 : vector<1x32x256xf32> to vector<32x256xf32>
    %cst = arith.constant dense<0.000000e+00> : vector<32xf32>
    %2 = vector.multi_reduction <add>, %1, %cst [1] : vector<32x256xf32> to vector<32xf32>
    %3 = vector.shape_cast %2 : vector<32xf32> to vector<32x1xf32>
    %cst_2 = arith.constant 3.906250e-03 : f32
    %4 = vector.broadcast %cst_2 : f32 to vector<32x1xf32>
    %5 = arith.mulf %3, %4 : vector<32x1xf32>
    %c0_3 = arith.constant 0 : index
    %c0_4 = arith.constant 0 : index
    %6 = vector.load %arg3[%c0_3, %c0_4] : memref<32x2xf32, #tpu.memory_space<vmem>>, vector<32x2xf32>
    %7 = vector.broadcast %5 : vector<32x1xf32> to vector<32x2xf32>
    %8 = arith.mulf %7, %6 : vector<32x2xf32>
    %cst_5 = arith.constant dense<0.000000e+00> : vector<2xf32>
    %9 = vector.multi_reduction <add>, %8, %cst_5 [0] : vector<32x2xf32> to vector<2xf32>
    %10 = vector.shape_cast %9 : vector<2xf32> to vector<1x2xf32>
    %c0_6 = arith.constant 0 : index
    %c0_7 = arith.constant 0 : index
    %11 = vector.load %arg4[%c0_6, %c0_7] : memref<1x2xf32, #tpu.memory_space<vmem>>, vector<1x2xf32>
    %12 = arith.addf %10, %11 : vector<1x2xf32>
    %cst_8 = arith.constant 0.000000e+00 : f32
    %13 = vector.broadcast %cst_8 : f32 to vector<1x2xf32>
    %14 = arith.maximumf %12, %13 : vector<1x2xf32>
    %c0_9 = arith.constant 0 : index
    %c0_10 = arith.constant 0 : index
    %15 = vector.load %arg5[%c0_9, %c0_10] : memref<32x2xf32, #tpu.memory_space<vmem>>, vector<32x2xf32>
    %16 = vector.broadcast %14 : vector<1x2xf32> to vector<32x2xf32>
    %17 = arith.mulf %15, %16 : vector<32x2xf32>
    %cst_11 = arith.constant dense<0.000000e+00> : vector<32xf32>
    %18 = vector.multi_reduction <add>, %17, %cst_11 [1] : vector<32x2xf32> to vector<32xf32>
    %19 = vector.shape_cast %18 : vector<32xf32> to vector<32x1xf32>
    %c0_12 = arith.constant 0 : index
    %c0_13 = arith.constant 0 : index
    %20 = vector.load %arg6[%c0_12, %c0_13] : memref<32x1xf32, #tpu.memory_space<vmem>>, vector<32x1xf32>
    %21 = arith.addf %19, %20 : vector<32x1xf32>
    %22 = arith.negf %21 : vector<32x1xf32>
    %23 = math.exp %22 : vector<32x1xf32>
    %cst_14 = arith.constant 1.000000e+00 : f32
    %24 = vector.broadcast %cst_14 : f32 to vector<32x1xf32>
    %25 = arith.addf %24, %23 : vector<32x1xf32>
    %26 = arith.divf %24, %25 : vector<32x1xf32>
    %27 = vector.broadcast %26 : vector<32x1xf32> to vector<32x256xf32>
    %28 = arith.mulf %1, %27 : vector<32x256xf32>
    %cst_15 = arith.constant dense<0xFF800000> : vector<256xf32>
    %29 = vector.multi_reduction <maximumf>, %28, %cst_15 [0] : vector<32x256xf32> to vector<256xf32>
    %30 = vector.shape_cast %29 : vector<256xf32> to vector<1x256xf32>
    %cst_16 = arith.constant dense<0.000000e+00> : vector<256xf32>
    %31 = vector.multi_reduction <add>, %28, %cst_16 [0] : vector<32x256xf32> to vector<256xf32>
    %32 = vector.shape_cast %31 : vector<256xf32> to vector<1x256xf32>
    %cst_17 = arith.constant 0.000000e+00 : f32
    %33 = vector.broadcast %cst_17 : f32 to vector<1x51xf32>
    %34 = tpu.concatenate %33, %30, %33 in 1 : vector<1x51xf32>, vector<1x256xf32>, vector<1x51xf32> -> vector<1x358xf32>
    %35 = tpu.concatenate %33, %32, %33 in 1 : vector<1x51xf32>, vector<1x256xf32>, vector<1x51xf32> -> vector<1x358xf32>
    %c0_18 = arith.constant 0 : index
    %c0_19 = arith.constant 0 : index
    %36 = vector.load %arg2[%c0_18, %c0_19] : memref<7x256xf32, #tpu.memory_space<vmem>>, vector<7x256xf32>
    %cst_20 = arith.constant 0.000000e+00 : f32
    %37 = vector.broadcast %cst_20 : f32 to vector<1x256xf32>
    %cst_21 = arith.constant 0.000000e+00 : f32
    %38 = vector.broadcast %cst_21 : f32 to vector<1x256xf32>
    %39 = vector.extract_strided_slice %34 {offsets = [0, 0], sizes = [1, 256], strides = [1, 1]} : vector<1x358xf32> to vector<1x256xf32>
    %40 = vector.extract_strided_slice %35 {offsets = [0, 0], sizes = [1, 256], strides = [1, 1]} : vector<1x358xf32> to vector<1x256xf32>
    %c0_22 = arith.constant 0 : index
    %41 = memref.load %arg7[%c0_22] : memref<98xf32, #tpu.memory_space<smem>>
    %42 = vector.broadcast %41 : f32 to vector<1x256xf32>
    %43 = arith.mulf %42, %39 : vector<1x256xf32>
    %44 = arith.addf %38, %43 : vector<1x256xf32>
    %c49 = arith.constant 49 : index
    %45 = memref.load %arg7[%c49] : memref<98xf32, #tpu.memory_space<smem>>
    %46 = vector.broadcast %45 : f32 to vector<1x256xf32>
    %47 = arith.mulf %46, %40 : vector<1x256xf32>
    %48 = arith.addf %44, %47 : vector<1x256xf32>
    %49 = vector.extract_strided_slice %34 {offsets = [0, 16], sizes = [1, 256], strides = [1, 1]} : vector<1x358xf32> to vector<1x256xf32>
    %50 = vector.extract_strided_slice %35 {offsets = [0, 16], sizes = [1, 256], strides = [1, 1]} : vector<1x358xf32> to vector<1x256xf32>
    %c7 = arith.constant 7 : index
    %51 = memref.load %arg7[%c7] : memref<98xf32, #tpu.memory_space<smem>>
    %52 = vector.broadcast %51 : f32 to vector<1x256xf32>
    %53 = arith.mulf %52, %49 : vector<1x256xf32>
    %54 = arith.addf %48, %53 : vector<1x256xf32>
    %c56 = arith.constant 56 : index
    %55 = memref.load %arg7[%c56] : memref<98xf32, #tpu.memory_space<smem>>
    %56 = vector.broadcast %55 : f32 to vector<1x256xf32>
    %57 = arith.mulf %56, %50 : vector<1x256xf32>
    %58 = arith.addf %54, %57 : vector<1x256xf32>
    %59 = vector.extract_strided_slice %34 {offsets = [0, 32], sizes = [1, 256], strides = [1, 1]} : vector<1x358xf32> to vector<1x256xf32>
    %60 = vector.extract_strided_slice %35 {offsets = [0, 32], sizes = [1, 256], strides = [1, 1]} : vector<1x358xf32> to vector<1x256xf32>
    %c14 = arith.constant 14 : index
    %61 = memref.load %arg7[%c14] : memref<98xf32, #tpu.memory_space<smem>>
    %62 = vector.broadcast %61 : f32 to vector<1x256xf32>
    %63 = arith.mulf %62, %59 : vector<1x256xf32>
    %64 = arith.addf %58, %63 : vector<1x256xf32>
    %c63 = arith.constant 63 : index
    %65 = memref.load %arg7[%c63] : memref<98xf32, #tpu.memory_space<smem>>
    %66 = vector.broadcast %65 : f32 to vector<1x256xf32>
    %67 = arith.mulf %66, %60 : vector<1x256xf32>
    %68 = arith.addf %64, %67 : vector<1x256xf32>
    %69 = vector.extract_strided_slice %34 {offsets = [0, 48], sizes = [1, 256], strides = [1, 1]} : vector<1x358xf32> to vector<1x256xf32>
    %70 = vector.extract_strided_slice %35 {offsets = [0, 48], sizes = [1, 256], strides = [1, 1]} : vector<1x358xf32> to vector<1x256xf32>
    %c21 = arith.constant 21 : index
    %71 = memref.load %arg7[%c21] : memref<98xf32, #tpu.memory_space<smem>>
    %72 = vector.broadcast %71 : f32 to vector<1x256xf32>
    %73 = arith.mulf %72, %69 : vector<1x256xf32>
    %74 = arith.addf %68, %73 : vector<1x256xf32>
    %c70 = arith.constant 70 : index
    %75 = memref.load %arg7[%c70] : memref<98xf32, #tpu.memory_space<smem>>
    %76 = vector.broadcast %75 : f32 to vector<1x256xf32>
    %77 = arith.mulf %76, %70 : vector<1x256xf32>
    %78 = arith.addf %74, %77 : vector<1x256xf32>
    %79 = vector.extract_strided_slice %34 {offsets = [0, 64], sizes = [1, 256], strides = [1, 1]} : vector<1x358xf32> to vector<1x256xf32>
    %80 = vector.extract_strided_slice %35 {offsets = [0, 64], sizes = [1, 256], strides = [1, 1]} : vector<1x358xf32> to vector<1x256xf32>
    %c28 = arith.constant 28 : index
    %81 = memref.load %arg7[%c28] : memref<98xf32, #tpu.memory_space<smem>>
    %82 = vector.broadcast %81 : f32 to vector<1x256xf32>
    %83 = arith.mulf %82, %79 : vector<1x256xf32>
    %84 = arith.addf %78, %83 : vector<1x256xf32>
    %c77 = arith.constant 77 : index
    %85 = memref.load %arg7[%c77] : memref<98xf32, #tpu.memory_space<smem>>
    %86 = vector.broadcast %85 : f32 to vector<1x256xf32>
    %87 = arith.mulf %86, %80 : vector<1x256xf32>
    %88 = arith.addf %84, %87 : vector<1x256xf32>
    %89 = vector.extract_strided_slice %34 {offsets = [0, 80], sizes = [1, 256], strides = [1, 1]} : vector<1x358xf32> to vector<1x256xf32>
    %90 = vector.extract_strided_slice %35 {offsets = [0, 80], sizes = [1, 256], strides = [1, 1]} : vector<1x358xf32> to vector<1x256xf32>
    %c35 = arith.constant 35 : index
    %91 = memref.load %arg7[%c35] : memref<98xf32, #tpu.memory_space<smem>>
    %92 = vector.broadcast %91 : f32 to vector<1x256xf32>
    %93 = arith.mulf %92, %89 : vector<1x256xf32>
    %94 = arith.addf %88, %93 : vector<1x256xf32>
    %c84 = arith.constant 84 : index
    %95 = memref.load %arg7[%c84] : memref<98xf32, #tpu.memory_space<smem>>
    %96 = vector.broadcast %95 : f32 to vector<1x256xf32>
    %97 = arith.mulf %96, %90 : vector<1x256xf32>
    %98 = arith.addf %94, %97 : vector<1x256xf32>
    %99 = vector.extract_strided_slice %34 {offsets = [0, 96], sizes = [1, 256], strides = [1, 1]} : vector<1x358xf32> to vector<1x256xf32>
    %100 = vector.extract_strided_slice %35 {offsets = [0, 96], sizes = [1, 256], strides = [1, 1]} : vector<1x358xf32> to vector<1x256xf32>
    %c42 = arith.constant 42 : index
    %101 = memref.load %arg7[%c42] : memref<98xf32, #tpu.memory_space<smem>>
    %102 = vector.broadcast %101 : f32 to vector<1x256xf32>
    %103 = arith.mulf %102, %99 : vector<1x256xf32>
    %104 = arith.addf %98, %103 : vector<1x256xf32>
    %c91 = arith.constant 91 : index
    %105 = memref.load %arg7[%c91] : memref<98xf32, #tpu.memory_space<smem>>
    %106 = vector.broadcast %105 : f32 to vector<1x256xf32>
    %107 = arith.mulf %106, %100 : vector<1x256xf32>
    %108 = arith.addf %104, %107 : vector<1x256xf32>
    %109 = vector.extract_strided_slice %36 {offsets = [0, 0], sizes = [1, 256], strides = [1, 1]} : vector<7x256xf32> to vector<1x256xf32>
    %110 = arith.mulf %109, %108 : vector<1x256xf32>
    %111 = arith.addf %37, %110 : vector<1x256xf32>
    %cst_23 = arith.constant 0.000000e+00 : f32
    %112 = vector.broadcast %cst_23 : f32 to vector<1x256xf32>
    %113 = vector.extract_strided_slice %34 {offsets = [0, 1], sizes = [1, 256], strides = [1, 1]} : vector<1x358xf32> to vector<1x256xf32>
    %114 = vector.extract_strided_slice %35 {offsets = [0, 1], sizes = [1, 256], strides = [1, 1]} : vector<1x358xf32> to vector<1x256xf32>
    %c1 = arith.constant 1 : index
    %115 = memref.load %arg7[%c1] : memref<98xf32, #tpu.memory_space<smem>>
    %116 = vector.broadcast %115 : f32 to vector<1x256xf32>
    %117 = arith.mulf %116, %113 : vector<1x256xf32>
    %118 = arith.addf %112, %117 : vector<1x256xf32>
    %c50 = arith.constant 50 : index
    %119 = memref.load %arg7[%c50] : memref<98xf32, #tpu.memory_space<smem>>
    %120 = vector.broadcast %119 : f32 to vector<1x256xf32>
    %121 = arith.mulf %120, %114 : vector<1x256xf32>
    %122 = arith.addf %118, %121 : vector<1x256xf32>
    %123 = vector.extract_strided_slice %34 {offsets = [0, 17], sizes = [1, 256], strides = [1, 1]} : vector<1x358xf32> to vector<1x256xf32>
    %124 = vector.extract_strided_slice %35 {offsets = [0, 17], sizes = [1, 256], strides = [1, 1]} : vector<1x358xf32> to vector<1x256xf32>
    %c8 = arith.constant 8 : index
    %125 = memref.load %arg7[%c8] : memref<98xf32, #tpu.memory_space<smem>>
    %126 = vector.broadcast %125 : f32 to vector<1x256xf32>
    %127 = arith.mulf %126, %123 : vector<1x256xf32>
    %128 = arith.addf %122, %127 : vector<1x256xf32>
    %c57 = arith.constant 57 : index
    %129 = memref.load %arg7[%c57] : memref<98xf32, #tpu.memory_space<smem>>
    %130 = vector.broadcast %129 : f32 to vector<1x256xf32>
    %131 = arith.mulf %130, %124 : vector<1x256xf32>
    %132 = arith.addf %128, %131 : vector<1x256xf32>
    %133 = vector.extract_strided_slice %34 {offsets = [0, 33], sizes = [1, 256], strides = [1, 1]} : vector<1x358xf32> to vector<1x256xf32>
    %134 = vector.extract_strided_slice %35 {offsets = [0, 33], sizes = [1, 256], strides = [1, 1]} : vector<1x358xf32> to vector<1x256xf32>
    %c15 = arith.constant 15 : index
    %135 = memref.load %arg7[%c15] : memref<98xf32, #tpu.memory_space<smem>>
    %136 = vector.broadcast %135 : f32 to vector<1x256xf32>
    %137 = arith.mulf %136, %133 : vector<1x256xf32>
    %138 = arith.addf %132, %137 : vector<1x256xf32>
    %c64 = arith.constant 64 : index
    %139 = memref.load %arg7[%c64] : memref<98xf32, #tpu.memory_space<smem>>
    %140 = vector.broadcast %139 : f32 to vector<1x256xf32>
    %141 = arith.mulf %140, %134 : vector<1x256xf32>
    %142 = arith.addf %138, %141 : vector<1x256xf32>
    %143 = vector.extract_strided_slice %34 {offsets = [0, 49], sizes = [1, 256], strides = [1, 1]} : vector<1x358xf32> to vector<1x256xf32>
    %144 = vector.extract_strided_slice %35 {offsets = [0, 49], sizes = [1, 256], strides = [1, 1]} : vector<1x358xf32> to vector<1x256xf32>
    %c22 = arith.constant 22 : index
    %145 = memref.load %arg7[%c22] : memref<98xf32, #tpu.memory_space<smem>>
    %146 = vector.broadcast %145 : f32 to vector<1x256xf32>
    %147 = arith.mulf %146, %143 : vector<1x256xf32>
    %148 = arith.addf %142, %147 : vector<1x256xf32>
    %c71 = arith.constant 71 : index
    %149 = memref.load %arg7[%c71] : memref<98xf32, #tpu.memory_space<smem>>
    %150 = vector.broadcast %149 : f32 to vector<1x256xf32>
    %151 = arith.mulf %150, %144 : vector<1x256xf32>
    %152 = arith.addf %148, %151 : vector<1x256xf32>
    %153 = vector.extract_strided_slice %34 {offsets = [0, 65], sizes = [1, 256], strides = [1, 1]} : vector<1x358xf32> to vector<1x256xf32>
    %154 = vector.extract_strided_slice %35 {offsets = [0, 65], sizes = [1, 256], strides = [1, 1]} : vector<1x358xf32> to vector<1x256xf32>
    %c29 = arith.constant 29 : index
    %155 = memref.load %arg7[%c29] : memref<98xf32, #tpu.memory_space<smem>>
    %156 = vector.broadcast %155 : f32 to vector<1x256xf32>
    %157 = arith.mulf %156, %153 : vector<1x256xf32>
    %158 = arith.addf %152, %157 : vector<1x256xf32>
    %c78 = arith.constant 78 : index
    %159 = memref.load %arg7[%c78] : memref<98xf32, #tpu.memory_space<smem>>
    %160 = vector.broadcast %159 : f32 to vector<1x256xf32>
    %161 = arith.mulf %160, %154 : vector<1x256xf32>
    %162 = arith.addf %158, %161 : vector<1x256xf32>
    %163 = vector.extract_strided_slice %34 {offsets = [0, 81], sizes = [1, 256], strides = [1, 1]} : vector<1x358xf32> to vector<1x256xf32>
    %164 = vector.extract_strided_slice %35 {offsets = [0, 81], sizes = [1, 256], strides = [1, 1]} : vector<1x358xf32> to vector<1x256xf32>
    %c36 = arith.constant 36 : index
    %165 = memref.load %arg7[%c36] : memref<98xf32, #tpu.memory_space<smem>>
    %166 = vector.broadcast %165 : f32 to vector<1x256xf32>
    %167 = arith.mulf %166, %163 : vector<1x256xf32>
    %168 = arith.addf %162, %167 : vector<1x256xf32>
    %c85 = arith.constant 85 : index
    %169 = memref.load %arg7[%c85] : memref<98xf32, #tpu.memory_space<smem>>
    %170 = vector.broadcast %169 : f32 to vector<1x256xf32>
    %171 = arith.mulf %170, %164 : vector<1x256xf32>
    %172 = arith.addf %168, %171 : vector<1x256xf32>
    %173 = vector.extract_strided_slice %34 {offsets = [0, 97], sizes = [1, 256], strides = [1, 1]} : vector<1x358xf32> to vector<1x256xf32>
    %174 = vector.extract_strided_slice %35 {offsets = [0, 97], sizes = [1, 256], strides = [1, 1]} : vector<1x358xf32> to vector<1x256xf32>
    %c43 = arith.constant 43 : index
    %175 = memref.load %arg7[%c43] : memref<98xf32, #tpu.memory_space<smem>>
    %176 = vector.broadcast %175 : f32 to vector<1x256xf32>
    %177 = arith.mulf %176, %173 : vector<1x256xf32>
    %178 = arith.addf %172, %177 : vector<1x256xf32>
    %c92 = arith.constant 92 : index
    %179 = memref.load %arg7[%c92] : memref<98xf32, #tpu.memory_space<smem>>
    %180 = vector.broadcast %179 : f32 to vector<1x256xf32>
    %181 = arith.mulf %180, %174 : vector<1x256xf32>
    %182 = arith.addf %178, %181 : vector<1x256xf32>
    %183 = vector.extract_strided_slice %36 {offsets = [1, 0], sizes = [1, 256], strides = [1, 1]} : vector<7x256xf32> to vector<1x256xf32>
    %184 = arith.mulf %183, %182 : vector<1x256xf32>
    %185 = arith.addf %111, %184 : vector<1x256xf32>
    %cst_24 = arith.constant 0.000000e+00 : f32
    %186 = vector.broadcast %cst_24 : f32 to vector<1x256xf32>
    %187 = vector.extract_strided_slice %34 {offsets = [0, 2], sizes = [1, 256], strides = [1, 1]} : vector<1x358xf32> to vector<1x256xf32>
    %188 = vector.extract_strided_slice %35 {offsets = [0, 2], sizes = [1, 256], strides = [1, 1]} : vector<1x358xf32> to vector<1x256xf32>
    %c2 = arith.constant 2 : index
    %189 = memref.load %arg7[%c2] : memref<98xf32, #tpu.memory_space<smem>>
    %190 = vector.broadcast %189 : f32 to vector<1x256xf32>
    %191 = arith.mulf %190, %187 : vector<1x256xf32>
    %192 = arith.addf %186, %191 : vector<1x256xf32>
    %c51 = arith.constant 51 : index
    %193 = memref.load %arg7[%c51] : memref<98xf32, #tpu.memory_space<smem>>
    %194 = vector.broadcast %193 : f32 to vector<1x256xf32>
    %195 = arith.mulf %194, %188 : vector<1x256xf32>
    %196 = arith.addf %192, %195 : vector<1x256xf32>
    %197 = vector.extract_strided_slice %34 {offsets = [0, 18], sizes = [1, 256], strides = [1, 1]} : vector<1x358xf32> to vector<1x256xf32>
    %198 = vector.extract_strided_slice %35 {offsets = [0, 18], sizes = [1, 256], strides = [1, 1]} : vector<1x358xf32> to vector<1x256xf32>
    %c9 = arith.constant 9 : index
    %199 = memref.load %arg7[%c9] : memref<98xf32, #tpu.memory_space<smem>>
    %200 = vector.broadcast %199 : f32 to vector<1x256xf32>
    %201 = arith.mulf %200, %197 : vector<1x256xf32>
    %202 = arith.addf %196, %201 : vector<1x256xf32>
    %c58 = arith.constant 58 : index
    %203 = memref.load %arg7[%c58] : memref<98xf32, #tpu.memory_space<smem>>
    %204 = vector.broadcast %203 : f32 to vector<1x256xf32>
    %205 = arith.mulf %204, %198 : vector<1x256xf32>
    %206 = arith.addf %202, %205 : vector<1x256xf32>
    %207 = vector.extract_strided_slice %34 {offsets = [0, 34], sizes = [1, 256], strides = [1, 1]} : vector<1x358xf32> to vector<1x256xf32>
    %208 = vector.extract_strided_slice %35 {offsets = [0, 34], sizes = [1, 256], strides = [1, 1]} : vector<1x358xf32> to vector<1x256xf32>
    %c16 = arith.constant 16 : index
    %209 = memref.load %arg7[%c16] : memref<98xf32, #tpu.memory_space<smem>>
    %210 = vector.broadcast %209 : f32 to vector<1x256xf32>
    %211 = arith.mulf %210, %207 : vector<1x256xf32>
    %212 = arith.addf %206, %211 : vector<1x256xf32>
    %c65 = arith.constant 65 : index
    %213 = memref.load %arg7[%c65] : memref<98xf32, #tpu.memory_space<smem>>
    %214 = vector.broadcast %213 : f32 to vector<1x256xf32>
    %215 = arith.mulf %214, %208 : vector<1x256xf32>
    %216 = arith.addf %212, %215 : vector<1x256xf32>
    %217 = vector.extract_strided_slice %34 {offsets = [0, 50], sizes = [1, 256], strides = [1, 1]} : vector<1x358xf32> to vector<1x256xf32>
    %218 = vector.extract_strided_slice %35 {offsets = [0, 50], sizes = [1, 256], strides = [1, 1]} : vector<1x358xf32> to vector<1x256xf32>
    %c23 = arith.constant 23 : index
    %219 = memref.load %arg7[%c23] : memref<98xf32, #tpu.memory_space<smem>>
    %220 = vector.broadcast %219 : f32 to vector<1x256xf32>
    %221 = arith.mulf %220, %217 : vector<1x256xf32>
    %222 = arith.addf %216, %221 : vector<1x256xf32>
    %c72 = arith.constant 72 : index
    %223 = memref.load %arg7[%c72] : memref<98xf32, #tpu.memory_space<smem>>
    %224 = vector.broadcast %223 : f32 to vector<1x256xf32>
    %225 = arith.mulf %224, %218 : vector<1x256xf32>
    %226 = arith.addf %222, %225 : vector<1x256xf32>
    %227 = vector.extract_strided_slice %34 {offsets = [0, 66], sizes = [1, 256], strides = [1, 1]} : vector<1x358xf32> to vector<1x256xf32>
    %228 = vector.extract_strided_slice %35 {offsets = [0, 66], sizes = [1, 256], strides = [1, 1]} : vector<1x358xf32> to vector<1x256xf32>
    %c30 = arith.constant 30 : index
    %229 = memref.load %arg7[%c30] : memref<98xf32, #tpu.memory_space<smem>>
    %230 = vector.broadcast %229 : f32 to vector<1x256xf32>
    %231 = arith.mulf %230, %227 : vector<1x256xf32>
    %232 = arith.addf %226, %231 : vector<1x256xf32>
    %c79 = arith.constant 79 : index
    %233 = memref.load %arg7[%c79] : memref<98xf32, #tpu.memory_space<smem>>
    %234 = vector.broadcast %233 : f32 to vector<1x256xf32>
    %235 = arith.mulf %234, %228 : vector<1x256xf32>
    %236 = arith.addf %232, %235 : vector<1x256xf32>
    %237 = vector.extract_strided_slice %34 {offsets = [0, 82], sizes = [1, 256], strides = [1, 1]} : vector<1x358xf32> to vector<1x256xf32>
    %238 = vector.extract_strided_slice %35 {offsets = [0, 82], sizes = [1, 256], strides = [1, 1]} : vector<1x358xf32> to vector<1x256xf32>
    %c37 = arith.constant 37 : index
    %239 = memref.load %arg7[%c37] : memref<98xf32, #tpu.memory_space<smem>>
    %240 = vector.broadcast %239 : f32 to vector<1x256xf32>
    %241 = arith.mulf %240, %237 : vector<1x256xf32>
    %242 = arith.addf %236, %241 : vector<1x256xf32>
    %c86 = arith.constant 86 : index
    %243 = memref.load %arg7[%c86] : memref<98xf32, #tpu.memory_space<smem>>
    %244 = vector.broadcast %243 : f32 to vector<1x256xf32>
    %245 = arith.mulf %244, %238 : vector<1x256xf32>
    %246 = arith.addf %242, %245 : vector<1x256xf32>
    %247 = vector.extract_strided_slice %34 {offsets = [0, 98], sizes = [1, 256], strides = [1, 1]} : vector<1x358xf32> to vector<1x256xf32>
    %248 = vector.extract_strided_slice %35 {offsets = [0, 98], sizes = [1, 256], strides = [1, 1]} : vector<1x358xf32> to vector<1x256xf32>
    %c44 = arith.constant 44 : index
    %249 = memref.load %arg7[%c44] : memref<98xf32, #tpu.memory_space<smem>>
    %250 = vector.broadcast %249 : f32 to vector<1x256xf32>
    %251 = arith.mulf %250, %247 : vector<1x256xf32>
    %252 = arith.addf %246, %251 : vector<1x256xf32>
    %c93 = arith.constant 93 : index
    %253 = memref.load %arg7[%c93] : memref<98xf32, #tpu.memory_space<smem>>
    %254 = vector.broadcast %253 : f32 to vector<1x256xf32>
    %255 = arith.mulf %254, %248 : vector<1x256xf32>
    %256 = arith.addf %252, %255 : vector<1x256xf32>
    %257 = vector.extract_strided_slice %36 {offsets = [2, 0], sizes = [1, 256], strides = [1, 1]} : vector<7x256xf32> to vector<1x256xf32>
    %258 = arith.mulf %257, %256 : vector<1x256xf32>
    %259 = arith.addf %185, %258 : vector<1x256xf32>
    %cst_25 = arith.constant 0.000000e+00 : f32
    %260 = vector.broadcast %cst_25 : f32 to vector<1x256xf32>
    %261 = vector.extract_strided_slice %34 {offsets = [0, 3], sizes = [1, 256], strides = [1, 1]} : vector<1x358xf32> to vector<1x256xf32>
    %262 = vector.extract_strided_slice %35 {offsets = [0, 3], sizes = [1, 256], strides = [1, 1]} : vector<1x358xf32> to vector<1x256xf32>
    %c3 = arith.constant 3 : index
    %263 = memref.load %arg7[%c3] : memref<98xf32, #tpu.memory_space<smem>>
    %264 = vector.broadcast %263 : f32 to vector<1x256xf32>
    %265 = arith.mulf %264, %261 : vector<1x256xf32>
    %266 = arith.addf %260, %265 : vector<1x256xf32>
    %c52 = arith.constant 52 : index
    %267 = memref.load %arg7[%c52] : memref<98xf32, #tpu.memory_space<smem>>
    %268 = vector.broadcast %267 : f32 to vector<1x256xf32>
    %269 = arith.mulf %268, %262 : vector<1x256xf32>
    %270 = arith.addf %266, %269 : vector<1x256xf32>
    %271 = vector.extract_strided_slice %34 {offsets = [0, 19], sizes = [1, 256], strides = [1, 1]} : vector<1x358xf32> to vector<1x256xf32>
    %272 = vector.extract_strided_slice %35 {offsets = [0, 19], sizes = [1, 256], strides = [1, 1]} : vector<1x358xf32> to vector<1x256xf32>
    %c10 = arith.constant 10 : index
    %273 = memref.load %arg7[%c10] : memref<98xf32, #tpu.memory_space<smem>>
    %274 = vector.broadcast %273 : f32 to vector<1x256xf32>
    %275 = arith.mulf %274, %271 : vector<1x256xf32>
    %276 = arith.addf %270, %275 : vector<1x256xf32>
    %c59 = arith.constant 59 : index
    %277 = memref.load %arg7[%c59] : memref<98xf32, #tpu.memory_space<smem>>
    %278 = vector.broadcast %277 : f32 to vector<1x256xf32>
    %279 = arith.mulf %278, %272 : vector<1x256xf32>
    %280 = arith.addf %276, %279 : vector<1x256xf32>
    %281 = vector.extract_strided_slice %34 {offsets = [0, 35], sizes = [1, 256], strides = [1, 1]} : vector<1x358xf32> to vector<1x256xf32>
    %282 = vector.extract_strided_slice %35 {offsets = [0, 35], sizes = [1, 256], strides = [1, 1]} : vector<1x358xf32> to vector<1x256xf32>
    %c17 = arith.constant 17 : index
    %283 = memref.load %arg7[%c17] : memref<98xf32, #tpu.memory_space<smem>>
    %284 = vector.broadcast %283 : f32 to vector<1x256xf32>
    %285 = arith.mulf %284, %281 : vector<1x256xf32>
    %286 = arith.addf %280, %285 : vector<1x256xf32>
    %c66 = arith.constant 66 : index
    %287 = memref.load %arg7[%c66] : memref<98xf32, #tpu.memory_space<smem>>
    %288 = vector.broadcast %287 : f32 to vector<1x256xf32>
    %289 = arith.mulf %288, %282 : vector<1x256xf32>
    %290 = arith.addf %286, %289 : vector<1x256xf32>
    %291 = vector.extract_strided_slice %34 {offsets = [0, 51], sizes = [1, 256], strides = [1, 1]} : vector<1x358xf32> to vector<1x256xf32>
    %292 = vector.extract_strided_slice %35 {offsets = [0, 51], sizes = [1, 256], strides = [1, 1]} : vector<1x358xf32> to vector<1x256xf32>
    %c24 = arith.constant 24 : index
    %293 = memref.load %arg7[%c24] : memref<98xf32, #tpu.memory_space<smem>>
    %294 = vector.broadcast %293 : f32 to vector<1x256xf32>
    %295 = arith.mulf %294, %291 : vector<1x256xf32>
    %296 = arith.addf %290, %295 : vector<1x256xf32>
    %c73 = arith.constant 73 : index
    %297 = memref.load %arg7[%c73] : memref<98xf32, #tpu.memory_space<smem>>
    %298 = vector.broadcast %297 : f32 to vector<1x256xf32>
    %299 = arith.mulf %298, %292 : vector<1x256xf32>
    %300 = arith.addf %296, %299 : vector<1x256xf32>
    %301 = vector.extract_strided_slice %34 {offsets = [0, 67], sizes = [1, 256], strides = [1, 1]} : vector<1x358xf32> to vector<1x256xf32>
    %302 = vector.extract_strided_slice %35 {offsets = [0, 67], sizes = [1, 256], strides = [1, 1]} : vector<1x358xf32> to vector<1x256xf32>
    %c31 = arith.constant 31 : index
    %303 = memref.load %arg7[%c31] : memref<98xf32, #tpu.memory_space<smem>>
    %304 = vector.broadcast %303 : f32 to vector<1x256xf32>
    %305 = arith.mulf %304, %301 : vector<1x256xf32>
    %306 = arith.addf %300, %305 : vector<1x256xf32>
    %c80 = arith.constant 80 : index
    %307 = memref.load %arg7[%c80] : memref<98xf32, #tpu.memory_space<smem>>
    %308 = vector.broadcast %307 : f32 to vector<1x256xf32>
    %309 = arith.mulf %308, %302 : vector<1x256xf32>
    %310 = arith.addf %306, %309 : vector<1x256xf32>
    %311 = vector.extract_strided_slice %34 {offsets = [0, 83], sizes = [1, 256], strides = [1, 1]} : vector<1x358xf32> to vector<1x256xf32>
    %312 = vector.extract_strided_slice %35 {offsets = [0, 83], sizes = [1, 256], strides = [1, 1]} : vector<1x358xf32> to vector<1x256xf32>
    %c38 = arith.constant 38 : index
    %313 = memref.load %arg7[%c38] : memref<98xf32, #tpu.memory_space<smem>>
    %314 = vector.broadcast %313 : f32 to vector<1x256xf32>
    %315 = arith.mulf %314, %311 : vector<1x256xf32>
    %316 = arith.addf %310, %315 : vector<1x256xf32>
    %c87 = arith.constant 87 : index
    %317 = memref.load %arg7[%c87] : memref<98xf32, #tpu.memory_space<smem>>
    %318 = vector.broadcast %317 : f32 to vector<1x256xf32>
    %319 = arith.mulf %318, %312 : vector<1x256xf32>
    %320 = arith.addf %316, %319 : vector<1x256xf32>
    %321 = vector.extract_strided_slice %34 {offsets = [0, 99], sizes = [1, 256], strides = [1, 1]} : vector<1x358xf32> to vector<1x256xf32>
    %322 = vector.extract_strided_slice %35 {offsets = [0, 99], sizes = [1, 256], strides = [1, 1]} : vector<1x358xf32> to vector<1x256xf32>
    %c45 = arith.constant 45 : index
    %323 = memref.load %arg7[%c45] : memref<98xf32, #tpu.memory_space<smem>>
    %324 = vector.broadcast %323 : f32 to vector<1x256xf32>
    %325 = arith.mulf %324, %321 : vector<1x256xf32>
    %326 = arith.addf %320, %325 : vector<1x256xf32>
    %c94 = arith.constant 94 : index
    %327 = memref.load %arg7[%c94] : memref<98xf32, #tpu.memory_space<smem>>
    %328 = vector.broadcast %327 : f32 to vector<1x256xf32>
    %329 = arith.mulf %328, %322 : vector<1x256xf32>
    %330 = arith.addf %326, %329 : vector<1x256xf32>
    %331 = vector.extract_strided_slice %36 {offsets = [3, 0], sizes = [1, 256], strides = [1, 1]} : vector<7x256xf32> to vector<1x256xf32>
    %332 = arith.mulf %331, %330 : vector<1x256xf32>
    %333 = arith.addf %259, %332 : vector<1x256xf32>
    %cst_26 = arith.constant 0.000000e+00 : f32
    %334 = vector.broadcast %cst_26 : f32 to vector<1x256xf32>
    %335 = vector.extract_strided_slice %34 {offsets = [0, 4], sizes = [1, 256], strides = [1, 1]} : vector<1x358xf32> to vector<1x256xf32>
    %336 = vector.extract_strided_slice %35 {offsets = [0, 4], sizes = [1, 256], strides = [1, 1]} : vector<1x358xf32> to vector<1x256xf32>
    %c4 = arith.constant 4 : index
    %337 = memref.load %arg7[%c4] : memref<98xf32, #tpu.memory_space<smem>>
    %338 = vector.broadcast %337 : f32 to vector<1x256xf32>
    %339 = arith.mulf %338, %335 : vector<1x256xf32>
    %340 = arith.addf %334, %339 : vector<1x256xf32>
    %c53 = arith.constant 53 : index
    %341 = memref.load %arg7[%c53] : memref<98xf32, #tpu.memory_space<smem>>
    %342 = vector.broadcast %341 : f32 to vector<1x256xf32>
    %343 = arith.mulf %342, %336 : vector<1x256xf32>
    %344 = arith.addf %340, %343 : vector<1x256xf32>
    %345 = vector.extract_strided_slice %34 {offsets = [0, 20], sizes = [1, 256], strides = [1, 1]} : vector<1x358xf32> to vector<1x256xf32>
    %346 = vector.extract_strided_slice %35 {offsets = [0, 20], sizes = [1, 256], strides = [1, 1]} : vector<1x358xf32> to vector<1x256xf32>
    %c11 = arith.constant 11 : index
    %347 = memref.load %arg7[%c11] : memref<98xf32, #tpu.memory_space<smem>>
    %348 = vector.broadcast %347 : f32 to vector<1x256xf32>
    %349 = arith.mulf %348, %345 : vector<1x256xf32>
    %350 = arith.addf %344, %349 : vector<1x256xf32>
    %c60 = arith.constant 60 : index
    %351 = memref.load %arg7[%c60] : memref<98xf32, #tpu.memory_space<smem>>
    %352 = vector.broadcast %351 : f32 to vector<1x256xf32>
    %353 = arith.mulf %352, %346 : vector<1x256xf32>
    %354 = arith.addf %350, %353 : vector<1x256xf32>
    %355 = vector.extract_strided_slice %34 {offsets = [0, 36], sizes = [1, 256], strides = [1, 1]} : vector<1x358xf32> to vector<1x256xf32>
    %356 = vector.extract_strided_slice %35 {offsets = [0, 36], sizes = [1, 256], strides = [1, 1]} : vector<1x358xf32> to vector<1x256xf32>
    %c18 = arith.constant 18 : index
    %357 = memref.load %arg7[%c18] : memref<98xf32, #tpu.memory_space<smem>>
    %358 = vector.broadcast %357 : f32 to vector<1x256xf32>
    %359 = arith.mulf %358, %355 : vector<1x256xf32>
    %360 = arith.addf %354, %359 : vector<1x256xf32>
    %c67 = arith.constant 67 : index
    %361 = memref.load %arg7[%c67] : memref<98xf32, #tpu.memory_space<smem>>
    %362 = vector.broadcast %361 : f32 to vector<1x256xf32>
    %363 = arith.mulf %362, %356 : vector<1x256xf32>
    %364 = arith.addf %360, %363 : vector<1x256xf32>
    %365 = vector.extract_strided_slice %34 {offsets = [0, 52], sizes = [1, 256], strides = [1, 1]} : vector<1x358xf32> to vector<1x256xf32>
    %366 = vector.extract_strided_slice %35 {offsets = [0, 52], sizes = [1, 256], strides = [1, 1]} : vector<1x358xf32> to vector<1x256xf32>
    %c25 = arith.constant 25 : index
    %367 = memref.load %arg7[%c25] : memref<98xf32, #tpu.memory_space<smem>>
    %368 = vector.broadcast %367 : f32 to vector<1x256xf32>
    %369 = arith.mulf %368, %365 : vector<1x256xf32>
    %370 = arith.addf %364, %369 : vector<1x256xf32>
    %c74 = arith.constant 74 : index
    %371 = memref.load %arg7[%c74] : memref<98xf32, #tpu.memory_space<smem>>
    %372 = vector.broadcast %371 : f32 to vector<1x256xf32>
    %373 = arith.mulf %372, %366 : vector<1x256xf32>
    %374 = arith.addf %370, %373 : vector<1x256xf32>
    %375 = vector.extract_strided_slice %34 {offsets = [0, 68], sizes = [1, 256], strides = [1, 1]} : vector<1x358xf32> to vector<1x256xf32>
    %376 = vector.extract_strided_slice %35 {offsets = [0, 68], sizes = [1, 256], strides = [1, 1]} : vector<1x358xf32> to vector<1x256xf32>
    %c32 = arith.constant 32 : index
    %377 = memref.load %arg7[%c32] : memref<98xf32, #tpu.memory_space<smem>>
    %378 = vector.broadcast %377 : f32 to vector<1x256xf32>
    %379 = arith.mulf %378, %375 : vector<1x256xf32>
    %380 = arith.addf %374, %379 : vector<1x256xf32>
    %c81 = arith.constant 81 : index
    %381 = memref.load %arg7[%c81] : memref<98xf32, #tpu.memory_space<smem>>
    %382 = vector.broadcast %381 : f32 to vector<1x256xf32>
    %383 = arith.mulf %382, %376 : vector<1x256xf32>
    %384 = arith.addf %380, %383 : vector<1x256xf32>
    %385 = vector.extract_strided_slice %34 {offsets = [0, 84], sizes = [1, 256], strides = [1, 1]} : vector<1x358xf32> to vector<1x256xf32>
    %386 = vector.extract_strided_slice %35 {offsets = [0, 84], sizes = [1, 256], strides = [1, 1]} : vector<1x358xf32> to vector<1x256xf32>
    %c39 = arith.constant 39 : index
    %387 = memref.load %arg7[%c39] : memref<98xf32, #tpu.memory_space<smem>>
    %388 = vector.broadcast %387 : f32 to vector<1x256xf32>
    %389 = arith.mulf %388, %385 : vector<1x256xf32>
    %390 = arith.addf %384, %389 : vector<1x256xf32>
    %c88 = arith.constant 88 : index
    %391 = memref.load %arg7[%c88] : memref<98xf32, #tpu.memory_space<smem>>
    %392 = vector.broadcast %391 : f32 to vector<1x256xf32>
    %393 = arith.mulf %392, %386 : vector<1x256xf32>
    %394 = arith.addf %390, %393 : vector<1x256xf32>
    %395 = vector.extract_strided_slice %34 {offsets = [0, 100], sizes = [1, 256], strides = [1, 1]} : vector<1x358xf32> to vector<1x256xf32>
    %396 = vector.extract_strided_slice %35 {offsets = [0, 100], sizes = [1, 256], strides = [1, 1]} : vector<1x358xf32> to vector<1x256xf32>
    %c46 = arith.constant 46 : index
    %397 = memref.load %arg7[%c46] : memref<98xf32, #tpu.memory_space<smem>>
    %398 = vector.broadcast %397 : f32 to vector<1x256xf32>
    %399 = arith.mulf %398, %395 : vector<1x256xf32>
    %400 = arith.addf %394, %399 : vector<1x256xf32>
    %c95 = arith.constant 95 : index
    %401 = memref.load %arg7[%c95] : memref<98xf32, #tpu.memory_space<smem>>
    %402 = vector.broadcast %401 : f32 to vector<1x256xf32>
    %403 = arith.mulf %402, %396 : vector<1x256xf32>
    %404 = arith.addf %400, %403 : vector<1x256xf32>
    %405 = vector.extract_strided_slice %36 {offsets = [4, 0], sizes = [1, 256], strides = [1, 1]} : vector<7x256xf32> to vector<1x256xf32>
    %406 = arith.mulf %405, %404 : vector<1x256xf32>
    %407 = arith.addf %333, %406 : vector<1x256xf32>
    %cst_27 = arith.constant 0.000000e+00 : f32
    %408 = vector.broadcast %cst_27 : f32 to vector<1x256xf32>
    %409 = vector.extract_strided_slice %34 {offsets = [0, 5], sizes = [1, 256], strides = [1, 1]} : vector<1x358xf32> to vector<1x256xf32>
    %410 = vector.extract_strided_slice %35 {offsets = [0, 5], sizes = [1, 256], strides = [1, 1]} : vector<1x358xf32> to vector<1x256xf32>
    %c5 = arith.constant 5 : index
    %411 = memref.load %arg7[%c5] : memref<98xf32, #tpu.memory_space<smem>>
    %412 = vector.broadcast %411 : f32 to vector<1x256xf32>
    %413 = arith.mulf %412, %409 : vector<1x256xf32>
    %414 = arith.addf %408, %413 : vector<1x256xf32>
    %c54 = arith.constant 54 : index
    %415 = memref.load %arg7[%c54] : memref<98xf32, #tpu.memory_space<smem>>
    %416 = vector.broadcast %415 : f32 to vector<1x256xf32>
    %417 = arith.mulf %416, %410 : vector<1x256xf32>
    %418 = arith.addf %414, %417 : vector<1x256xf32>
    %419 = vector.extract_strided_slice %34 {offsets = [0, 21], sizes = [1, 256], strides = [1, 1]} : vector<1x358xf32> to vector<1x256xf32>
    %420 = vector.extract_strided_slice %35 {offsets = [0, 21], sizes = [1, 256], strides = [1, 1]} : vector<1x358xf32> to vector<1x256xf32>
    %c12 = arith.constant 12 : index
    %421 = memref.load %arg7[%c12] : memref<98xf32, #tpu.memory_space<smem>>
    %422 = vector.broadcast %421 : f32 to vector<1x256xf32>
    %423 = arith.mulf %422, %419 : vector<1x256xf32>
    %424 = arith.addf %418, %423 : vector<1x256xf32>
    %c61 = arith.constant 61 : index
    %425 = memref.load %arg7[%c61] : memref<98xf32, #tpu.memory_space<smem>>
    %426 = vector.broadcast %425 : f32 to vector<1x256xf32>
    %427 = arith.mulf %426, %420 : vector<1x256xf32>
    %428 = arith.addf %424, %427 : vector<1x256xf32>
    %429 = vector.extract_strided_slice %34 {offsets = [0, 37], sizes = [1, 256], strides = [1, 1]} : vector<1x358xf32> to vector<1x256xf32>
    %430 = vector.extract_strided_slice %35 {offsets = [0, 37], sizes = [1, 256], strides = [1, 1]} : vector<1x358xf32> to vector<1x256xf32>
    %c19 = arith.constant 19 : index
    %431 = memref.load %arg7[%c19] : memref<98xf32, #tpu.memory_space<smem>>
    %432 = vector.broadcast %431 : f32 to vector<1x256xf32>
    %433 = arith.mulf %432, %429 : vector<1x256xf32>
    %434 = arith.addf %428, %433 : vector<1x256xf32>
    %c68 = arith.constant 68 : index
    %435 = memref.load %arg7[%c68] : memref<98xf32, #tpu.memory_space<smem>>
    %436 = vector.broadcast %435 : f32 to vector<1x256xf32>
    %437 = arith.mulf %436, %430 : vector<1x256xf32>
    %438 = arith.addf %434, %437 : vector<1x256xf32>
    %439 = vector.extract_strided_slice %34 {offsets = [0, 53], sizes = [1, 256], strides = [1, 1]} : vector<1x358xf32> to vector<1x256xf32>
    %440 = vector.extract_strided_slice %35 {offsets = [0, 53], sizes = [1, 256], strides = [1, 1]} : vector<1x358xf32> to vector<1x256xf32>
    %c26 = arith.constant 26 : index
    %441 = memref.load %arg7[%c26] : memref<98xf32, #tpu.memory_space<smem>>
    %442 = vector.broadcast %441 : f32 to vector<1x256xf32>
    %443 = arith.mulf %442, %439 : vector<1x256xf32>
    %444 = arith.addf %438, %443 : vector<1x256xf32>
    %c75 = arith.constant 75 : index
    %445 = memref.load %arg7[%c75] : memref<98xf32, #tpu.memory_space<smem>>
    %446 = vector.broadcast %445 : f32 to vector<1x256xf32>
    %447 = arith.mulf %446, %440 : vector<1x256xf32>
    %448 = arith.addf %444, %447 : vector<1x256xf32>
    %449 = vector.extract_strided_slice %34 {offsets = [0, 69], sizes = [1, 256], strides = [1, 1]} : vector<1x358xf32> to vector<1x256xf32>
    %450 = vector.extract_strided_slice %35 {offsets = [0, 69], sizes = [1, 256], strides = [1, 1]} : vector<1x358xf32> to vector<1x256xf32>
    %c33 = arith.constant 33 : index
    %451 = memref.load %arg7[%c33] : memref<98xf32, #tpu.memory_space<smem>>
    %452 = vector.broadcast %451 : f32 to vector<1x256xf32>
    %453 = arith.mulf %452, %449 : vector<1x256xf32>
    %454 = arith.addf %448, %453 : vector<1x256xf32>
    %c82 = arith.constant 82 : index
    %455 = memref.load %arg7[%c82] : memref<98xf32, #tpu.memory_space<smem>>
    %456 = vector.broadcast %455 : f32 to vector<1x256xf32>
    %457 = arith.mulf %456, %450 : vector<1x256xf32>
    %458 = arith.addf %454, %457 : vector<1x256xf32>
    %459 = vector.extract_strided_slice %34 {offsets = [0, 85], sizes = [1, 256], strides = [1, 1]} : vector<1x358xf32> to vector<1x256xf32>
    %460 = vector.extract_strided_slice %35 {offsets = [0, 85], sizes = [1, 256], strides = [1, 1]} : vector<1x358xf32> to vector<1x256xf32>
    %c40 = arith.constant 40 : index
    %461 = memref.load %arg7[%c40] : memref<98xf32, #tpu.memory_space<smem>>
    %462 = vector.broadcast %461 : f32 to vector<1x256xf32>
    %463 = arith.mulf %462, %459 : vector<1x256xf32>
    %464 = arith.addf %458, %463 : vector<1x256xf32>
    %c89 = arith.constant 89 : index
    %465 = memref.load %arg7[%c89] : memref<98xf32, #tpu.memory_space<smem>>
    %466 = vector.broadcast %465 : f32 to vector<1x256xf32>
    %467 = arith.mulf %466, %460 : vector<1x256xf32>
    %468 = arith.addf %464, %467 : vector<1x256xf32>
    %469 = vector.extract_strided_slice %34 {offsets = [0, 101], sizes = [1, 256], strides = [1, 1]} : vector<1x358xf32> to vector<1x256xf32>
    %470 = vector.extract_strided_slice %35 {offsets = [0, 101], sizes = [1, 256], strides = [1, 1]} : vector<1x358xf32> to vector<1x256xf32>
    %c47 = arith.constant 47 : index
    %471 = memref.load %arg7[%c47] : memref<98xf32, #tpu.memory_space<smem>>
    %472 = vector.broadcast %471 : f32 to vector<1x256xf32>
    %473 = arith.mulf %472, %469 : vector<1x256xf32>
    %474 = arith.addf %468, %473 : vector<1x256xf32>
    %c96 = arith.constant 96 : index
    %475 = memref.load %arg7[%c96] : memref<98xf32, #tpu.memory_space<smem>>
    %476 = vector.broadcast %475 : f32 to vector<1x256xf32>
    %477 = arith.mulf %476, %470 : vector<1x256xf32>
    %478 = arith.addf %474, %477 : vector<1x256xf32>
    %479 = vector.extract_strided_slice %36 {offsets = [5, 0], sizes = [1, 256], strides = [1, 1]} : vector<7x256xf32> to vector<1x256xf32>
    %480 = arith.mulf %479, %478 : vector<1x256xf32>
    %481 = arith.addf %407, %480 : vector<1x256xf32>
    %cst_28 = arith.constant 0.000000e+00 : f32
    %482 = vector.broadcast %cst_28 : f32 to vector<1x256xf32>
    %483 = vector.extract_strided_slice %34 {offsets = [0, 6], sizes = [1, 256], strides = [1, 1]} : vector<1x358xf32> to vector<1x256xf32>
    %484 = vector.extract_strided_slice %35 {offsets = [0, 6], sizes = [1, 256], strides = [1, 1]} : vector<1x358xf32> to vector<1x256xf32>
    %c6 = arith.constant 6 : index
    %485 = memref.load %arg7[%c6] : memref<98xf32, #tpu.memory_space<smem>>
    %486 = vector.broadcast %485 : f32 to vector<1x256xf32>
    %487 = arith.mulf %486, %483 : vector<1x256xf32>
    %488 = arith.addf %482, %487 : vector<1x256xf32>
    %c55 = arith.constant 55 : index
    %489 = memref.load %arg7[%c55] : memref<98xf32, #tpu.memory_space<smem>>
    %490 = vector.broadcast %489 : f32 to vector<1x256xf32>
    %491 = arith.mulf %490, %484 : vector<1x256xf32>
    %492 = arith.addf %488, %491 : vector<1x256xf32>
    %493 = vector.extract_strided_slice %34 {offsets = [0, 22], sizes = [1, 256], strides = [1, 1]} : vector<1x358xf32> to vector<1x256xf32>
    %494 = vector.extract_strided_slice %35 {offsets = [0, 22], sizes = [1, 256], strides = [1, 1]} : vector<1x358xf32> to vector<1x256xf32>
    %c13 = arith.constant 13 : index
    %495 = memref.load %arg7[%c13] : memref<98xf32, #tpu.memory_space<smem>>
    %496 = vector.broadcast %495 : f32 to vector<1x256xf32>
    %497 = arith.mulf %496, %493 : vector<1x256xf32>
    %498 = arith.addf %492, %497 : vector<1x256xf32>
    %c62 = arith.constant 62 : index
    %499 = memref.load %arg7[%c62] : memref<98xf32, #tpu.memory_space<smem>>
    %500 = vector.broadcast %499 : f32 to vector<1x256xf32>
    %501 = arith.mulf %500, %494 : vector<1x256xf32>
    %502 = arith.addf %498, %501 : vector<1x256xf32>
    %503 = vector.extract_strided_slice %34 {offsets = [0, 38], sizes = [1, 256], strides = [1, 1]} : vector<1x358xf32> to vector<1x256xf32>
    %504 = vector.extract_strided_slice %35 {offsets = [0, 38], sizes = [1, 256], strides = [1, 1]} : vector<1x358xf32> to vector<1x256xf32>
    %c20 = arith.constant 20 : index
    %505 = memref.load %arg7[%c20] : memref<98xf32, #tpu.memory_space<smem>>
    %506 = vector.broadcast %505 : f32 to vector<1x256xf32>
    %507 = arith.mulf %506, %503 : vector<1x256xf32>
    %508 = arith.addf %502, %507 : vector<1x256xf32>
    %c69 = arith.constant 69 : index
    %509 = memref.load %arg7[%c69] : memref<98xf32, #tpu.memory_space<smem>>
    %510 = vector.broadcast %509 : f32 to vector<1x256xf32>
    %511 = arith.mulf %510, %504 : vector<1x256xf32>
    %512 = arith.addf %508, %511 : vector<1x256xf32>
    %513 = vector.extract_strided_slice %34 {offsets = [0, 54], sizes = [1, 256], strides = [1, 1]} : vector<1x358xf32> to vector<1x256xf32>
    %514 = vector.extract_strided_slice %35 {offsets = [0, 54], sizes = [1, 256], strides = [1, 1]} : vector<1x358xf32> to vector<1x256xf32>
    %c27 = arith.constant 27 : index
    %515 = memref.load %arg7[%c27] : memref<98xf32, #tpu.memory_space<smem>>
    %516 = vector.broadcast %515 : f32 to vector<1x256xf32>
    %517 = arith.mulf %516, %513 : vector<1x256xf32>
    %518 = arith.addf %512, %517 : vector<1x256xf32>
    %c76 = arith.constant 76 : index
    %519 = memref.load %arg7[%c76] : memref<98xf32, #tpu.memory_space<smem>>
    %520 = vector.broadcast %519 : f32 to vector<1x256xf32>
    %521 = arith.mulf %520, %514 : vector<1x256xf32>
    %522 = arith.addf %518, %521 : vector<1x256xf32>
    %523 = vector.extract_strided_slice %34 {offsets = [0, 70], sizes = [1, 256], strides = [1, 1]} : vector<1x358xf32> to vector<1x256xf32>
    %524 = vector.extract_strided_slice %35 {offsets = [0, 70], sizes = [1, 256], strides = [1, 1]} : vector<1x358xf32> to vector<1x256xf32>
    %c34 = arith.constant 34 : index
    %525 = memref.load %arg7[%c34] : memref<98xf32, #tpu.memory_space<smem>>
    %526 = vector.broadcast %525 : f32 to vector<1x256xf32>
    %527 = arith.mulf %526, %523 : vector<1x256xf32>
    %528 = arith.addf %522, %527 : vector<1x256xf32>
    %c83 = arith.constant 83 : index
    %529 = memref.load %arg7[%c83] : memref<98xf32, #tpu.memory_space<smem>>
    %530 = vector.broadcast %529 : f32 to vector<1x256xf32>
    %531 = arith.mulf %530, %524 : vector<1x256xf32>
    %532 = arith.addf %528, %531 : vector<1x256xf32>
    %533 = vector.extract_strided_slice %34 {offsets = [0, 86], sizes = [1, 256], strides = [1, 1]} : vector<1x358xf32> to vector<1x256xf32>
    %534 = vector.extract_strided_slice %35 {offsets = [0, 86], sizes = [1, 256], strides = [1, 1]} : vector<1x358xf32> to vector<1x256xf32>
    %c41 = arith.constant 41 : index
    %535 = memref.load %arg7[%c41] : memref<98xf32, #tpu.memory_space<smem>>
    %536 = vector.broadcast %535 : f32 to vector<1x256xf32>
    %537 = arith.mulf %536, %533 : vector<1x256xf32>
    %538 = arith.addf %532, %537 : vector<1x256xf32>
    %c90 = arith.constant 90 : index
    %539 = memref.load %arg7[%c90] : memref<98xf32, #tpu.memory_space<smem>>
    %540 = vector.broadcast %539 : f32 to vector<1x256xf32>
    %541 = arith.mulf %540, %534 : vector<1x256xf32>
    %542 = arith.addf %538, %541 : vector<1x256xf32>
    %543 = vector.extract_strided_slice %34 {offsets = [0, 102], sizes = [1, 256], strides = [1, 1]} : vector<1x358xf32> to vector<1x256xf32>
    %544 = vector.extract_strided_slice %35 {offsets = [0, 102], sizes = [1, 256], strides = [1, 1]} : vector<1x358xf32> to vector<1x256xf32>
    %c48 = arith.constant 48 : index
    %545 = memref.load %arg7[%c48] : memref<98xf32, #tpu.memory_space<smem>>
    %546 = vector.broadcast %545 : f32 to vector<1x256xf32>
    %547 = arith.mulf %546, %543 : vector<1x256xf32>
    %548 = arith.addf %542, %547 : vector<1x256xf32>
    %c97 = arith.constant 97 : index
    %549 = memref.load %arg7[%c97] : memref<98xf32, #tpu.memory_space<smem>>
    %550 = vector.broadcast %549 : f32 to vector<1x256xf32>
    %551 = arith.mulf %550, %544 : vector<1x256xf32>
    %552 = arith.addf %548, %551 : vector<1x256xf32>
    %553 = vector.extract_strided_slice %36 {offsets = [6, 0], sizes = [1, 256], strides = [1, 1]} : vector<7x256xf32> to vector<1x256xf32>
    %554 = arith.mulf %553, %552 : vector<1x256xf32>
    %555 = arith.addf %481, %554 : vector<1x256xf32>
    %c0_29 = arith.constant 0 : index
    %556 = memref.load %arg8[%c0_29] : memref<1xf32, #tpu.memory_space<smem>>
    %557 = vector.broadcast %556 : f32 to vector<1x256xf32>
    %558 = arith.addf %555, %557 : vector<1x256xf32>
    %559 = arith.negf %558 : vector<1x256xf32>
    %560 = math.exp %559 : vector<1x256xf32>
    %cst_30 = arith.constant 1.000000e+00 : f32
    %561 = vector.broadcast %cst_30 : f32 to vector<1x256xf32>
    %562 = arith.addf %561, %560 : vector<1x256xf32>
    %563 = arith.divf %561, %562 : vector<1x256xf32>
    %564 = vector.broadcast %563 : vector<1x256xf32> to vector<32x256xf32>
    %565 = arith.mulf %28, %564 : vector<32x256xf32>
    %c0_31 = arith.constant 0 : index
    %c0_32 = arith.constant 0 : index
    %c0_33 = arith.constant 0 : index
    %566 = vector.load %arg9[%c0_31, %c0_32, %c0_33] : memref<1x32x256xf32, #tpu.memory_space<vmem>>, vector<1x32x256xf32>
    %567 = vector.shape_cast %566 : vector<1x32x256xf32> to vector<32x256xf32>
    %568 = vector.shape_cast %565 : vector<32x256xf32> to vector<1x32x256xf32>
    tpu.vector_store %arg9[%c0_31, %c0_32, %c0_33], %568 {strides = array<i32>} : memref<1x32x256xf32, #tpu.memory_space<vmem>>, vector<1x32x256xf32>,
    return
  }
  func.func @transform_0(%arg0: i32) -> (i32, i32, i32) {
    %c0_i32 = arith.constant 0 : i32
    %c0_i32_0 = arith.constant 0 : i32
    %c0_i32_1 = arith.constant 0 : i32
    return %arg0, %c0_i32, %c0_i32_0 : i32, i32, i32
  }
  func.func @transform_1(%arg0: i32) -> (i32, i32) {
    %c0_i32 = arith.constant 0 : i32
    %c0_i32_0 = arith.constant 0 : i32
    %c0_i32_1 = arith.constant 0 : i32
    return %c0_i32, %c0_i32_0 : i32, i32
  }
  func.func @transform_2(%arg0: i32) -> (i32, i32) {
    %c0_i32 = arith.constant 0 : i32
    %c0_i32_0 = arith.constant 0 : i32
    %c0_i32_1 = arith.constant 0 : i32
    return %c0_i32, %c0_i32_0 : i32, i32
  }
  func.func @transform_3(%arg0: i32) -> (i32, i32) {
    %c0_i32 = arith.constant 0 : i32
    %c0_i32_0 = arith.constant 0 : i32
    %c0_i32_1 = arith.constant 0 : i32
    return %c0_i32, %c0_i32_0 : i32, i32
  }
  func.func @transform_4(%arg0: i32) -> (i32, i32) {
    %c0_i32 = arith.constant 0 : i32
    %c0_i32_0 = arith.constant 0 : i32
    %c0_i32_1 = arith.constant 0 : i32
    return %c0_i32, %c0_i32_0 : i32, i32
  }
  func.func @transform_5(%arg0: i32) -> (i32, i32) {
    %c0_i32 = arith.constant 0 : i32
    %c0_i32_0 = arith.constant 0 : i32
    %c0_i32_1 = arith.constant 0 : i32
    return %c0_i32, %c0_i32_0 : i32, i32
  }
  func.func @transform_6(%arg0: i32) -> i32 {
    %c0_i32 = arith.constant 0 : i32
    %c0_i32_0 = arith.constant 0 : i32
    return %c0_i32 : i32
  }
  func.func @transform_7(%arg0: i32) -> i32 {
    %c0_i32 = arith.constant 0 : i32
    %c0_i32_0 = arith.constant 0 : i32
    return %c0_i32 : i32
  }
  func.func @transform_8(%arg0: i32) -> (i32, i32, i32) {
    %c0_i32 = arith.constant 0 : i32
    %c0_i32_0 = arith.constant 0 : i32
    %c0_i32_1 = arith.constant 0 : i32
    return %arg0, %c0_i32, %c0_i32_0 : i32, i32, i32
  }
}

</mosaic_0001>

<llo_original>
// kernel: squeeze.2
$region0: #{squeeze.2}
  %s0 = inlined_call_operand.vmem [shape: f32[7,7], index: 0, kind: input, shape index: {}]
  %s1 = inlined_call_operand.vmem [shape: f32[49], index: 1, kind: output, shape index: {}]
  $region1: #{squeeze.2} parent=0
    #allocation0 [shape = 'u8[4096]{0}', space=vmem, size = 0x1000, scoped, tag = 'scoped mem for output reshape']
    %v2 = vld [vmem:[%s0] sm:$0x1]
    %vm3 = vcmask 56320
    %4 = vst.msk [vmem:[#allocation0] sm:$0x1] %vm3, %v2
    %s5 = scalar_lea.vmem %s0, 6
    %v6 = vld [vmem:[%s5] sm:$0x1]
    %7 = vrot.lane.b32.xlu0 %v6, 42
    %v8 = vpop.permute.xlu0 %7
    %vm9 = vcmask 400720
    %10 = vst.msk [vmem:[#allocation0] sm:$0x1] %vm9, %v8
    %s11 = scalar_lea.vmem %s0, 5
    %v12 = vld [vmem:[%s11] sm:$0x1]
    %13 = vrot.lane.b32.xlu0 %v12, 35
    %v14 = vpop.permute.xlu0 %13
    %vm15 = vcmask 343320
    %16 = vst.msk [vmem:[#allocation0] sm:$0x1] %vm15, %v14
    %s17 = scalar_lea.vmem %s0, 4
    %v18 = vld [vmem:[%s17] sm:$0x1]
    %19 = vrot.lane.b32.xlu0 %v18, 28
    %v20 = vpop.permute.xlu0 %19
    %vm21 = vcmask 285920
    %22 = vst.msk [vmem:[#allocation0] sm:$0x1] %vm21, %v20
    %s23 = scalar_lea.vmem %s0, 3
    %v24 = vld [vmem:[%s23] sm:$0x1]
    %25 = vrot.lane.b32.xlu0 %v24, 21
    %v26 = vpop.permute.xlu0 %25
    %vm27 = vcmask 228520
    %28 = vst.msk [vmem:[#allocation0] sm:$0x1] %vm27, %v26
    %s29 = scalar_lea.vmem %s0, 2
    %v30 = vld [vmem:[%s29] sm:$0x1]
    %31 = vrot.lane.b32.xlu0 %v30, 14
    %v32 = vpop.permute.xlu0 %31
    %vm33 = vcmask 171120
    %34 = vst.msk [vmem:[#allocation0] sm:$0x1] %vm33, %v32
    %s35 = scalar_lea.vmem %s0, 1
    %v36 = vld [vmem:[%s35] sm:$0x1]
    %37 = vrot.lane.b32.xlu0 %v36, 7
    %v38 = vpop.permute.xlu0 %37
    %vm39 = vcmask 113720
    %40 = vst.msk [vmem:[#allocation0] sm:$0x1] %vm39, %v38
    %s42 = ssub.s32 2, 1
    %v43 = vld [vmem:[#allocation0] sm:%s42]
    %s45 = ssub.s32 2, 1
    %46 = vst [vmem:[%s1] sm:%s45] %v43

// kernel: cbam_pallas.1
$region0: #{cbam_pallas.1}
  #allocation0 [shape = 'u32[]', space=smem, size = 0x4, offset = 0x4, fixed_abs, tag = 'smem constant byte address 0x4 - core index']
  #allocation1 [shape = 'u32[72,128]{1,0:T(1,128)}', space=vmem, size = 0x9000, scoped, tag = 'internal scratch']
  #allocation2 [shape = 'f32[1]{0:T(128)S(6)}', space=smem, size = 0x200, scoped, tag = 'scoped memory for cbam_pallas.1']
  %s0 = inlined_call_operand.vmem [shape: f32[2,32,256], index: 0, kind: input, shape index: {}]
  %s1 = inlined_call_operand.vmem [shape: f32[7,256], index: 1, kind: input, shape index: {}]
  %s2 = inlined_call_operand.vmem [shape: f32[32,2], index: 2, kind: input, shape index: {}]
  %s3 = inlined_call_operand.vmem [shape: f32[1,2], index: 3, kind: input, shape index: {}]
  %s4 = inlined_call_operand.vmem [shape: f32[32,2], index: 4, kind: input, shape index: {}]
  %s5 = inlined_call_operand.vmem [shape: f32[32,1], index: 5, kind: input, shape index: {}]
  %s6 = inlined_call_operand.vmem [shape: f32[98], index: 6, kind: input, shape index: {}]
  %s7 = inlined_call_operand.<no memory space> [shape: f32[1], index: 7, kind: input, shape index: {}]
  %s8 = inlined_call_operand.vmem [shape: f32[2,32,256], index: 8, kind: output, shape index: {}]
  %s9 = sld [smem:[#allocation0]]
  $region69: #{cbam_pallas.1} parent=0
    _
  %s11 = ssub.s32 1, %s9
  %s12 = scalar_select 0, %s11, %s9
  %13 = sst [smem:[#allocation2]] %s7
  $region1: #{cbam_pallas.1} parent=0
    #allocation3 [shape = 'u8[512]{0}', space=smem, size = 0x200, scoped, tag = 'input window, operand 6, single buffered']
    #allocation4 [shape = 's32[2]{0}', space=sflag, size = 0x8, scoped, tag = 'scoped memory for cbam_pallas.1']
    %14 = vsyncpa [#allocation4], 0
    loop: start=0, step=1, limit=4
    $region2: #{cbam_pallas.1} parent=1 // loop_pre_header
      _
    $region3: #{cbam_pallas.1} parent=1 // loop_header
      %s16 = sphi 0, %s20
      %p17 = scmp.ge.s32.totalorder %s16, 4
      %s26 = sphi 0, %s28
      %s29 = sphi 0, %s26
      %s30 = sphi 0, %s29
      %s46 = sphi 0, %s30
      %s50 = sphi 0, %s50
      %s52 = sphi 0, %s50
      %s53 = sphi 0, %s52
      %s67 = sphi 0, %s53
      %s71 = sphi 0, %s71
      %s73 = sphi 0, %s71
      %s74 = sphi 0, %s73
      %s88 = sphi 0, %s74
      %s92 = sphi 0, %s92
      %s94 = sphi 0, %s92
      %s95 = sphi 0, %s94
      %s109 = sphi 0, %s95
      %s113 = sphi 0, %s113
      %s115 = sphi 0, %s113
      %s116 = sphi 0, %s115
      %s130 = sphi 0, %s116
      %s134 = sphi 0, %s134
      %s136 = sphi 0, %s134
      %s137 = sphi 0, %s136
      %s151 = sphi 0, %s137
      %s155 = sphi 0, %s155
      %s157 = sphi 0, %s155
      %s158 = sphi 0, %s157
      %s172 = sphi 0, %s158
      %s176 = sphi 0, %s176
      %s178 = sphi 0, %s176
      %s179 = sphi 0, %s178
      %s193 = sphi 0, %s179
      %s199 = sphi 0, %s201
      %s202 = sphi 0, %s199
      %s203 = sphi 0, %s202
      %s219 = sphi 0, %s203
    $region4: #{cbam_pallas.1} parent=1 // loop_header_branch
      %19 = sbr.rel (%p17) target = $region8
    $region5: #{cbam_pallas.1} parent=1 // loop_body
      %s21 = ssub.s32 %s16, 1
      %s22 = ssub.s32 %s16, 2
      %s23 = sadd.s32 %s16, 1
      %s24 = ssub.s32 %s16, %s23
      %p25 = scmp.eq.s32.totalorder %s24, 0
      %s27 = sadd.s32 %s26, 1
      %s28 = scalar_select %p25, %s26, %s27
      %p31 = pneg %p25
      %p32 = scmp.eq.s32.totalorder %s16, 1
      %p33 = por %p31, %p32
      %p34 = scmp.ne.s32.totalorder %s26, %s29
      %p35 = scmp.eq.s32.totalorder %s16, 0
      %p36 = por %p34, %p35
      %p37 = scmp.ne.s32.totalorder %s26, %s29
      %p38 = scmp.eq.s32.totalorder %s21, 1
      %p39 = por %p37, %p38
      %p40 = scmp.ne.s32.totalorder %s29, %s30
      %p41 = scmp.eq.s32.totalorder %s21, 0
      %p42 = por %p40, %p41
      %p43 = scmp.ne.s32.totalorder %s29, %s30
      %p44 = scmp.eq.s32.totalorder %s22, 1
      %p45 = por %p43, %p44
      %p47 = scmp.ne.s32.totalorder %s30, %s46
      %p48 = scmp.eq.s32.totalorder %s22, 0
      %p49 = por %p47, %p48
      %s51 = sadd.s32 %s50, 1
      %p54 = scmp.eq.s32.totalorder %s16, 1
      %p55 = scmp.ne.s32.totalorder %s50, %s52
      %p56 = scmp.eq.s32.totalorder %s16, 0
      %p57 = por %p55, %p56
      %p58 = scmp.ne.s32.totalorder %s50, %s52
      %p59 = scmp.eq.s32.totalorder %s21, 1
      %p60 = por %p58, %p59
      %p61 = scmp.ne.s32.totalorder %s52, %s53
      %p62 = scmp.eq.s32.totalorder %s21, 0
      %p63 = por %p61, %p62
      %p64 = scmp.ne.s32.totalorder %s52, %s53
      %p65 = scmp.eq.s32.totalorder %s22, 1
      %p66 = por %p64, %p65
      %p68 = scmp.ne.s32.totalorder %s53, %s67
      %p69 = scmp.eq.s32.totalorder %s22, 0
      %p70 = por %p68, %p69
      %s72 = sadd.s32 %s71, 1
      %p75 = scmp.eq.s32.totalorder %s16, 1
      %p76 = scmp.ne.s32.totalorder %s71, %s73
      %p77 = scmp.eq.s32.totalorder %s16, 0
      %p78 = por %p76, %p77
      %p79 = scmp.ne.s32.totalorder %s71, %s73
      %p80 = scmp.eq.s32.totalorder %s21, 1
      %p81 = por %p79, %p80
      %p82 = scmp.ne.s32.totalorder %s73, %s74
      %p83 = scmp.eq.s32.totalorder %s21, 0
      %p84 = por %p82, %p83
      %p85 = scmp.ne.s32.totalorder %s73, %s74
      %p86 = scmp.eq.s32.totalorder %s22, 1
      %p87 = por %p85, %p86
      %p89 = scmp.ne.s32.totalorder %s74, %s88
      %p90 = scmp.eq.s32.totalorder %s22, 0
      %p91 = por %p89, %p90
      %s93 = sadd.s32 %s92, 1
      %p96 = scmp.eq.s32.totalorder %s16, 1
      %p97 = scmp.ne.s32.totalorder %s92, %s94
      %p98 = scmp.eq.s32.totalorder %s16, 0
      %p99 = por %p97, %p98
      %p100 = scmp.ne.s32.totalorder %s92, %s94
      %p101 = scmp.eq.s32.totalorder %s21, 1
      %p102 = por %p100, %p101
      %p103 = scmp.ne.s32.totalorder %s94, %s95
      %p104 = scmp.eq.s32.totalorder %s21, 0
      %p105 = por %p103, %p104
      %p106 = scmp.ne.s32.totalorder %s94, %s95
      %p107 = scmp.eq.s32.totalorder %s22, 1
      %p108 = por %p106, %p107
      %p110 = scmp.ne.s32.totalorder %s95, %s109
      %p111 = scmp.eq.s32.totalorder %s22, 0
      %p112 = por %p110, %p111
      %s114 = sadd.s32 %s113, 1
      %p117 = scmp.eq.s32.totalorder %s16, 1
      %p118 = scmp.ne.s32.totalorder %s113, %s115
      %p119 = scmp.eq.s32.totalorder %s16, 0
      %p120 = por %p118, %p119
      %p121 = scmp.ne.s32.totalorder %s113, %s115
      %p122 = scmp.eq.s32.totalorder %s21, 1
      %p123 = por %p121, %p122
      %p124 = scmp.ne.s32.totalorder %s115, %s116
      %p125 = scmp.eq.s32.totalorder %s21, 0
      %p126 = por %p124, %p125
      %p127 = scmp.ne.s32.totalorder %s115, %s116
      %p128 = scmp.eq.s32.totalorder %s22, 1
      %p129 = por %p127, %p128
      %p131 = scmp.ne.s32.totalorder %s116, %s130
      %p132 = scmp.eq.s32.totalorder %s22, 0
      %p133 = por %p131, %p132
      %s135 = sadd.s32 %s134, 1
      %p138 = scmp.eq.s32.totalorder %s16, 1
      %p139 = scmp.ne.s32.totalorder %s134, %s136
      %p140 = scmp.eq.s32.totalorder %s16, 0
      %p141 = por %p139, %p140
      %p142 = scmp.ne.s32.totalorder %s134, %s136
      %p143 = scmp.eq.s32.totalorder %s21, 1
      %p144 = por %p142, %p143
      %p145 = scmp.ne.s32.totalorder %s136, %s137
      %p146 = scmp.eq.s32.totalorder %s21, 0
      %p147 = por %p145, %p146
      %p148 = scmp.ne.s32.totalorder %s136, %s137
      %p149 = scmp.eq.s32.totalorder %s22, 1
      %p150 = por %p148, %p149
      %p152 = scmp.ne.s32.totalorder %s137, %s151
      %p153 = scmp.eq.s32.totalorder %s22, 0
      %p154 = por %p152, %p153
      %s156 = sadd.s32 %s155, 1
      %p159 = scmp.eq.s32.totalorder %s16, 1
      %p160 = scmp.ne.s32.totalorder %s155, %s157
      %p161 = scmp.eq.s32.totalorder %s16, 0
      %p162 = por %p160, %p161
      %p163 = scmp.ne.s32.totalorder %s155, %s157
      %p164 = scmp.eq.s32.totalorder %s21, 1
      %p165 = por %p163, %p164
      %p166 = scmp.ne.s32.totalorder %s157, %s158
      %p167 = scmp.eq.s32.totalorder %s21, 0
      %p168 = por %p166, %p167
      %p169 = scmp.ne.s32.totalorder %s157, %s158
      %p170 = scmp.eq.s32.totalorder %s22, 1
      %p171 = por %p169, %p170
      %p173 = scmp.ne.s32.totalorder %s158, %s172
      %p174 = scmp.eq.s32.totalorder %s22, 0
      %p175 = por %p173, %p174
      %s177 = sadd.s32 %s176, 1
      %p180 = scmp.eq.s32.totalorder %s16, 1
      %p181 = scmp.ne.s32.totalorder %s176, %s178
      %p182 = scmp.eq.s32.totalorder %s16, 0
      %p183 = por %p181, %p182
      %p184 = scmp.ne.s32.totalorder %s176, %s178
      %p185 = scmp.eq.s32.totalorder %s21, 1
      %p186 = por %p184, %p185
      %p187 = scmp.ne.s32.totalorder %s178, %s179
      %p188 = scmp.eq.s32.totalorder %s21, 0
      %p189 = por %p187, %p188
      %p190 = scmp.ne.s32.totalorder %s178, %s179
      %p191 = scmp.eq.s32.totalorder %s22, 1
      %p192 = por %p190, %p191
      %p194 = scmp.ne.s32.totalorder %s179, %s193
      %p195 = scmp.eq.s32.totalorder %s22, 0
      %p196 = por %p194, %p195
      %s197 = ssub.s32 %s16, %s23
      %p198 = scmp.eq.s32.totalorder %s197, 0
      %s200 = sadd.s32 %s199, 1
      %s201 = scalar_select %p198, %s199, %s200
      %p204 = pneg %p198
      %p205 = scmp.eq.s32.totalorder %s16, 1
      %p206 = por %p204, %p205
      %p207 = scmp.ne.s32.totalorder %s199, %s202
      %p208 = scmp.eq.s32.totalorder %s16, 0
      %p209 = por %p207, %p208
      %p210 = scmp.ne.s32.totalorder %s199, %s202
      %p211 = scmp.eq.s32.totalorder %s21, 1
      %p212 = por %p210, %p211
      %p213 = scmp.ne.s32.totalorder %s202, %s203
      %p214 = scmp.eq.s32.totalorder %s21, 0
      %p215 = por %p213, %p214
      %p216 = scmp.ne.s32.totalorder %s202, %s203
      %p217 = scmp.eq.s32.totalorder %s22, 1
      %p218 = por %p216, %p217
      %p220 = scmp.ne.s32.totalorder %s203, %s219
      %p221 = scmp.eq.s32.totalorder %s22, 0
      %p222 = por %p220, %p221
      %p223 = scmp.le.s32.totalorder 1, %s16
      %p224 = scmp.lt.s32.totalorder %s16, 3
      %p225 = pnand %p223, %p224
      %p226 = pneg %p225
      // Predicated region
      $region9: #{cbam_pallas.1} parent=5 // pred_check
        _
      $region10: #{cbam_pallas.1} parent=5 // pred_check_branch
        %228 = sbr.rel (%p225) target = $region12
      $region11: #{cbam_pallas.1} parent=5 // pred_region
        %s229 = ssub.s32 %s16, 1
        // Predicated region
        $region13: #{cbam_pallas.1} parent=11 // pred_check
          %p230 = pneg %p63
        $region14: #{cbam_pallas.1} parent=11 // pred_check_branch
          %232 = sbr.rel (%p230) target = $region16
        $region15: #{cbam_pallas.1} parent=11 // pred_region
          _
        $region16: #{cbam_pallas.1} parent=11 // pred_fallthru
          _
        // Predicated region
        $region17: #{cbam_pallas.1} parent=11 // pred_check
          %p233 = pneg %p84
        $region18: #{cbam_pallas.1} parent=11 // pred_check_branch
          %235 = sbr.rel (%p233) target = $region20
        $region19: #{cbam_pallas.1} parent=11 // pred_region
          _
        $region20: #{cbam_pallas.1} parent=11 // pred_fallthru
          _
        // Predicated region
        $region21: #{cbam_pallas.1} parent=11 // pred_check
          %p236 = pneg %p105
        $region22: #{cbam_pallas.1} parent=11 // pred_check_branch
          %238 = sbr.rel (%p236) target = $region24
        $region23: #{cbam_pallas.1} parent=11 // pred_region
          _
        $region24: #{cbam_pallas.1} parent=11 // pred_fallthru
          _
        // Predicated region
        $region25: #{cbam_pallas.1} parent=11 // pred_check
          %p239 = pneg %p126
        $region26: #{cbam_pallas.1} parent=11 // pred_check_branch
          %241 = sbr.rel (%p239) target = $region28
        $region27: #{cbam_pallas.1} parent=11 // pred_region
          _
        $region28: #{cbam_pallas.1} parent=11 // pred_fallthru
          _
        // Predicated region
        $region29: #{cbam_pallas.1} parent=11 // pred_check
          %p242 = pneg %p147
        $region30: #{cbam_pallas.1} parent=11 // pred_check_branch
          %244 = sbr.rel (%p242) target = $region32
        $region31: #{cbam_pallas.1} parent=11 // pred_region
          _
        $region32: #{cbam_pallas.1} parent=11 // pred_fallthru
          _
        // Predicated region
        $region33: #{cbam_pallas.1} parent=11 // pred_check
          %p245 = pneg %p168
        $region34: #{cbam_pallas.1} parent=11 // pred_check_branch
          %247 = sbr.rel (%p245) target = $region36
        $region35: #{cbam_pallas.1} parent=11 // pred_region
          %249 = vsyncadd [#allocation4], 0
          %s251 = sshll.u32 %s6, 4
          %s252 = int_to_ptr.vmem [resolvable:$true] %s251
          %254 = dma.vmem_to_smem %s252, 16, [#allocation3], [#allocation4]
        $region36: #{cbam_pallas.1} parent=11 // pred_fallthru
          _
        // Predicated region
        $region37: #{cbam_pallas.1} parent=11 // pred_check
          %p255 = pneg %p189
        $region38: #{cbam_pallas.1} parent=11 // pred_check_branch
          %257 = sbr.rel (%p255) target = $region40
        $region39: #{cbam_pallas.1} parent=11 // pred_region
          _
        $region40: #{cbam_pallas.1} parent=11 // pred_fallthru
          _
      $region12: #{cbam_pallas.1} parent=5 // pred_fallthru
        _
      %p258 = scmp.lt.s32.totalorder %s16, 2
      // Predicated region
      $region41: #{cbam_pallas.1} parent=5 // pred_check
        %p259 = pneg %p258
      $region42: #{cbam_pallas.1} parent=5 // pred_check_branch
        %261 = sbr.rel (%p259) target = $region44
      $region43: #{cbam_pallas.1} parent=5 // pred_region
        // Predicated region
        $region45: #{cbam_pallas.1} parent=43 // pred_check
          %p262 = pneg %p36
        $region46: #{cbam_pallas.1} parent=43 // pred_check_branch
          %264 = sbr.rel (%p262) target = $region48
        $region47: #{cbam_pallas.1} parent=43 // pred_region
          %p265 = scmp.lt.s32.totalorder %s16, 1
          %s266 = scalar_select %p265, %s16, 1
          %s267 = smul.addr %s266, 8
          %s268 = smul.addr %s267, 8
          %s269 = scalar_lea.vmem %s0, %s268
        $region48: #{cbam_pallas.1} parent=43 // pred_fallthru
          _
      $region44: #{cbam_pallas.1} parent=5 // pred_fallthru
        _
      %p270 = scmp.le.s32.totalorder 1, %s16
      %p271 = scmp.lt.s32.totalorder %s16, 3
      %p272 = pnand %p270, %p271
      %p273 = pneg %p272
      // Predicated region
      $region49: #{cbam_pallas.1} parent=5 // pred_check
        _
      $region50: #{cbam_pallas.1} parent=5 // pred_check_branch
        %275 = sbr.rel (%p272) target = $region52
      $region51: #{cbam_pallas.1} parent=5 // pred_region
        %s276 = ssub.s32 %s16, 1
        // Predicated region
        $region53: #{cbam_pallas.1} parent=51 // pred_check
          %p277 = pneg %p168
        $region54: #{cbam_pallas.1} parent=51 // pred_check_branch
          %279 = sbr.rel (%p277) target = $region56
        $region55: #{cbam_pallas.1} parent=51 // pred_region
          %281 = dma.done [#allocation4], 16
        $region56: #{cbam_pallas.1} parent=51 // pred_fallthru
          _
        %282 = sfence
        %p283 = scmp.lt.s32.totalorder %s21, 1
        %s284 = scalar_select %p283, %s21, 1
        %s285 = smul.addr %s284, 8
        %s286 = smul.addr %s285, 8
        %s287 = scalar_lea.vmem %s0, %s286
        %p288 = pneg %p42
        %p289 = pneg %p39
        %p290 = pneg %p63
        %p291 = pneg %p60
        %p292 = pneg %p84
        %p293 = pneg %p81
        %p294 = pneg %p105
        %p295 = pneg %p102
        %p296 = pneg %p126
        %p297 = pneg %p123
        %p298 = pneg %p147
        %p299 = pneg %p144
        %p300 = pneg %p168
        %p301 = pneg %p165
        %p302 = pneg %p189
        %p303 = pneg %p186
        %p304 = pneg %p215
        %p305 = pneg %p212
        %p306 = scmp.lt.s32.totalorder %s21, 1
        %s307 = scalar_select %p306, %s21, 1
        %s308 = smul.addr %s307, 8
        %s309 = smul.addr %s308, 8
        %s310 = scalar_lea.vmem %s8, %s309
        %p311 = scmp.lt.s32.totalorder %s21, 1
        %s312 = scalar_select %p311, %s21, 1
        %s313 = smul.addr %s312, 8
        %s314 = smul.addr %s313, 8
        %s315 = scalar_lea.vmem %s0, %s314
        %p316 = scmp.lt.s32.totalorder %s21, 1
        %s317 = scalar_select %p316, %s21, 1
        %s318 = smul.addr %s317, 8
        %s319 = smul.addr %s318, 8
        %s320 = scalar_lea.vmem %s8, %s319
        %v321 = vld [vmem:[%s315] sm:$0xff]
        %v322 = vld [vmem:[%s315 + $0x8] sm:$0xff]
        %v323 = vld [vmem:[%s315 + $0x10] sm:$0xff]
        %v324 = vld [vmem:[%s315 + $0x18] sm:$0xff]
        %v325 = vld [vmem:[%s315 + $0x20] sm:$0xff]
        %v326 = vld [vmem:[%s315 + $0x28] sm:$0xff]
        %v327 = vld [vmem:[%s315 + $0x30] sm:$0xff]
        %v328 = vld [vmem:[%s315 + $0x38] sm:$0xff]
        %v329 = vadd.f32 %v321, %v322
        %330 = vadd.xlane.f32.xlu0 %v329
        %v331 = vpop.xlane.xlu0 %330
        %v332 = vadd.f32 %v323, %v324
        %333 = vadd.xlane.f32.xlu0 %v332
        %v334 = vpop.xlane.xlu0 %333
        %v335 = vadd.f32 %v325, %v326
        %336 = vadd.xlane.f32.xlu0 %v335
        %v337 = vpop.xlane.xlu0 %336
        %v338 = vadd.f32 %v327, %v328
        %339 = vadd.xlane.f32.xlu0 %v338
        %v340 = vpop.xlane.xlu0 %339
        %v341 = vmul.f32 %v331, 0.00390625
        %v342 = vmul.f32 %v334, 0.00390625
        %v343 = vmul.f32 %v337, 0.00390625
        %v344 = vmul.f32 %v340, 0.00390625
        %v345 = vld [vmem:[%s2] sm:$0xff]
        %v346 = vld [vmem:[%s2 + $0x8] sm:$0xff]
        %v347 = vld [vmem:[%s2 + $0x10] sm:$0xff]
        %v348 = vld [vmem:[%s2 + $0x18] sm:$0xff]
        %v349 = vmul.f32 %v341, %v345
        %v350 = vmul.f32 %v342, %v346
        %v351 = vmul.f32 %v343, %v347
        %v352 = vmul.f32 %v344, %v348
        %vm353 = vcmask 15360
        %v354 = vsel %vm353, %v349, 0.0
        %v355 = vsel %vm353, %v350, 0.0
        %v356 = vadd.f32 %v354, %v355
        %v357 = vsel %vm353, %v351, 0.0
        %v358 = vadd.f32 %v356, %v357
        %v359 = vsel %vm353, %v352, 0.0
        %v360 = vadd.f32 %v358, %v359
        %v361 = vrot.slane %v360, 4
        %v362 = vadd.f32 %v360, %v361
        %v363 = vrot.slane %v362, 2
        %v364 = vadd.f32 %v362, %v363
        %v365 = vrot.slane %v364, 1
        %v366 = vadd.f32 %v364, %v365
        %v367 = vld [vmem:[%s3] sm:$0x1]
        %v368 = vadd.f32 %v366, %v367
        %v369 = vmax.f32 %v368, 0.0
        %v370 = vld [vmem:[%s4] sm:$0xff]
        %v371 = vld [vmem:[%s4 + $0x8] sm:$0xff]
        %v372 = vld [vmem:[%s4 + $0x10] sm:$0xff]
        %v373 = vld [vmem:[%s4 + $0x18] sm:$0xff]
        %v374 = vperm.slane %v369, 0
        %v375 = vmul.f32 %v370, %v374
        %v376 = vmul.f32 %v371, %v374
        %v377 = vmul.f32 %v372, %v374
        %v378 = vmul.f32 %v373, %v374
        %v379 = vsel %vm353, %v375, 0.0
        %380 = vadd.xlane.f32.xlu0 %v379
        %v381 = vpop.xlane.xlu0 %380
        %v382 = vsel %vm353, %v376, 0.0
        %383 = vadd.xlane.f32.xlu0 %v382
        %v384 = vpop.xlane.xlu0 %383
        %v385 = vsel %vm353, %v377, 0.0
        %386 = vadd.xlane.f32.xlu0 %v385
        %v387 = vpop.xlane.xlu0 %386
        %v388 = vsel %vm353, %v378, 0.0
        %389 = vadd.xlane.f32.xlu0 %v388
        %v390 = vpop.xlane.xlu0 %389
        %v391 = vld [vmem:[%s5] sm:$0xff]
        %v392 = vld [vmem:[%s5 + $0x8] sm:$0xff]
        %v393 = vld [vmem:[%s5 + $0x10] sm:$0xff]
        %v394 = vld [vmem:[%s5 + $0x18] sm:$0xff]
        %v395 = vadd.f32 %v381, %v391
        %v396 = vadd.f32 %v384, %v392
        %v397 = vadd.f32 %v387, %v393
        %v398 = vadd.f32 %v390, %v394
        %v399 = vxor.u32 %v395, 2147483648
        %v400 = vxor.u32 %v396, 2147483648
        %v401 = vxor.u32 %v397, 2147483648
        %v402 = vxor.u32 %v398, 2147483648
        %v403 = vmul.f32 %v399, 1.442695
        %v404 = vpow.pop %v403
        %v405 = vmul.f32 %v400, 1.442695
        %v406 = vpow.pop %v405
        %v407 = vmul.f32 %v401, 1.442695
        %v408 = vpow.pop %v407
        %v409 = vmul.f32 %v402, 1.442695
        %v410 = vpow.pop %v409
        %v411 = vadd.f32 %v404, 1.0
        %v412 = vadd.f32 %v406, 1.0
        %v413 = vadd.f32 %v408, 1.0
        %v414 = vadd.f32 %v410, 1.0
        %v415 = vrcp.pop %v411
        %v416 = vmul.f32 %v411, %v415
        %v417 = vsub.f32 1.0, %v416
        %v418 = vmul.f32 %v415, %v417
        %v419 = vadd.f32 %v415, %v418
        %vm420 = vweird.f32 %v411
        %vm421 = vweird.f32 %v415
        %vm422 = vmor %vm420, %vm421
        %v423 = vsel %vm422, %v415, %v419
        %v424 = vand.u32 2147483647, %v411
        %vm425 = vcmp.eq.f32.partialorder %v424, 8.507059e+37
        %v426 = vand.u32 %v411, 2147483648
        %v427 = vor.u32 1.1754944e-38, %v426
        %v428 = vsel %vm425, %v427, %v423
        %v429 = vmul.f32 1.0, %v428
        %v430 = vrcp.pop %v412
        %v431 = vmul.f32 %v412, %v430
        %v432 = vsub.f32 1.0, %v431
        %v433 = vmul.f32 %v430, %v432
        %v434 = vadd.f32 %v430, %v433
        %vm435 = vweird.f32 %v412
        %vm436 = vweird.f32 %v430
        %vm437 = vmor %vm435, %vm436
        %v438 = vsel %vm437, %v430, %v434
        %v439 = vand.u32 2147483647, %v412
        %vm440 = vcmp.eq.f32.partialorder %v439, 8.507059e+37
        %v441 = vand.u32 %v412, 2147483648
        %v442 = vor.u32 1.1754944e-38, %v441
        %v443 = vsel %vm440, %v442, %v438
        %v444 = vmul.f32 1.0, %v443
        %v445 = vrcp.pop %v413
        %v446 = vmul.f32 %v413, %v445
        %v447 = vsub.f32 1.0, %v446
        %v448 = vmul.f32 %v445, %v447
        %v449 = vadd.f32 %v445, %v448
        %vm450 = vweird.f32 %v413
        %vm451 = vweird.f32 %v445
        %vm452 = vmor %vm450, %vm451
        %v453 = vsel %vm452, %v445, %v449
        %v454 = vand.u32 2147483647, %v413
        %vm455 = vcmp.eq.f32.partialorder %v454, 8.507059e+37
        %v456 = vand.u32 %v413, 2147483648
        %v457 = vor.u32 1.1754944e-38, %v456
        %v458 = vsel %vm455, %v457, %v453
        %v459 = vmul.f32 1.0, %v458
        %v460 = vrcp.pop %v414
        %v461 = vmul.f32 %v414, %v460
        %v462 = vsub.f32 1.0, %v461
        %v463 = vmul.f32 %v460, %v462
        %v464 = vadd.f32 %v460, %v463
        %vm465 = vweird.f32 %v414
        %vm466 = vweird.f32 %v460
        %vm467 = vmor %vm465, %vm466
        %v468 = vsel %vm467, %v460, %v464
        %v469 = vand.u32 2147483647, %v414
        %vm470 = vcmp.eq.f32.partialorder %v469, 8.507059e+37
        %v471 = vand.u32 %v414, 2147483648
        %v472 = vor.u32 1.1754944e-38, %v471
        %v473 = vsel %vm470, %v472, %v468
        %v474 = vmul.f32 1.0, %v473
        %476 = vset.pattern.permute.xlu0 0
        %477 = vperm.xlu0 %476, %v429
        %v478 = vpop.permute.xlu0 %477
        %481 = vset.pattern.permute.xlu0 0
        %482 = vperm.xlu0 %481, %v444
        %v483 = vpop.permute.xlu0 %482
        %486 = vset.pattern.permute.xlu0 0
        %487 = vperm.xlu0 %486, %v459
        %v488 = vpop.permute.xlu0 %487
        %491 = vset.pattern.permute.xlu0 0
        %492 = vperm.xlu0 %491, %v474
        %v493 = vpop.permute.xlu0 %492
        %v495 = vmul.f32 %v321, %v478
        %v496 = vmul.f32 %v322, %v478
        %v497 = vmul.f32 %v323, %v483
        %v498 = vmul.f32 %v324, %v483
        %v499 = vmul.f32 %v325, %v488
        %v500 = vmul.f32 %v326, %v488
        %v501 = vmul.f32 %v327, %v493
        %v502 = vmul.f32 %v328, %v493
        %v503 = vmax.f32 %v495, %v499
        %v504 = vmax.f32 %v497, %v501
        %v505 = vmax.f32 %v503, %v504
        %v506 = vrot.slane %v505, 4
        %v507 = vmax.f32 %v505, %v506
        %v508 = vrot.slane %v507, 2
        %v509 = vmax.f32 %v507, %v508
        %v510 = vrot.slane %v509, 1
        %v511 = vmax.f32 %v509, %v510
        %v512 = vmax.f32 %v496, %v500
        %v513 = vmax.f32 %v498, %v502
        %v514 = vmax.f32 %v512, %v513
        %v515 = vrot.slane %v514, 4
        %v516 = vmax.f32 %v514, %v515
        %v517 = vrot.slane %v516, 2
        %v518 = vmax.f32 %v516, %v517
        %v519 = vrot.slane %v518, 1
        %v520 = vmax.f32 %v518, %v519
        %v521 = vadd.f32 %v495, %v497
        %v522 = vadd.f32 %v521, %v499
        %v523 = vadd.f32 %v522, %v501
        %v524 = vrot.slane %v523, 4
        %v525 = vadd.f32 %v523, %v524
        %v526 = vrot.slane %v525, 2
        %v527 = vadd.f32 %v525, %v526
        %v528 = vrot.slane %v527, 1
        %v529 = vadd.f32 %v527, %v528
        %v530 = vadd.f32 %v496, %v498
        %v531 = vadd.f32 %v530, %v500
        %v532 = vadd.f32 %v531, %v502
        %v533 = vrot.slane %v532, 4
        %v534 = vadd.f32 %v532, %v533
        %v535 = vrot.slane %v534, 2
        %v536 = vadd.f32 %v534, %v535
        %v537 = vrot.slane %v536, 1
        %v538 = vadd.f32 %v536, %v537
        %541 = vrot.lane.b32.xlu0 %v511, 51
        %v542 = vpop.permute.xlu0 %541
        %543 = vrot.lane.b32.xlu0 %v520, 51
        %v544 = vpop.permute.xlu0 %543
        %vm545 = vcmask 416768
        %v546 = vsel %vm545, %v542, %v544
        %v550 = vsel %vm545, 0.0, %v542
        %v551 = vsel %vm545, %v544, 0.0
        %554 = vrot.lane.b32.xlu0 %v529, 51
        %v555 = vpop.permute.xlu0 %554
        %556 = vrot.lane.b32.xlu0 %v538, 51
        %v557 = vpop.permute.xlu0 %556
        %v558 = vsel %vm545, %v555, %v557
        %v562 = vsel %vm545, 0.0, %v555
        %v563 = vsel %vm545, %v557, 0.0
        %v564 = vld [vmem:[%s1] sm:$0x7f]
        %v565 = vld [vmem:[%s1 + $0x8] sm:$0x7f]
        %s566 = sld [smem:[#allocation3]]
        %v567 = vstv %s566
        %v568 = vmul.f32 %v567, %v550
        %v569 = vmul.f32 %v567, %v546
        %v570 = vadd.f32 %v568, 0.0
        %v571 = vadd.f32 %v569, 0.0
        %s572 = sld [smem:[#allocation3 + $0x31]]
        %v573 = vstv %s572
        %v574 = vmul.f32 %v573, %v562
        %v575 = vmul.f32 %v573, %v558
        %v576 = vadd.f32 %v570, %v574
        %v577 = vadd.f32 %v571, %v575
        %s578 = sld [smem:[#allocation3 + $0x7]]
        %v579 = vstv %s578
        %v580 = vmul.f32 %v579, %v550
        %v581 = vmul.f32 %v579, %v546
        %v582 = vmul.f32 %v579, %v551
        %586 = vrot.lane.b32.xlu0 %v580, 112
        %v587 = vpop.permute.xlu0 %586
        %588 = vrot.lane.b32.xlu0 %v581, 112
        %v589 = vpop.permute.xlu0 %588
        %590 = vrot.lane.b32.xlu0 %v582, 112
        %v591 = vpop.permute.xlu0 %590
        %vm592 = vcmask 916480
        %v593 = vsel %vm592, %v587, %v589
        %v594 = vsel %vm592, %v589, %v591
        %v597 = vadd.f32 %v576, %v593
        %v598 = vadd.f32 %v577, %v594
        %s599 = sld [smem:[#allocation3 + $0x38]]
        %v600 = vstv %s599
        %v601 = vmul.f32 %v600, %v562
        %v602 = vmul.f32 %v600, %v558
        %v603 = vmul.f32 %v600, %v563
        %607 = vrot.lane.b32.xlu0 %v601, 112
        %v608 = vpop.permute.xlu0 %607
        %609 = vrot.lane.b32.xlu0 %v602, 112
        %v610 = vpop.permute.xlu0 %609
        %611 = vrot.lane.b32.xlu0 %v603, 112
        %v612 = vpop.permute.xlu0 %611
        %v613 = vsel %vm592, %v608, %v610
        %v614 = vsel %vm592, %v610, %v612
        %v617 = vadd.f32 %v597, %v613
        %v618 = vadd.f32 %v598, %v614
        %s619 = sld [smem:[#allocation3 + $0xe]]
        %v620 = vstv %s619
        %v621 = vmul.f32 %v620, %v550
        %v622 = vmul.f32 %v620, %v546
        %v623 = vmul.f32 %v620, %v551
        %627 = vrot.lane.b32.xlu0 %v621, 96
        %v628 = vpop.permute.xlu0 %627
        %629 = vrot.lane.b32.xlu0 %v622, 96
        %v630 = vpop.permute.xlu0 %629
        %631 = vrot.lane.b32.xlu0 %v623, 96
        %v632 = vpop.permute.xlu0 %631
        %vm633 = vcmask 785408
        %v634 = vsel %vm633, %v628, %v630
        %v635 = vsel %vm633, %v630, %v632
        %v638 = vadd.f32 %v617, %v634
        %v639 = vadd.f32 %v618, %v635
        %s640 = sld [smem:[#allocation3 + $0x3f]]
        %v641 = vstv %s640
        %v642 = vmul.f32 %v641, %v562
        %v643 = vmul.f32 %v641, %v558
        %v644 = vmul.f32 %v641, %v563
        %648 = vrot.lane.b32.xlu0 %v642, 96
        %v649 = vpop.permute.xlu0 %648
        %650 = vrot.lane.b32.xlu0 %v643, 96
        %v651 = vpop.permute.xlu0 %650
        %652 = vrot.lane.b32.xlu0 %v644, 96
        %v653 = vpop.permute.xlu0 %652
        %v654 = vsel %vm633, %v649, %v651
        %v655 = vsel %vm633, %v651, %v653
        %v658 = vadd.f32 %v638, %v654
        %v659 = vadd.f32 %v639, %v655
        %s660 = sld [smem:[#allocation3 + $0x15]]
        %v661 = vstv %s660
        %v662 = vmul.f32 %v661, %v550
        %v663 = vmul.f32 %v661, %v546
        %v664 = vmul.f32 %v661, %v551
        %668 = vrot.lane.b32.xlu0 %v662, 80
        %v669 = vpop.permute.xlu0 %668
        %670 = vrot.lane.b32.xlu0 %v663, 80
        %v671 = vpop.permute.xlu0 %670
        %672 = vrot.lane.b32.xlu0 %v664, 80
        %v673 = vpop.permute.xlu0 %672
        %vm674 = vcmask 654336
        %v675 = vsel %vm674, %v669, %v671
        %v676 = vsel %vm674, %v671, %v673
        %v679 = vadd.f32 %v658, %v675
        %v680 = vadd.f32 %v659, %v676
        %s681 = sld [smem:[#allocation3 + $0x46]]
        %v682 = vstv %s681
        %v683 = vmul.f32 %v682, %v562
        %v684 = vmul.f32 %v682, %v558
        %v685 = vmul.f32 %v682, %v563
        %689 = vrot.lane.b32.xlu0 %v683, 80
        %v690 = vpop.permute.xlu0 %689
        %691 = vrot.lane.b32.xlu0 %v684, 80
        %v692 = vpop.permute.xlu0 %691
        %693 = vrot.lane.b32.xlu0 %v685, 80
        %v694 = vpop.permute.xlu0 %693
        %v695 = vsel %vm674, %v690, %v692
        %v696 = vsel %vm674, %v692, %v694
        %v699 = vadd.f32 %v679, %v695
        %v700 = vadd.f32 %v680, %v696
        %s701 = sld [smem:[#allocation3 + $0x1c]]
        %v702 = vstv %s701
        %v703 = vmul.f32 %v702, %v550
        %v704 = vmul.f32 %v702, %v546
        %v705 = vmul.f32 %v702, %v551
        %709 = vrot.lane.b32.xlu0 %v703, 64
        %v710 = vpop.permute.xlu0 %709
        %711 = vrot.lane.b32.xlu0 %v704, 64
        %v712 = vpop.permute.xlu0 %711
        %713 = vrot.lane.b32.xlu0 %v705, 64
        %v714 = vpop.permute.xlu0 %713
        %vm715 = vcmask 523264
        %v716 = vsel %vm715, %v710, %v712
        %v717 = vsel %vm715, %v712, %v714
        %v720 = vadd.f32 %v699, %v716
        %v721 = vadd.f32 %v700, %v717
        %s722 = sld [smem:[#allocation3 + $0x4d]]
        %v723 = vstv %s722
        %v724 = vmul.f32 %v723, %v562
        %v725 = vmul.f32 %v723, %v558
        %v726 = vmul.f32 %v723, %v563
        %730 = vrot.lane.b32.xlu0 %v724, 64
        %v731 = vpop.permute.xlu0 %730
        %732 = vrot.lane.b32.xlu0 %v725, 64
        %v733 = vpop.permute.xlu0 %732
        %734 = vrot.lane.b32.xlu0 %v726, 64
        %v735 = vpop.permute.xlu0 %734
        %v736 = vsel %vm715, %v731, %v733
        %v737 = vsel %vm715, %v733, %v735
        %v740 = vadd.f32 %v720, %v736
        %v741 = vadd.f32 %v721, %v737
        %s742 = sld [smem:[#allocation3 + $0x23]]
        %v743 = vstv %s742
        %v744 = vmul.f32 %v743, %v550
        %v745 = vmul.f32 %v743, %v546
        %v746 = vmul.f32 %v743, %v551
        %750 = vrot.lane.b32.xlu0 %v744, 48
        %v751 = vpop.permute.xlu0 %750
        %752 = vrot.lane.b32.xlu0 %v745, 48
        %v753 = vpop.permute.xlu0 %752
        %754 = vrot.lane.b32.xlu0 %v746, 48
        %v755 = vpop.permute.xlu0 %754
        %vm756 = vcmask 392192
        %v757 = vsel %vm756, %v751, %v753
        %v758 = vsel %vm756, %v753, %v755
        %v761 = vadd.f32 %v740, %v757
        %v762 = vadd.f32 %v741, %v758
        %s763 = sld [smem:[#allocation3 + $0x54]]
        %v764 = vstv %s763
        %v765 = vmul.f32 %v764, %v562
        %v766 = vmul.f32 %v764, %v558
        %v767 = vmul.f32 %v764, %v563
        %771 = vrot.lane.b32.xlu0 %v765, 48
        %v772 = vpop.permute.xlu0 %771
        %773 = vrot.lane.b32.xlu0 %v766, 48
        %v774 = vpop.permute.xlu0 %773
        %775 = vrot.lane.b32.xlu0 %v767, 48
        %v776 = vpop.permute.xlu0 %775
        %v777 = vsel %vm756, %v772, %v774
        %v778 = vsel %vm756, %v774, %v776
        %v781 = vadd.f32 %v761, %v777
        %v782 = vadd.f32 %v762, %v778
        %s783 = sld [smem:[#allocation3 + $0x2a]]
        %v784 = vstv %s783
        %v785 = vmul.f32 %v784, %v550
        %v786 = vmul.f32 %v784, %v546
        %v787 = vmul.f32 %v784, %v551
        %791 = vrot.lane.b32.xlu0 %v785, 32
        %v792 = vpop.permute.xlu0 %791
        %793 = vrot.lane.b32.xlu0 %v786, 32
        %v794 = vpop.permute.xlu0 %793
        %795 = vrot.lane.b32.xlu0 %v787, 32
        %v796 = vpop.permute.xlu0 %795
        %vm797 = vcmask 261120
        %v798 = vsel %vm797, %v792, %v794
        %v799 = vsel %vm797, %v794, %v796
        %v802 = vadd.f32 %v781, %v798
        %v803 = vadd.f32 %v782, %v799
        %s804 = sld [smem:[#allocation3 + $0x5b]]
        %v805 = vstv %s804
        %v806 = vmul.f32 %v805, %v562
        %v807 = vmul.f32 %v805, %v558
        %v808 = vmul.f32 %v805, %v563
        %812 = vrot.lane.b32.xlu0 %v806, 32
        %v813 = vpop.permute.xlu0 %812
        %814 = vrot.lane.b32.xlu0 %v807, 32
        %v815 = vpop.permute.xlu0 %814
        %816 = vrot.lane.b32.xlu0 %v808, 32
        %v817 = vpop.permute.xlu0 %816
        %v818 = vsel %vm797, %v813, %v815
        %v819 = vsel %vm797, %v815, %v817
        %v822 = vadd.f32 %v802, %v818
        %v823 = vadd.f32 %v803, %v819
        %v824 = vmul.f32 %v564, %v822
        %v825 = vmul.f32 %v565, %v823
        %v826 = vadd.f32 %v824, 0.0
        %v827 = vadd.f32 %v825, 0.0
        %s828 = sld [smem:[#allocation3 + $0x1]]
        %v829 = vstv %s828
        %v830 = vmul.f32 %v829, %v550
        %v831 = vmul.f32 %v829, %v546
        %v832 = vmul.f32 %v829, %v551
        %v833 = vadd.f32 %v830, 0.0
        %v834 = vadd.f32 %v831, 0.0
        %v835 = vadd.f32 %v832, 0.0
        %s836 = sld [smem:[#allocation3 + $0x32]]
        %v837 = vstv %s836
        %v838 = vmul.f32 %v837, %v562
        %v839 = vmul.f32 %v837, %v558
        %v840 = vmul.f32 %v837, %v563
        %v841 = vadd.f32 %v833, %v838
        %v842 = vadd.f32 %v834, %v839
        %v843 = vadd.f32 %v835, %v840
        %s844 = sld [smem:[#allocation3 + $0x8]]
        %v845 = vstv %s844
        %v846 = vmul.f32 %v845, %v550
        %v847 = vmul.f32 %v845, %v546
        %v848 = vmul.f32 %v845, %v551
        %852 = vrot.lane.b32.xlu0 %v846, 112
        %v853 = vpop.permute.xlu0 %852
        %854 = vrot.lane.b32.xlu0 %v847, 112
        %v855 = vpop.permute.xlu0 %854
        %856 = vrot.lane.b32.xlu0 %v848, 112
        %v857 = vpop.permute.xlu0 %856
        %v858 = vsel %vm592, %v853, %v855
        %v859 = vsel %vm592, %v855, %v857
        %v863 = vadd.f32 %v841, %v858
        %v864 = vadd.f32 %v842, %v859
        %v865 = vadd.f32 %v843, %v857
        %s866 = sld [smem:[#allocation3 + $0x39]]
        %v867 = vstv %s866
        %v868 = vmul.f32 %v867, %v562
        %v869 = vmul.f32 %v867, %v558
        %v870 = vmul.f32 %v867, %v563
        %874 = vrot.lane.b32.xlu0 %v868, 112
        %v875 = vpop.permute.xlu0 %874
        %876 = vrot.lane.b32.xlu0 %v869, 112
        %v877 = vpop.permute.xlu0 %876
        %878 = vrot.lane.b32.xlu0 %v870, 112
        %v879 = vpop.permute.xlu0 %878
        %v880 = vsel %vm592, %v875, %v877
        %v881 = vsel %vm592, %v877, %v879
        %v885 = vadd.f32 %v863, %v880
        %v886 = vadd.f32 %v864, %v881
        %v887 = vadd.f32 %v865, %v879
        %s888 = sld [smem:[#allocation3 + $0xf]]
        %v889 = vstv %s888
        %v890 = vmul.f32 %v889, %v550
        %v891 = vmul.f32 %v889, %v546
        %v892 = vmul.f32 %v889, %v551
        %896 = vrot.lane.b32.xlu0 %v890, 96
        %v897 = vpop.permute.xlu0 %896
        %898 = vrot.lane.b32.xlu0 %v891, 96
        %v899 = vpop.permute.xlu0 %898
        %900 = vrot.lane.b32.xlu0 %v892, 96
        %v901 = vpop.permute.xlu0 %900
        %v902 = vsel %vm633, %v897, %v899
        %v903 = vsel %vm633, %v899, %v901
        %v907 = vadd.f32 %v885, %v902
        %v908 = vadd.f32 %v886, %v903
        %v909 = vadd.f32 %v887, %v901
        %s910 = sld [smem:[#allocation3 + $0x40]]
        %v911 = vstv %s910
        %v912 = vmul.f32 %v911, %v562
        %v913 = vmul.f32 %v911, %v558
        %v914 = vmul.f32 %v911, %v563
        %918 = vrot.lane.b32.xlu0 %v912, 96
        %v919 = vpop.permute.xlu0 %918
        %920 = vrot.lane.b32.xlu0 %v913, 96
        %v921 = vpop.permute.xlu0 %920
        %922 = vrot.lane.b32.xlu0 %v914, 96
        %v923 = vpop.permute.xlu0 %922
        %v924 = vsel %vm633, %v919, %v921
        %v925 = vsel %vm633, %v921, %v923
        %v929 = vadd.f32 %v907, %v924
        %v930 = vadd.f32 %v908, %v925
        %v931 = vadd.f32 %v909, %v923
        %s932 = sld [smem:[#allocation3 + $0x16]]
        %v933 = vstv %s932
        %v934 = vmul.f32 %v933, %v550
        %v935 = vmul.f32 %v933, %v546
        %v936 = vmul.f32 %v933, %v551
        %940 = vrot.lane.b32.xlu0 %v934, 80
        %v941 = vpop.permute.xlu0 %940
        %942 = vrot.lane.b32.xlu0 %v935, 80
        %v943 = vpop.permute.xlu0 %942
        %944 = vrot.lane.b32.xlu0 %v936, 80
        %v945 = vpop.permute.xlu0 %944
        %v946 = vsel %vm674, %v941, %v943
        %v947 = vsel %vm674, %v943, %v945
        %v951 = vadd.f32 %v929, %v946
        %v952 = vadd.f32 %v930, %v947
        %v953 = vadd.f32 %v931, %v945
        %s954 = sld [smem:[#allocation3 + $0x47]]
        %v955 = vstv %s954
        %v956 = vmul.f32 %v955, %v562
        %v957 = vmul.f32 %v955, %v558
        %v958 = vmul.f32 %v955, %v563
        %962 = vrot.lane.b32.xlu0 %v956, 80
        %v963 = vpop.permute.xlu0 %962
        %964 = vrot.lane.b32.xlu0 %v957, 80
        %v965 = vpop.permute.xlu0 %964
        %966 = vrot.lane.b32.xlu0 %v958, 80
        %v967 = vpop.permute.xlu0 %966
        %v968 = vsel %vm674, %v963, %v965
        %v969 = vsel %vm674, %v965, %v967
        %v973 = vadd.f32 %v951, %v968
        %v974 = vadd.f32 %v952, %v969
        %v975 = vadd.f32 %v953, %v967
        %s976 = sld [smem:[#allocation3 + $0x1d]]
        %v977 = vstv %s976
        %v978 = vmul.f32 %v977, %v550
        %v979 = vmul.f32 %v977, %v546
        %v980 = vmul.f32 %v977, %v551
        %984 = vrot.lane.b32.xlu0 %v978, 64
        %v985 = vpop.permute.xlu0 %984
        %986 = vrot.lane.b32.xlu0 %v979, 64
        %v987 = vpop.permute.xlu0 %986
        %988 = vrot.lane.b32.xlu0 %v980, 64
        %v989 = vpop.permute.xlu0 %988
        %v990 = vsel %vm715, %v985, %v987
        %v991 = vsel %vm715, %v987, %v989
        %v995 = vadd.f32 %v973, %v990
        %v996 = vadd.f32 %v974, %v991
        %v997 = vadd.f32 %v975, %v989
        %s998 = sld [smem:[#allocation3 + $0x4e]]
        %v999 = vstv %s998
        %v1000 = vmul.f32 %v999, %v562
        %v1001 = vmul.f32 %v999, %v558
        %v1002 = vmul.f32 %v999, %v563
        %1006 = vrot.lane.b32.xlu0 %v1000, 64
        %v1007 = vpop.permute.xlu0 %1006
        %1008 = vrot.lane.b32.xlu0 %v1001, 64
        %v1009 = vpop.permute.xlu0 %1008
        %1010 = vrot.lane.b32.xlu0 %v1002, 64
        %v1011 = vpop.permute.xlu0 %1010
        %v1012 = vsel %vm715, %v1007, %v1009
        %v1013 = vsel %vm715, %v1009, %v1011
        %v1017 = vadd.f32 %v995, %v1012
        %v1018 = vadd.f32 %v996, %v1013
        %v1019 = vadd.f32 %v997, %v1011
        %s1020 = sld [smem:[#allocation3 + $0x24]]
        %v1021 = vstv %s1020
        %v1022 = vmul.f32 %v1021, %v550
        %v1023 = vmul.f32 %v1021, %v546
        %v1024 = vmul.f32 %v1021, %v551
        %1028 = vrot.lane.b32.xlu0 %v1022, 48
        %v1029 = vpop.permute.xlu0 %1028
        %1030 = vrot.lane.b32.xlu0 %v1023, 48
        %v1031 = vpop.permute.xlu0 %1030
        %1032 = vrot.lane.b32.xlu0 %v1024, 48
        %v1033 = vpop.permute.xlu0 %1032
        %v1034 = vsel %vm756, %v1029, %v1031
        %v1035 = vsel %vm756, %v1031, %v1033
        %v1039 = vadd.f32 %v1017, %v1034
        %v1040 = vadd.f32 %v1018, %v1035
        %v1041 = vadd.f32 %v1019, %v1033
        %s1042 = sld [smem:[#allocation3 + $0x55]]
        %v1043 = vstv %s1042
        %v1044 = vmul.f32 %v1043, %v562
        %v1045 = vmul.f32 %v1043, %v558
        %v1046 = vmul.f32 %v1043, %v563
        %1050 = vrot.lane.b32.xlu0 %v1044, 48
        %v1051 = vpop.permute.xlu0 %1050
        %1052 = vrot.lane.b32.xlu0 %v1045, 48
        %v1053 = vpop.permute.xlu0 %1052
        %1054 = vrot.lane.b32.xlu0 %v1046, 48
        %v1055 = vpop.permute.xlu0 %1054
        %v1056 = vsel %vm756, %v1051, %v1053
        %v1057 = vsel %vm756, %v1053, %v1055
        %v1061 = vadd.f32 %v1039, %v1056
        %v1062 = vadd.f32 %v1040, %v1057
        %v1063 = vadd.f32 %v1041, %v1055
        %s1064 = sld [smem:[#allocation3 + $0x2b]]
        %v1065 = vstv %s1064
        %v1066 = vmul.f32 %v1065, %v550
        %v1067 = vmul.f32 %v1065, %v546
        %v1068 = vmul.f32 %v1065, %v551
        %1072 = vrot.lane.b32.xlu0 %v1066, 32
        %v1073 = vpop.permute.xlu0 %1072
        %1074 = vrot.lane.b32.xlu0 %v1067, 32
        %v1075 = vpop.permute.xlu0 %1074
        %1076 = vrot.lane.b32.xlu0 %v1068, 32
        %v1077 = vpop.permute.xlu0 %1076
        %v1078 = vsel %vm797, %v1073, %v1075
        %v1079 = vsel %vm797, %v1075, %v1077
        %v1083 = vadd.f32 %v1061, %v1078
        %v1084 = vadd.f32 %v1062, %v1079
        %v1085 = vadd.f32 %v1063, %v1077
        %s1086 = sld [smem:[#allocation3 + $0x5c]]
        %v1087 = vstv %s1086
        %v1088 = vmul.f32 %v1087, %v562
        %v1089 = vmul.f32 %v1087, %v558
        %v1090 = vmul.f32 %v1087, %v563
        %1094 = vrot.lane.b32.xlu0 %v1088, 32
        %v1095 = vpop.permute.xlu0 %1094
        %1096 = vrot.lane.b32.xlu0 %v1089, 32
        %v1097 = vpop.permute.xlu0 %1096
        %1098 = vrot.lane.b32.xlu0 %v1090, 32
        %v1099 = vpop.permute.xlu0 %1098
        %v1100 = vsel %vm797, %v1095, %v1097
        %v1101 = vsel %vm797, %v1097, %v1099
        %v1105 = vadd.f32 %v1083, %v1100
        %v1106 = vadd.f32 %v1084, %v1101
        %v1107 = vadd.f32 %v1085, %v1099
        %v1111 = vrot.slane %v1105, 7
        %v1112 = vrot.slane %v1106, 7
        %v1113 = vrot.slane %v1107, 7
        %1114 = vrot.lane.b32.xlu0 %v1111, 127
        %v1115 = vpop.permute.xlu0 %1114
        %1116 = vrot.lane.b32.xlu0 %v1112, 127
        %v1117 = vpop.permute.xlu0 %1116
        %1118 = vrot.lane.b32.xlu0 %v1113, 127
        %v1119 = vpop.permute.xlu0 %1118
        %vm1120 = vcmask 1039360
        %v1121 = vsel %vm1120, %v1115, %v1117
        %v1122 = vsel %vm1120, %v1117, %v1119
        %v1125 = vmul.f32 %v564, %v1121
        %v1126 = vmul.f32 %v565, %v1122
        %v1129 = vrot.slane %v1125, 1
        %v1130 = vrot.slane %v1126, 1
        %v1133 = vadd.f32 %v826, %v1129
        %v1134 = vadd.f32 %v827, %v1130
        %s1135 = sld [smem:[#allocation3 + $0x2]]
        %v1136 = vstv %s1135
        %v1137 = vmul.f32 %v1136, %v550
        %v1138 = vmul.f32 %v1136, %v546
        %v1139 = vmul.f32 %v1136, %v551
        %v1140 = vadd.f32 %v1137, 0.0
        %v1141 = vadd.f32 %v1138, 0.0
        %v1142 = vadd.f32 %v1139, 0.0
        %s1143 = sld [smem:[#allocation3 + $0x33]]
        %v1144 = vstv %s1143
        %v1145 = vmul.f32 %v1144, %v562
        %v1146 = vmul.f32 %v1144, %v558
        %v1147 = vmul.f32 %v1144, %v563
        %v1148 = vadd.f32 %v1140, %v1145
        %v1149 = vadd.f32 %v1141, %v1146
        %v1150 = vadd.f32 %v1142, %v1147
        %s1151 = sld [smem:[#allocation3 + $0x9]]
        %v1152 = vstv %s1151
        %v1153 = vmul.f32 %v1152, %v550
        %v1154 = vmul.f32 %v1152, %v546
        %v1155 = vmul.f32 %v1152, %v551
        %1159 = vrot.lane.b32.xlu0 %v1153, 112
        %v1160 = vpop.permute.xlu0 %1159
        %1161 = vrot.lane.b32.xlu0 %v1154, 112
        %v1162 = vpop.permute.xlu0 %1161
        %1163 = vrot.lane.b32.xlu0 %v1155, 112
        %v1164 = vpop.permute.xlu0 %1163
        %v1165 = vsel %vm592, %v1160, %v1162
        %v1166 = vsel %vm592, %v1162, %v1164
        %v1170 = vadd.f32 %v1148, %v1165
        %v1171 = vadd.f32 %v1149, %v1166
        %v1172 = vadd.f32 %v1150, %v1164
        %s1173 = sld [smem:[#allocation3 + $0x3a]]
        %v1174 = vstv %s1173
        %v1175 = vmul.f32 %v1174, %v562
        %v1176 = vmul.f32 %v1174, %v558
        %v1177 = vmul.f32 %v1174, %v563
        %1181 = vrot.lane.b32.xlu0 %v1175, 112
        %v1182 = vpop.permute.xlu0 %1181
        %1183 = vrot.lane.b32.xlu0 %v1176, 112
        %v1184 = vpop.permute.xlu0 %1183
        %1185 = vrot.lane.b32.xlu0 %v1177, 112
        %v1186 = vpop.permute.xlu0 %1185
        %v1187 = vsel %vm592, %v1182, %v1184
        %v1188 = vsel %vm592, %v1184, %v1186
        %v1192 = vadd.f32 %v1170, %v1187
        %v1193 = vadd.f32 %v1171, %v1188
        %v1194 = vadd.f32 %v1172, %v1186
        %s1195 = sld [smem:[#allocation3 + $0x10]]
        %v1196 = vstv %s1195
        %v1197 = vmul.f32 %v1196, %v550
        %v1198 = vmul.f32 %v1196, %v546
        %v1199 = vmul.f32 %v1196, %v551
        %1203 = vrot.lane.b32.xlu0 %v1197, 96
        %v1204 = vpop.permute.xlu0 %1203
        %1205 = vrot.lane.b32.xlu0 %v1198, 96
        %v1206 = vpop.permute.xlu0 %1205
        %1207 = vrot.lane.b32.xlu0 %v1199, 96
        %v1208 = vpop.permute.xlu0 %1207
        %v1209 = vsel %vm633, %v1204, %v1206
        %v1210 = vsel %vm633, %v1206, %v1208
        %v1214 = vadd.f32 %v1192, %v1209
        %v1215 = vadd.f32 %v1193, %v1210
        %v1216 = vadd.f32 %v1194, %v1208
        %s1217 = sld [smem:[#allocation3 + $0x41]]
        %v1218 = vstv %s1217
        %v1219 = vmul.f32 %v1218, %v562
        %v1220 = vmul.f32 %v1218, %v558
        %v1221 = vmul.f32 %v1218, %v563
        %1225 = vrot.lane.b32.xlu0 %v1219, 96
        %v1226 = vpop.permute.xlu0 %1225
        %1227 = vrot.lane.b32.xlu0 %v1220, 96
        %v1228 = vpop.permute.xlu0 %1227
        %1229 = vrot.lane.b32.xlu0 %v1221, 96
        %v1230 = vpop.permute.xlu0 %1229
        %v1231 = vsel %vm633, %v1226, %v1228
        %v1232 = vsel %vm633, %v1228, %v1230
        %v1236 = vadd.f32 %v1214, %v1231
        %v1237 = vadd.f32 %v1215, %v1232
        %v1238 = vadd.f32 %v1216, %v1230
        %s1239 = sld [smem:[#allocation3 + $0x17]]
        %v1240 = vstv %s1239
        %v1241 = vmul.f32 %v1240, %v550
        %v1242 = vmul.f32 %v1240, %v546
        %v1243 = vmul.f32 %v1240, %v551
        %1247 = vrot.lane.b32.xlu0 %v1241, 80
        %v1248 = vpop.permute.xlu0 %1247
        %1249 = vrot.lane.b32.xlu0 %v1242, 80
        %v1250 = vpop.permute.xlu0 %1249
        %1251 = vrot.lane.b32.xlu0 %v1243, 80
        %v1252 = vpop.permute.xlu0 %1251
        %v1253 = vsel %vm674, %v1248, %v1250
        %v1254 = vsel %vm674, %v1250, %v1252
        %v1258 = vadd.f32 %v1236, %v1253
        %v1259 = vadd.f32 %v1237, %v1254
        %v1260 = vadd.f32 %v1238, %v1252
        %s1261 = sld [smem:[#allocation3 + $0x48]]
        %v1262 = vstv %s1261
        %v1263 = vmul.f32 %v1262, %v562
        %v1264 = vmul.f32 %v1262, %v558
        %v1265 = vmul.f32 %v1262, %v563
        %1269 = vrot.lane.b32.xlu0 %v1263, 80
        %v1270 = vpop.permute.xlu0 %1269
        %1271 = vrot.lane.b32.xlu0 %v1264, 80
        %v1272 = vpop.permute.xlu0 %1271
        %1273 = vrot.lane.b32.xlu0 %v1265, 80
        %v1274 = vpop.permute.xlu0 %1273
        %v1275 = vsel %vm674, %v1270, %v1272
        %v1276 = vsel %vm674, %v1272, %v1274
        %v1280 = vadd.f32 %v1258, %v1275
        %v1281 = vadd.f32 %v1259, %v1276
        %v1282 = vadd.f32 %v1260, %v1274
        %s1283 = sld [smem:[#allocation3 + $0x1e]]
        %v1284 = vstv %s1283
        %v1285 = vmul.f32 %v1284, %v550
        %v1286 = vmul.f32 %v1284, %v546
        %v1287 = vmul.f32 %v1284, %v551
        %1291 = vrot.lane.b32.xlu0 %v1285, 64
        %v1292 = vpop.permute.xlu0 %1291
        %1293 = vrot.lane.b32.xlu0 %v1286, 64
        %v1294 = vpop.permute.xlu0 %1293
        %1295 = vrot.lane.b32.xlu0 %v1287, 64
        %v1296 = vpop.permute.xlu0 %1295
        %v1297 = vsel %vm715, %v1292, %v1294
        %v1298 = vsel %vm715, %v1294, %v1296
        %v1302 = vadd.f32 %v1280, %v1297
        %v1303 = vadd.f32 %v1281, %v1298
        %v1304 = vadd.f32 %v1282, %v1296
        %s1305 = sld [smem:[#allocation3 + $0x4f]]
        %v1306 = vstv %s1305
        %v1307 = vmul.f32 %v1306, %v562
        %v1308 = vmul.f32 %v1306, %v558
        %v1309 = vmul.f32 %v1306, %v563
        %1313 = vrot.lane.b32.xlu0 %v1307, 64
        %v1314 = vpop.permute.xlu0 %1313
        %1315 = vrot.lane.b32.xlu0 %v1308, 64
        %v1316 = vpop.permute.xlu0 %1315
        %1317 = vrot.lane.b32.xlu0 %v1309, 64
        %v1318 = vpop.permute.xlu0 %1317
        %v1319 = vsel %vm715, %v1314, %v1316
        %v1320 = vsel %vm715, %v1316, %v1318
        %v1324 = vadd.f32 %v1302, %v1319
        %v1325 = vadd.f32 %v1303, %v1320
        %v1326 = vadd.f32 %v1304, %v1318
        %s1327 = sld [smem:[#allocation3 + $0x25]]
        %v1328 = vstv %s1327
        %v1329 = vmul.f32 %v1328, %v550
        %v1330 = vmul.f32 %v1328, %v546
        %v1331 = vmul.f32 %v1328, %v551
        %1335 = vrot.lane.b32.xlu0 %v1329, 48
        %v1336 = vpop.permute.xlu0 %1335
        %1337 = vrot.lane.b32.xlu0 %v1330, 48
        %v1338 = vpop.permute.xlu0 %1337
        %1339 = vrot.lane.b32.xlu0 %v1331, 48
        %v1340 = vpop.permute.xlu0 %1339
        %v1341 = vsel %vm756, %v1336, %v1338
        %v1342 = vsel %vm756, %v1338, %v1340
        %v1346 = vadd.f32 %v1324, %v1341
        %v1347 = vadd.f32 %v1325, %v1342
        %v1348 = vadd.f32 %v1326, %v1340
        %s1349 = sld [smem:[#allocation3 + $0x56]]
        %v1350 = vstv %s1349
        %v1351 = vmul.f32 %v1350, %v562
        %v1352 = vmul.f32 %v1350, %v558
        %v1353 = vmul.f32 %v1350, %v563
        %1357 = vrot.lane.b32.xlu0 %v1351, 48
        %v1358 = vpop.permute.xlu0 %1357
        %1359 = vrot.lane.b32.xlu0 %v1352, 48
        %v1360 = vpop.permute.xlu0 %1359
        %1361 = vrot.lane.b32.xlu0 %v1353, 48
        %v1362 = vpop.permute.xlu0 %1361
        %v1363 = vsel %vm756, %v1358, %v1360
        %v1364 = vsel %vm756, %v1360, %v1362
        %v1368 = vadd.f32 %v1346, %v1363
        %v1369 = vadd.f32 %v1347, %v1364
        %v1370 = vadd.f32 %v1348, %v1362
        %s1371 = sld [smem:[#allocation3 + $0x2c]]
        %v1372 = vstv %s1371
        %v1373 = vmul.f32 %v1372, %v550
        %v1374 = vmul.f32 %v1372, %v546
        %v1375 = vmul.f32 %v1372, %v551
        %1379 = vrot.lane.b32.xlu0 %v1373, 32
        %v1380 = vpop.permute.xlu0 %1379
        %1381 = vrot.lane.b32.xlu0 %v1374, 32
        %v1382 = vpop.permute.xlu0 %1381
        %1383 = vrot.lane.b32.xlu0 %v1375, 32
        %v1384 = vpop.permute.xlu0 %1383
        %v1385 = vsel %vm797, %v1380, %v1382
        %v1386 = vsel %vm797, %v1382, %v1384
        %v1390 = vadd.f32 %v1368, %v1385
        %v1391 = vadd.f32 %v1369, %v1386
        %v1392 = vadd.f32 %v1370, %v1384
        %s1393 = sld [smem:[#allocation3 + $0x5d]]
        %v1394 = vstv %s1393
        %v1395 = vmul.f32 %v1394, %v562
        %v1396 = vmul.f32 %v1394, %v558
        %v1397 = vmul.f32 %v1394, %v563
        %1401 = vrot.lane.b32.xlu0 %v1395, 32
        %v1402 = vpop.permute.xlu0 %1401
        %1403 = vrot.lane.b32.xlu0 %v1396, 32
        %v1404 = vpop.permute.xlu0 %1403
        %1405 = vrot.lane.b32.xlu0 %v1397, 32
        %v1406 = vpop.permute.xlu0 %1405
        %v1407 = vsel %vm797, %v1402, %v1404
        %v1408 = vsel %vm797, %v1404, %v1406
        %v1412 = vadd.f32 %v1390, %v1407
        %v1413 = vadd.f32 %v1391, %v1408
        %v1414 = vadd.f32 %v1392, %v1406
        %v1418 = vrot.slane %v1412, 6
        %v1419 = vrot.slane %v1413, 6
        %v1420 = vrot.slane %v1414, 6
        %1421 = vrot.lane.b32.xlu0 %v1418, 126
        %v1422 = vpop.permute.xlu0 %1421
        %1423 = vrot.lane.b32.xlu0 %v1419, 126
        %v1424 = vpop.permute.xlu0 %1423
        %1425 = vrot.lane.b32.xlu0 %v1420, 126
        %v1426 = vpop.permute.xlu0 %1425
        %vm1427 = vcmask 1031168
        %v1428 = vsel %vm1427, %v1422, %v1424
        %v1429 = vsel %vm1427, %v1424, %v1426
        %v1432 = vmul.f32 %v564, %v1428
        %v1433 = vmul.f32 %v565, %v1429
        %v1436 = vrot.slane %v1432, 2
        %v1437 = vrot.slane %v1433, 2
        %v1440 = vadd.f32 %v1133, %v1436
        %v1441 = vadd.f32 %v1134, %v1437
        %s1442 = sld [smem:[#allocation3 + $0x3]]
        %v1443 = vstv %s1442
        %v1444 = vmul.f32 %v1443, %v550
        %v1445 = vmul.f32 %v1443, %v546
        %v1446 = vmul.f32 %v1443, %v551
        %v1447 = vadd.f32 %v1444, 0.0
        %v1448 = vadd.f32 %v1445, 0.0
        %v1449 = vadd.f32 %v1446, 0.0
        %s1450 = sld [smem:[#allocation3 + $0x34]]
        %v1451 = vstv %s1450
        %v1452 = vmul.f32 %v1451, %v562
        %v1453 = vmul.f32 %v1451, %v558
        %v1454 = vmul.f32 %v1451, %v563
        %v1455 = vadd.f32 %v1447, %v1452
        %v1456 = vadd.f32 %v1448, %v1453
        %v1457 = vadd.f32 %v1449, %v1454
        %s1458 = sld [smem:[#allocation3 + $0xa]]
        %v1459 = vstv %s1458
        %v1460 = vmul.f32 %v1459, %v550
        %v1461 = vmul.f32 %v1459, %v546
        %v1462 = vmul.f32 %v1459, %v551
        %1466 = vrot.lane.b32.xlu0 %v1460, 112
        %v1467 = vpop.permute.xlu0 %1466
        %1468 = vrot.lane.b32.xlu0 %v1461, 112
        %v1469 = vpop.permute.xlu0 %1468
        %1470 = vrot.lane.b32.xlu0 %v1462, 112
        %v1471 = vpop.permute.xlu0 %1470
        %v1472 = vsel %vm592, %v1467, %v1469
        %v1473 = vsel %vm592, %v1469, %v1471
        %v1477 = vadd.f32 %v1455, %v1472
        %v1478 = vadd.f32 %v1456, %v1473
        %v1479 = vadd.f32 %v1457, %v1471
        %s1480 = sld [smem:[#allocation3 + $0x3b]]
        %v1481 = vstv %s1480
        %v1482 = vmul.f32 %v1481, %v562
        %v1483 = vmul.f32 %v1481, %v558
        %v1484 = vmul.f32 %v1481, %v563
        %1488 = vrot.lane.b32.xlu0 %v1482, 112
        %v1489 = vpop.permute.xlu0 %1488
        %1490 = vrot.lane.b32.xlu0 %v1483, 112
        %v1491 = vpop.permute.xlu0 %1490
        %1492 = vrot.lane.b32.xlu0 %v1484, 112
        %v1493 = vpop.permute.xlu0 %1492
        %v1494 = vsel %vm592, %v1489, %v1491
        %v1495 = vsel %vm592, %v1491, %v1493
        %v1499 = vadd.f32 %v1477, %v1494
        %v1500 = vadd.f32 %v1478, %v1495
        %v1501 = vadd.f32 %v1479, %v1493
        %s1502 = sld [smem:[#allocation3 + $0x11]]
        %v1503 = vstv %s1502
        %v1504 = vmul.f32 %v1503, %v550
        %v1505 = vmul.f32 %v1503, %v546
        %v1506 = vmul.f32 %v1503, %v551
        %1510 = vrot.lane.b32.xlu0 %v1504, 96
        %v1511 = vpop.permute.xlu0 %1510
        %1512 = vrot.lane.b32.xlu0 %v1505, 96
        %v1513 = vpop.permute.xlu0 %1512
        %1514 = vrot.lane.b32.xlu0 %v1506, 96
        %v1515 = vpop.permute.xlu0 %1514
        %v1516 = vsel %vm633, %v1511, %v1513
        %v1517 = vsel %vm633, %v1513, %v1515
        %v1521 = vadd.f32 %v1499, %v1516
        %v1522 = vadd.f32 %v1500, %v1517
        %v1523 = vadd.f32 %v1501, %v1515
        %s1524 = sld [smem:[#allocation3 + $0x42]]
        %v1525 = vstv %s1524
        %v1526 = vmul.f32 %v1525, %v562
        %v1527 = vmul.f32 %v1525, %v558
        %v1528 = vmul.f32 %v1525, %v563
        %1532 = vrot.lane.b32.xlu0 %v1526, 96
        %v1533 = vpop.permute.xlu0 %1532
        %1534 = vrot.lane.b32.xlu0 %v1527, 96
        %v1535 = vpop.permute.xlu0 %1534
        %1536 = vrot.lane.b32.xlu0 %v1528, 96
        %v1537 = vpop.permute.xlu0 %1536
        %v1538 = vsel %vm633, %v1533, %v1535
        %v1539 = vsel %vm633, %v1535, %v1537
        %v1543 = vadd.f32 %v1521, %v1538
        %v1544 = vadd.f32 %v1522, %v1539
        %v1545 = vadd.f32 %v1523, %v1537
        %s1546 = sld [smem:[#allocation3 + $0x18]]
        %v1547 = vstv %s1546
        %v1548 = vmul.f32 %v1547, %v550
        %v1549 = vmul.f32 %v1547, %v546
        %v1550 = vmul.f32 %v1547, %v551
        %1554 = vrot.lane.b32.xlu0 %v1548, 80
        %v1555 = vpop.permute.xlu0 %1554
        %1556 = vrot.lane.b32.xlu0 %v1549, 80
        %v1557 = vpop.permute.xlu0 %1556
        %1558 = vrot.lane.b32.xlu0 %v1550, 80
        %v1559 = vpop.permute.xlu0 %1558
        %v1560 = vsel %vm674, %v1555, %v1557
        %v1561 = vsel %vm674, %v1557, %v1559
        %v1565 = vadd.f32 %v1543, %v1560
        %v1566 = vadd.f32 %v1544, %v1561
        %v1567 = vadd.f32 %v1545, %v1559
        %s1568 = sld [smem:[#allocation3 + $0x49]]
        %v1569 = vstv %s1568
        %v1570 = vmul.f32 %v1569, %v562
        %v1571 = vmul.f32 %v1569, %v558
        %v1572 = vmul.f32 %v1569, %v563
        %1576 = vrot.lane.b32.xlu0 %v1570, 80
        %v1577 = vpop.permute.xlu0 %1576
        %1578 = vrot.lane.b32.xlu0 %v1571, 80
        %v1579 = vpop.permute.xlu0 %1578
        %1580 = vrot.lane.b32.xlu0 %v1572, 80
        %v1581 = vpop.permute.xlu0 %1580
        %v1582 = vsel %vm674, %v1577, %v1579
        %v1583 = vsel %vm674, %v1579, %v1581
        %v1587 = vadd.f32 %v1565, %v1582
        %v1588 = vadd.f32 %v1566, %v1583
        %v1589 = vadd.f32 %v1567, %v1581
        %s1590 = sld [smem:[#allocation3 + $0x1f]]
        %v1591 = vstv %s1590
        %v1592 = vmul.f32 %v1591, %v550
        %v1593 = vmul.f32 %v1591, %v546
        %v1594 = vmul.f32 %v1591, %v551
        %1598 = vrot.lane.b32.xlu0 %v1592, 64
        %v1599 = vpop.permute.xlu0 %1598
        %1600 = vrot.lane.b32.xlu0 %v1593, 64
        %v1601 = vpop.permute.xlu0 %1600
        %1602 = vrot.lane.b32.xlu0 %v1594, 64
        %v1603 = vpop.permute.xlu0 %1602
        %v1604 = vsel %vm715, %v1599, %v1601
        %v1605 = vsel %vm715, %v1601, %v1603
        %v1609 = vadd.f32 %v1587, %v1604
        %v1610 = vadd.f32 %v1588, %v1605
        %v1611 = vadd.f32 %v1589, %v1603
        %s1612 = sld [smem:[#allocation3 + $0x50]]
        %v1613 = vstv %s1612
        %v1614 = vmul.f32 %v1613, %v562
        %v1615 = vmul.f32 %v1613, %v558
        %v1616 = vmul.f32 %v1613, %v563
        %1620 = vrot.lane.b32.xlu0 %v1614, 64
        %v1621 = vpop.permute.xlu0 %1620
        %1622 = vrot.lane.b32.xlu0 %v1615, 64
        %v1623 = vpop.permute.xlu0 %1622
        %1624 = vrot.lane.b32.xlu0 %v1616, 64
        %v1625 = vpop.permute.xlu0 %1624
        %v1626 = vsel %vm715, %v1621, %v1623
        %v1627 = vsel %vm715, %v1623, %v1625
        %v1631 = vadd.f32 %v1609, %v1626
        %v1632 = vadd.f32 %v1610, %v1627
        %v1633 = vadd.f32 %v1611, %v1625
        %s1634 = sld [smem:[#allocation3 + $0x26]]
        %v1635 = vstv %s1634
        %v1636 = vmul.f32 %v1635, %v550
        %v1637 = vmul.f32 %v1635, %v546
        %v1638 = vmul.f32 %v1635, %v551
        %1642 = vrot.lane.b32.xlu0 %v1636, 48
        %v1643 = vpop.permute.xlu0 %1642
        %1644 = vrot.lane.b32.xlu0 %v1637, 48
        %v1645 = vpop.permute.xlu0 %1644
        %1646 = vrot.lane.b32.xlu0 %v1638, 48
        %v1647 = vpop.permute.xlu0 %1646
        %v1648 = vsel %vm756, %v1643, %v1645
        %v1649 = vsel %vm756, %v1645, %v1647
        %v1653 = vadd.f32 %v1631, %v1648
        %v1654 = vadd.f32 %v1632, %v1649
        %v1655 = vadd.f32 %v1633, %v1647
        %s1656 = sld [smem:[#allocation3 + $0x57]]
        %v1657 = vstv %s1656
        %v1658 = vmul.f32 %v1657, %v562
        %v1659 = vmul.f32 %v1657, %v558
        %v1660 = vmul.f32 %v1657, %v563
        %1664 = vrot.lane.b32.xlu0 %v1658, 48
        %v1665 = vpop.permute.xlu0 %1664
        %1666 = vrot.lane.b32.xlu0 %v1659, 48
        %v1667 = vpop.permute.xlu0 %1666
        %1668 = vrot.lane.b32.xlu0 %v1660, 48
        %v1669 = vpop.permute.xlu0 %1668
        %v1670 = vsel %vm756, %v1665, %v1667
        %v1671 = vsel %vm756, %v1667, %v1669
        %v1675 = vadd.f32 %v1653, %v1670
        %v1676 = vadd.f32 %v1654, %v1671
        %v1677 = vadd.f32 %v1655, %v1669
        %s1678 = sld [smem:[#allocation3 + $0x2d]]
        %v1679 = vstv %s1678
        %v1680 = vmul.f32 %v1679, %v550
        %v1681 = vmul.f32 %v1679, %v546
        %v1682 = vmul.f32 %v1679, %v551
        %1686 = vrot.lane.b32.xlu0 %v1680, 32
        %v1687 = vpop.permute.xlu0 %1686
        %1688 = vrot.lane.b32.xlu0 %v1681, 32
        %v1689 = vpop.permute.xlu0 %1688
        %1690 = vrot.lane.b32.xlu0 %v1682, 32
        %v1691 = vpop.permute.xlu0 %1690
        %v1692 = vsel %vm797, %v1687, %v1689
        %v1693 = vsel %vm797, %v1689, %v1691
        %v1697 = vadd.f32 %v1675, %v1692
        %v1698 = vadd.f32 %v1676, %v1693
        %v1699 = vadd.f32 %v1677, %v1691
        %s1700 = sld [smem:[#allocation3 + $0x5e]]
        %v1701 = vstv %s1700
        %v1702 = vmul.f32 %v1701, %v562
        %v1703 = vmul.f32 %v1701, %v558
        %v1704 = vmul.f32 %v1701, %v563
        %1708 = vrot.lane.b32.xlu0 %v1702, 32
        %v1709 = vpop.permute.xlu0 %1708
        %1710 = vrot.lane.b32.xlu0 %v1703, 32
        %v1711 = vpop.permute.xlu0 %1710
        %1712 = vrot.lane.b32.xlu0 %v1704, 32
        %v1713 = vpop.permute.xlu0 %1712
        %v1714 = vsel %vm797, %v1709, %v1711
        %v1715 = vsel %vm797, %v1711, %v1713
        %v1719 = vadd.f32 %v1697, %v1714
        %v1720 = vadd.f32 %v1698, %v1715
        %v1721 = vadd.f32 %v1699, %v1713
        %v1725 = vrot.slane %v1719, 5
        %v1726 = vrot.slane %v1720, 5
        %v1727 = vrot.slane %v1721, 5
        %1728 = vrot.lane.b32.xlu0 %v1725, 125
        %v1729 = vpop.permute.xlu0 %1728
        %1730 = vrot.lane.b32.xlu0 %v1726, 125
        %v1731 = vpop.permute.xlu0 %1730
        %1732 = vrot.lane.b32.xlu0 %v1727, 125
        %v1733 = vpop.permute.xlu0 %1732
        %vm1734 = vcmask 1022976
        %v1735 = vsel %vm1734, %v1729, %v1731
        %v1736 = vsel %vm1734, %v1731, %v1733
        %v1739 = vmul.f32 %v564, %v1735
        %v1740 = vmul.f32 %v565, %v1736
        %v1743 = vrot.slane %v1739, 3
        %v1744 = vrot.slane %v1740, 3
        %v1747 = vadd.f32 %v1440, %v1743
        %v1748 = vadd.f32 %v1441, %v1744
        %s1749 = sld [smem:[#allocation3 + $0x4]]
        %v1750 = vstv %s1749
        %v1751 = vmul.f32 %v1750, %v550
        %v1752 = vmul.f32 %v1750, %v546
        %v1753 = vmul.f32 %v1750, %v551
        %v1754 = vadd.f32 %v1751, 0.0
        %v1755 = vadd.f32 %v1752, 0.0
        %v1756 = vadd.f32 %v1753, 0.0
        %s1757 = sld [smem:[#allocation3 + $0x35]]
        %v1758 = vstv %s1757
        %v1759 = vmul.f32 %v1758, %v562
        %v1760 = vmul.f32 %v1758, %v558
        %v1761 = vmul.f32 %v1758, %v563
        %v1762 = vadd.f32 %v1754, %v1759
        %v1763 = vadd.f32 %v1755, %v1760
        %v1764 = vadd.f32 %v1756, %v1761
        %s1765 = sld [smem:[#allocation3 + $0xb]]
        %v1766 = vstv %s1765
        %v1767 = vmul.f32 %v1766, %v550
        %v1768 = vmul.f32 %v1766, %v546
        %v1769 = vmul.f32 %v1766, %v551
        %1773 = vrot.lane.b32.xlu0 %v1767, 112
        %v1774 = vpop.permute.xlu0 %1773
        %1775 = vrot.lane.b32.xlu0 %v1768, 112
        %v1776 = vpop.permute.xlu0 %1775
        %1777 = vrot.lane.b32.xlu0 %v1769, 112
        %v1778 = vpop.permute.xlu0 %1777
        %v1779 = vsel %vm592, %v1774, %v1776
        %v1780 = vsel %vm592, %v1776, %v1778
        %v1784 = vadd.f32 %v1762, %v1779
        %v1785 = vadd.f32 %v1763, %v1780
        %v1786 = vadd.f32 %v1764, %v1778
        %s1787 = sld [smem:[#allocation3 + $0x3c]]
        %v1788 = vstv %s1787
        %v1789 = vmul.f32 %v1788, %v562
        %v1790 = vmul.f32 %v1788, %v558
        %v1791 = vmul.f32 %v1788, %v563
        %1795 = vrot.lane.b32.xlu0 %v1789, 112
        %v1796 = vpop.permute.xlu0 %1795
        %1797 = vrot.lane.b32.xlu0 %v1790, 112
        %v1798 = vpop.permute.xlu0 %1797
        %1799 = vrot.lane.b32.xlu0 %v1791, 112
        %v1800 = vpop.permute.xlu0 %1799
        %v1801 = vsel %vm592, %v1796, %v1798
        %v1802 = vsel %vm592, %v1798, %v1800
        %v1806 = vadd.f32 %v1784, %v1801
        %v1807 = vadd.f32 %v1785, %v1802
        %v1808 = vadd.f32 %v1786, %v1800
        %s1809 = sld [smem:[#allocation3 + $0x12]]
        %v1810 = vstv %s1809
        %v1811 = vmul.f32 %v1810, %v550
        %v1812 = vmul.f32 %v1810, %v546
        %v1813 = vmul.f32 %v1810, %v551
        %1817 = vrot.lane.b32.xlu0 %v1811, 96
        %v1818 = vpop.permute.xlu0 %1817
        %1819 = vrot.lane.b32.xlu0 %v1812, 96
        %v1820 = vpop.permute.xlu0 %1819
        %1821 = vrot.lane.b32.xlu0 %v1813, 96
        %v1822 = vpop.permute.xlu0 %1821
        %v1823 = vsel %vm633, %v1818, %v1820
        %v1824 = vsel %vm633, %v1820, %v1822
        %v1828 = vadd.f32 %v1806, %v1823
        %v1829 = vadd.f32 %v1807, %v1824
        %v1830 = vadd.f32 %v1808, %v1822
        %s1831 = sld [smem:[#allocation3 + $0x43]]
        %v1832 = vstv %s1831
        %v1833 = vmul.f32 %v1832, %v562
        %v1834 = vmul.f32 %v1832, %v558
        %v1835 = vmul.f32 %v1832, %v563
        %1839 = vrot.lane.b32.xlu0 %v1833, 96
        %v1840 = vpop.permute.xlu0 %1839
        %1841 = vrot.lane.b32.xlu0 %v1834, 96
        %v1842 = vpop.permute.xlu0 %1841
        %1843 = vrot.lane.b32.xlu0 %v1835, 96
        %v1844 = vpop.permute.xlu0 %1843
        %v1845 = vsel %vm633, %v1840, %v1842
        %v1846 = vsel %vm633, %v1842, %v1844
        %v1850 = vadd.f32 %v1828, %v1845
        %v1851 = vadd.f32 %v1829, %v1846
        %v1852 = vadd.f32 %v1830, %v1844
        %s1853 = sld [smem:[#allocation3 + $0x19]]
        %v1854 = vstv %s1853
        %v1855 = vmul.f32 %v1854, %v550
        %v1856 = vmul.f32 %v1854, %v546
        %v1857 = vmul.f32 %v1854, %v551
        %1861 = vrot.lane.b32.xlu0 %v1855, 80
        %v1862 = vpop.permute.xlu0 %1861
        %1863 = vrot.lane.b32.xlu0 %v1856, 80
        %v1864 = vpop.permute.xlu0 %1863
        %1865 = vrot.lane.b32.xlu0 %v1857, 80
        %v1866 = vpop.permute.xlu0 %1865
        %v1867 = vsel %vm674, %v1862, %v1864
        %v1868 = vsel %vm674, %v1864, %v1866
        %v1872 = vadd.f32 %v1850, %v1867
        %v1873 = vadd.f32 %v1851, %v1868
        %v1874 = vadd.f32 %v1852, %v1866
        %s1875 = sld [smem:[#allocation3 + $0x4a]]
        %v1876 = vstv %s1875
        %v1877 = vmul.f32 %v1876, %v562
        %v1878 = vmul.f32 %v1876, %v558
        %v1879 = vmul.f32 %v1876, %v563
        %1883 = vrot.lane.b32.xlu0 %v1877, 80
        %v1884 = vpop.permute.xlu0 %1883
        %1885 = vrot.lane.b32.xlu0 %v1878, 80
        %v1886 = vpop.permute.xlu0 %1885
        %1887 = vrot.lane.b32.xlu0 %v1879, 80
        %v1888 = vpop.permute.xlu0 %1887
        %v1889 = vsel %vm674, %v1884, %v1886
        %v1890 = vsel %vm674, %v1886, %v1888
        %v1894 = vadd.f32 %v1872, %v1889
        %v1895 = vadd.f32 %v1873, %v1890
        %v1896 = vadd.f32 %v1874, %v1888
        %s1897 = sld [smem:[#allocation3 + $0x20]]
        %v1898 = vstv %s1897
        %v1899 = vmul.f32 %v1898, %v550
        %v1900 = vmul.f32 %v1898, %v546
        %v1901 = vmul.f32 %v1898, %v551
        %1905 = vrot.lane.b32.xlu0 %v1899, 64
        %v1906 = vpop.permute.xlu0 %1905
        %1907 = vrot.lane.b32.xlu0 %v1900, 64
        %v1908 = vpop.permute.xlu0 %1907
        %1909 = vrot.lane.b32.xlu0 %v1901, 64
        %v1910 = vpop.permute.xlu0 %1909
        %v1911 = vsel %vm715, %v1906, %v1908
        %v1912 = vsel %vm715, %v1908, %v1910
        %v1916 = vadd.f32 %v1894, %v1911
        %v1917 = vadd.f32 %v1895, %v1912
        %v1918 = vadd.f32 %v1896, %v1910
        %s1919 = sld [smem:[#allocation3 + $0x51]]
        %v1920 = vstv %s1919
        %v1921 = vmul.f32 %v1920, %v562
        %v1922 = vmul.f32 %v1920, %v558
        %v1923 = vmul.f32 %v1920, %v563
        %1927 = vrot.lane.b32.xlu0 %v1921, 64
        %v1928 = vpop.permute.xlu0 %1927
        %1929 = vrot.lane.b32.xlu0 %v1922, 64
        %v1930 = vpop.permute.xlu0 %1929
        %1931 = vrot.lane.b32.xlu0 %v1923, 64
        %v1932 = vpop.permute.xlu0 %1931
        %v1933 = vsel %vm715, %v1928, %v1930
        %v1934 = vsel %vm715, %v1930, %v1932
        %v1938 = vadd.f32 %v1916, %v1933
        %v1939 = vadd.f32 %v1917, %v1934
        %v1940 = vadd.f32 %v1918, %v1932
        %s1941 = sld [smem:[#allocation3 + $0x27]]
        %v1942 = vstv %s1941
        %v1943 = vmul.f32 %v1942, %v550
        %v1944 = vmul.f32 %v1942, %v546
        %v1945 = vmul.f32 %v1942, %v551
        %1949 = vrot.lane.b32.xlu0 %v1943, 48
        %v1950 = vpop.permute.xlu0 %1949
        %1951 = vrot.lane.b32.xlu0 %v1944, 48
        %v1952 = vpop.permute.xlu0 %1951
        %1953 = vrot.lane.b32.xlu0 %v1945, 48
        %v1954 = vpop.permute.xlu0 %1953
        %v1955 = vsel %vm756, %v1950, %v1952
        %v1956 = vsel %vm756, %v1952, %v1954
        %v1960 = vadd.f32 %v1938, %v1955
        %v1961 = vadd.f32 %v1939, %v1956
        %v1962 = vadd.f32 %v1940, %v1954
        %s1963 = sld [smem:[#allocation3 + $0x58]]
        %v1964 = vstv %s1963
        %v1965 = vmul.f32 %v1964, %v562
        %v1966 = vmul.f32 %v1964, %v558
        %v1967 = vmul.f32 %v1964, %v563
        %1971 = vrot.lane.b32.xlu0 %v1965, 48
        %v1972 = vpop.permute.xlu0 %1971
        %1973 = vrot.lane.b32.xlu0 %v1966, 48
        %v1974 = vpop.permute.xlu0 %1973
        %1975 = vrot.lane.b32.xlu0 %v1967, 48
        %v1976 = vpop.permute.xlu0 %1975
        %v1977 = vsel %vm756, %v1972, %v1974
        %v1978 = vsel %vm756, %v1974, %v1976
        %v1982 = vadd.f32 %v1960, %v1977
        %v1983 = vadd.f32 %v1961, %v1978
        %v1984 = vadd.f32 %v1962, %v1976
        %s1985 = sld [smem:[#allocation3 + $0x2e]]
        %v1986 = vstv %s1985
        %v1987 = vmul.f32 %v1986, %v550
        %v1988 = vmul.f32 %v1986, %v546
        %v1989 = vmul.f32 %v1986, %v551
        %1993 = vrot.lane.b32.xlu0 %v1987, 32
        %v1994 = vpop.permute.xlu0 %1993
        %1995 = vrot.lane.b32.xlu0 %v1988, 32
        %v1996 = vpop.permute.xlu0 %1995
        %1997 = vrot.lane.b32.xlu0 %v1989, 32
        %v1998 = vpop.permute.xlu0 %1997
        %v1999 = vsel %vm797, %v1994, %v1996
        %v2000 = vsel %vm797, %v1996, %v1998
        %v2004 = vadd.f32 %v1982, %v1999
        %v2005 = vadd.f32 %v1983, %v2000
        %v2006 = vadd.f32 %v1984, %v1998
        %s2007 = sld [smem:[#allocation3 + $0x5f]]
        %v2008 = vstv %s2007
        %v2009 = vmul.f32 %v2008, %v562
        %v2010 = vmul.f32 %v2008, %v558
        %v2011 = vmul.f32 %v2008, %v563
        %2015 = vrot.lane.b32.xlu0 %v2009, 32
        %v2016 = vpop.permute.xlu0 %2015
        %2017 = vrot.lane.b32.xlu0 %v2010, 32
        %v2018 = vpop.permute.xlu0 %2017
        %2019 = vrot.lane.b32.xlu0 %v2011, 32
        %v2020 = vpop.permute.xlu0 %2019
        %v2021 = vsel %vm797, %v2016, %v2018
        %v2022 = vsel %vm797, %v2018, %v2020
        %v2026 = vadd.f32 %v2004, %v2021
        %v2027 = vadd.f32 %v2005, %v2022
        %v2028 = vadd.f32 %v2006, %v2020
        %v2032 = vrot.slane %v2026, 4
        %v2033 = vrot.slane %v2027, 4
        %v2034 = vrot.slane %v2028, 4
        %2035 = vrot.lane.b32.xlu0 %v2032, 124
        %v2036 = vpop.permute.xlu0 %2035
        %2037 = vrot.lane.b32.xlu0 %v2033, 124
        %v2038 = vpop.permute.xlu0 %2037
        %2039 = vrot.lane.b32.xlu0 %v2034, 124
        %v2040 = vpop.permute.xlu0 %2039
        %vm2041 = vcmask 1014784
        %v2042 = vsel %vm2041, %v2036, %v2038
        %v2043 = vsel %vm2041, %v2038, %v2040
        %v2046 = vmul.f32 %v564, %v2042
        %v2047 = vmul.f32 %v565, %v2043
        %v2050 = vrot.slane %v2046, 4
        %v2051 = vrot.slane %v2047, 4
        %v2054 = vadd.f32 %v1747, %v2050
        %v2055 = vadd.f32 %v1748, %v2051
        %s2056 = sld [smem:[#allocation3 + $0x5]]
        %v2057 = vstv %s2056
        %v2058 = vmul.f32 %v2057, %v550
        %v2059 = vmul.f32 %v2057, %v546
        %v2060 = vmul.f32 %v2057, %v551
        %v2061 = vadd.f32 %v2058, 0.0
        %v2062 = vadd.f32 %v2059, 0.0
        %v2063 = vadd.f32 %v2060, 0.0
        %s2064 = sld [smem:[#allocation3 + $0x36]]
        %v2065 = vstv %s2064
        %v2066 = vmul.f32 %v2065, %v562
        %v2067 = vmul.f32 %v2065, %v558
        %v2068 = vmul.f32 %v2065, %v563
        %v2069 = vadd.f32 %v2061, %v2066
        %v2070 = vadd.f32 %v2062, %v2067
        %v2071 = vadd.f32 %v2063, %v2068
        %s2072 = sld [smem:[#allocation3 + $0xc]]
        %v2073 = vstv %s2072
        %v2074 = vmul.f32 %v2073, %v550
        %v2075 = vmul.f32 %v2073, %v546
        %v2076 = vmul.f32 %v2073, %v551
        %2080 = vrot.lane.b32.xlu0 %v2074, 112
        %v2081 = vpop.permute.xlu0 %2080
        %2082 = vrot.lane.b32.xlu0 %v2075, 112
        %v2083 = vpop.permute.xlu0 %2082
        %2084 = vrot.lane.b32.xlu0 %v2076, 112
        %v2085 = vpop.permute.xlu0 %2084
        %v2086 = vsel %vm592, %v2081, %v2083
        %v2087 = vsel %vm592, %v2083, %v2085
        %v2091 = vadd.f32 %v2069, %v2086
        %v2092 = vadd.f32 %v2070, %v2087
        %v2093 = vadd.f32 %v2071, %v2085
        %s2094 = sld [smem:[#allocation3 + $0x3d]]
        %v2095 = vstv %s2094
        %v2096 = vmul.f32 %v2095, %v562
        %v2097 = vmul.f32 %v2095, %v558
        %v2098 = vmul.f32 %v2095, %v563
        %2102 = vrot.lane.b32.xlu0 %v2096, 112
        %v2103 = vpop.permute.xlu0 %2102
        %2104 = vrot.lane.b32.xlu0 %v2097, 112
        %v2105 = vpop.permute.xlu0 %2104
        %2106 = vrot.lane.b32.xlu0 %v2098, 112
        %v2107 = vpop.permute.xlu0 %2106
        %v2108 = vsel %vm592, %v2103, %v2105
        %v2109 = vsel %vm592, %v2105, %v2107
        %v2113 = vadd.f32 %v2091, %v2108
        %v2114 = vadd.f32 %v2092, %v2109
        %v2115 = vadd.f32 %v2093, %v2107
        %s2116 = sld [smem:[#allocation3 + $0x13]]
        %v2117 = vstv %s2116
        %v2118 = vmul.f32 %v2117, %v550
        %v2119 = vmul.f32 %v2117, %v546
        %v2120 = vmul.f32 %v2117, %v551
        %2124 = vrot.lane.b32.xlu0 %v2118, 96
        %v2125 = vpop.permute.xlu0 %2124
        %2126 = vrot.lane.b32.xlu0 %v2119, 96
        %v2127 = vpop.permute.xlu0 %2126
        %2128 = vrot.lane.b32.xlu0 %v2120, 96
        %v2129 = vpop.permute.xlu0 %2128
        %v2130 = vsel %vm633, %v2125, %v2127
        %v2131 = vsel %vm633, %v2127, %v2129
        %v2135 = vadd.f32 %v2113, %v2130
        %v2136 = vadd.f32 %v2114, %v2131
        %v2137 = vadd.f32 %v2115, %v2129
        %s2138 = sld [smem:[#allocation3 + $0x44]]
        %v2139 = vstv %s2138
        %v2140 = vmul.f32 %v2139, %v562
        %v2141 = vmul.f32 %v2139, %v558
        %v2142 = vmul.f32 %v2139, %v563
        %2146 = vrot.lane.b32.xlu0 %v2140, 96
        %v2147 = vpop.permute.xlu0 %2146
        %2148 = vrot.lane.b32.xlu0 %v2141, 96
        %v2149 = vpop.permute.xlu0 %2148
        %2150 = vrot.lane.b32.xlu0 %v2142, 96
        %v2151 = vpop.permute.xlu0 %2150
        %v2152 = vsel %vm633, %v2147, %v2149
        %v2153 = vsel %vm633, %v2149, %v2151
        %v2157 = vadd.f32 %v2135, %v2152
        %v2158 = vadd.f32 %v2136, %v2153
        %v2159 = vadd.f32 %v2137, %v2151
        %s2160 = sld [smem:[#allocation3 + $0x1a]]
        %v2161 = vstv %s2160
        %v2162 = vmul.f32 %v2161, %v550
        %v2163 = vmul.f32 %v2161, %v546
        %v2164 = vmul.f32 %v2161, %v551
        %2168 = vrot.lane.b32.xlu0 %v2162, 80
        %v2169 = vpop.permute.xlu0 %2168
        %2170 = vrot.lane.b32.xlu0 %v2163, 80
        %v2171 = vpop.permute.xlu0 %2170
        %2172 = vrot.lane.b32.xlu0 %v2164, 80
        %v2173 = vpop.permute.xlu0 %2172
        %v2174 = vsel %vm674, %v2169, %v2171
        %v2175 = vsel %vm674, %v2171, %v2173
        %v2179 = vadd.f32 %v2157, %v2174
        %v2180 = vadd.f32 %v2158, %v2175
        %v2181 = vadd.f32 %v2159, %v2173
        %s2182 = sld [smem:[#allocation3 + $0x4b]]
        %v2183 = vstv %s2182
        %v2184 = vmul.f32 %v2183, %v562
        %v2185 = vmul.f32 %v2183, %v558
        %v2186 = vmul.f32 %v2183, %v563
        %2190 = vrot.lane.b32.xlu0 %v2184, 80
        %v2191 = vpop.permute.xlu0 %2190
        %2192 = vrot.lane.b32.xlu0 %v2185, 80
        %v2193 = vpop.permute.xlu0 %2192
        %2194 = vrot.lane.b32.xlu0 %v2186, 80
        %v2195 = vpop.permute.xlu0 %2194
        %v2196 = vsel %vm674, %v2191, %v2193
        %v2197 = vsel %vm674, %v2193, %v2195
        %v2201 = vadd.f32 %v2179, %v2196
        %v2202 = vadd.f32 %v2180, %v2197
        %v2203 = vadd.f32 %v2181, %v2195
        %s2204 = sld [smem:[#allocation3 + $0x21]]
        %v2205 = vstv %s2204
        %v2206 = vmul.f32 %v2205, %v550
        %v2207 = vmul.f32 %v2205, %v546
        %v2208 = vmul.f32 %v2205, %v551
        %2212 = vrot.lane.b32.xlu0 %v2206, 64
        %v2213 = vpop.permute.xlu0 %2212
        %2214 = vrot.lane.b32.xlu0 %v2207, 64
        %v2215 = vpop.permute.xlu0 %2214
        %2216 = vrot.lane.b32.xlu0 %v2208, 64
        %v2217 = vpop.permute.xlu0 %2216
        %v2218 = vsel %vm715, %v2213, %v2215
        %v2219 = vsel %vm715, %v2215, %v2217
        %v2223 = vadd.f32 %v2201, %v2218
        %v2224 = vadd.f32 %v2202, %v2219
        %v2225 = vadd.f32 %v2203, %v2217
        %s2226 = sld [smem:[#allocation3 + $0x52]]
        %v2227 = vstv %s2226
        %v2228 = vmul.f32 %v2227, %v562
        %v2229 = vmul.f32 %v2227, %v558
        %v2230 = vmul.f32 %v2227, %v563
        %2234 = vrot.lane.b32.xlu0 %v2228, 64
        %v2235 = vpop.permute.xlu0 %2234
        %2236 = vrot.lane.b32.xlu0 %v2229, 64
        %v2237 = vpop.permute.xlu0 %2236
        %2238 = vrot.lane.b32.xlu0 %v2230, 64
        %v2239 = vpop.permute.xlu0 %2238
        %v2240 = vsel %vm715, %v2235, %v2237
        %v2241 = vsel %vm715, %v2237, %v2239
        %v2245 = vadd.f32 %v2223, %v2240
        %v2246 = vadd.f32 %v2224, %v2241
        %v2247 = vadd.f32 %v2225, %v2239
        %s2248 = sld [smem:[#allocation3 + $0x28]]
        %v2249 = vstv %s2248
        %v2250 = vmul.f32 %v2249, %v550
        %v2251 = vmul.f32 %v2249, %v546
        %v2252 = vmul.f32 %v2249, %v551
        %2256 = vrot.lane.b32.xlu0 %v2250, 48
        %v2257 = vpop.permute.xlu0 %2256
        %2258 = vrot.lane.b32.xlu0 %v2251, 48
        %v2259 = vpop.permute.xlu0 %2258
        %2260 = vrot.lane.b32.xlu0 %v2252, 48
        %v2261 = vpop.permute.xlu0 %2260
        %v2262 = vsel %vm756, %v2257, %v2259
        %v2263 = vsel %vm756, %v2259, %v2261
        %v2267 = vadd.f32 %v2245, %v2262
        %v2268 = vadd.f32 %v2246, %v2263
        %v2269 = vadd.f32 %v2247, %v2261
        %s2270 = sld [smem:[#allocation3 + $0x59]]
        %v2271 = vstv %s2270
        %v2272 = vmul.f32 %v2271, %v562
        %v2273 = vmul.f32 %v2271, %v558
        %v2274 = vmul.f32 %v2271, %v563
        %2278 = vrot.lane.b32.xlu0 %v2272, 48
        %v2279 = vpop.permute.xlu0 %2278
        %2280 = vrot.lane.b32.xlu0 %v2273, 48
        %v2281 = vpop.permute.xlu0 %2280
        %2282 = vrot.lane.b32.xlu0 %v2274, 48
        %v2283 = vpop.permute.xlu0 %2282
        %v2284 = vsel %vm756, %v2279, %v2281
        %v2285 = vsel %vm756, %v2281, %v2283
        %v2289 = vadd.f32 %v2267, %v2284
        %v2290 = vadd.f32 %v2268, %v2285
        %v2291 = vadd.f32 %v2269, %v2283
        %s2292 = sld [smem:[#allocation3 + $0x2f]]
        %v2293 = vstv %s2292
        %v2294 = vmul.f32 %v2293, %v550
        %v2295 = vmul.f32 %v2293, %v546
        %v2296 = vmul.f32 %v2293, %v551
        %2300 = vrot.lane.b32.xlu0 %v2294, 32
        %v2301 = vpop.permute.xlu0 %2300
        %2302 = vrot.lane.b32.xlu0 %v2295, 32
        %v2303 = vpop.permute.xlu0 %2302
        %2304 = vrot.lane.b32.xlu0 %v2296, 32
        %v2305 = vpop.permute.xlu0 %2304
        %v2306 = vsel %vm797, %v2301, %v2303
        %v2307 = vsel %vm797, %v2303, %v2305
        %v2311 = vadd.f32 %v2289, %v2306
        %v2312 = vadd.f32 %v2290, %v2307
        %v2313 = vadd.f32 %v2291, %v2305
        %s2314 = sld [smem:[#allocation3 + $0x60]]
        %v2315 = vstv %s2314
        %v2316 = vmul.f32 %v2315, %v562
        %v2317 = vmul.f32 %v2315, %v558
        %v2318 = vmul.f32 %v2315, %v563
        %2322 = vrot.lane.b32.xlu0 %v2316, 32
        %v2323 = vpop.permute.xlu0 %2322
        %2324 = vrot.lane.b32.xlu0 %v2317, 32
        %v2325 = vpop.permute.xlu0 %2324
        %2326 = vrot.lane.b32.xlu0 %v2318, 32
        %v2327 = vpop.permute.xlu0 %2326
        %v2328 = vsel %vm797, %v2323, %v2325
        %v2329 = vsel %vm797, %v2325, %v2327
        %v2333 = vadd.f32 %v2311, %v2328
        %v2334 = vadd.f32 %v2312, %v2329
        %v2335 = vadd.f32 %v2313, %v2327
        %v2339 = vrot.slane %v2333, 3
        %v2340 = vrot.slane %v2334, 3
        %v2341 = vrot.slane %v2335, 3
        %2342 = vrot.lane.b32.xlu0 %v2339, 123
        %v2343 = vpop.permute.xlu0 %2342
        %2344 = vrot.lane.b32.xlu0 %v2340, 123
        %v2345 = vpop.permute.xlu0 %2344
        %2346 = vrot.lane.b32.xlu0 %v2341, 123
        %v2347 = vpop.permute.xlu0 %2346
        %vm2348 = vcmask 1006592
        %v2349 = vsel %vm2348, %v2343, %v2345
        %v2350 = vsel %vm2348, %v2345, %v2347
        %v2353 = vmul.f32 %v564, %v2349
        %v2354 = vmul.f32 %v565, %v2350
        %v2357 = vrot.slane %v2353, 5
        %v2358 = vrot.slane %v2354, 5
        %v2361 = vadd.f32 %v2054, %v2357
        %v2362 = vadd.f32 %v2055, %v2358
        %s2363 = sld [smem:[#allocation3 + $0x6]]
        %v2364 = vstv %s2363
        %v2365 = vmul.f32 %v2364, %v550
        %v2366 = vmul.f32 %v2364, %v546
        %v2367 = vmul.f32 %v2364, %v551
        %v2368 = vadd.f32 %v2365, 0.0
        %v2369 = vadd.f32 %v2366, 0.0
        %v2370 = vadd.f32 %v2367, 0.0
        %s2371 = sld [smem:[#allocation3 + $0x37]]
        %v2372 = vstv %s2371
        %v2373 = vmul.f32 %v2372, %v562
        %v2374 = vmul.f32 %v2372, %v558
        %v2375 = vmul.f32 %v2372, %v563
        %v2376 = vadd.f32 %v2368, %v2373
        %v2377 = vadd.f32 %v2369, %v2374
        %v2378 = vadd.f32 %v2370, %v2375
        %s2379 = sld [smem:[#allocation3 + $0xd]]
        %v2380 = vstv %s2379
        %v2381 = vmul.f32 %v2380, %v550
        %v2382 = vmul.f32 %v2380, %v546
        %v2383 = vmul.f32 %v2380, %v551
        %2387 = vrot.lane.b32.xlu0 %v2381, 112
        %v2388 = vpop.permute.xlu0 %2387
        %2389 = vrot.lane.b32.xlu0 %v2382, 112
        %v2390 = vpop.permute.xlu0 %2389
        %2391 = vrot.lane.b32.xlu0 %v2383, 112
        %v2392 = vpop.permute.xlu0 %2391
        %v2393 = vsel %vm592, %v2388, %v2390
        %v2394 = vsel %vm592, %v2390, %v2392
        %v2398 = vadd.f32 %v2376, %v2393
        %v2399 = vadd.f32 %v2377, %v2394
        %v2400 = vadd.f32 %v2378, %v2392
        %s2401 = sld [smem:[#allocation3 + $0x3e]]
        %v2402 = vstv %s2401
        %v2403 = vmul.f32 %v2402, %v562
        %v2404 = vmul.f32 %v2402, %v558
        %v2405 = vmul.f32 %v2402, %v563
        %2409 = vrot.lane.b32.xlu0 %v2403, 112
        %v2410 = vpop.permute.xlu0 %2409
        %2411 = vrot.lane.b32.xlu0 %v2404, 112
        %v2412 = vpop.permute.xlu0 %2411
        %2413 = vrot.lane.b32.xlu0 %v2405, 112
        %v2414 = vpop.permute.xlu0 %2413
        %v2415 = vsel %vm592, %v2410, %v2412
        %v2416 = vsel %vm592, %v2412, %v2414
        %v2420 = vadd.f32 %v2398, %v2415
        %v2421 = vadd.f32 %v2399, %v2416
        %v2422 = vadd.f32 %v2400, %v2414
        %s2423 = sld [smem:[#allocation3 + $0x14]]
        %v2424 = vstv %s2423
        %v2425 = vmul.f32 %v2424, %v550
        %v2426 = vmul.f32 %v2424, %v546
        %v2427 = vmul.f32 %v2424, %v551
        %2431 = vrot.lane.b32.xlu0 %v2425, 96
        %v2432 = vpop.permute.xlu0 %2431
        %2433 = vrot.lane.b32.xlu0 %v2426, 96
        %v2434 = vpop.permute.xlu0 %2433
        %2435 = vrot.lane.b32.xlu0 %v2427, 96
        %v2436 = vpop.permute.xlu0 %2435
        %v2437 = vsel %vm633, %v2432, %v2434
        %v2438 = vsel %vm633, %v2434, %v2436
        %v2442 = vadd.f32 %v2420, %v2437
        %v2443 = vadd.f32 %v2421, %v2438
        %v2444 = vadd.f32 %v2422, %v2436
        %s2445 = sld [smem:[#allocation3 + $0x45]]
        %v2446 = vstv %s2445
        %v2447 = vmul.f32 %v2446, %v562
        %v2448 = vmul.f32 %v2446, %v558
        %v2449 = vmul.f32 %v2446, %v563
        %2453 = vrot.lane.b32.xlu0 %v2447, 96
        %v2454 = vpop.permute.xlu0 %2453
        %2455 = vrot.lane.b32.xlu0 %v2448, 96
        %v2456 = vpop.permute.xlu0 %2455
        %2457 = vrot.lane.b32.xlu0 %v2449, 96
        %v2458 = vpop.permute.xlu0 %2457
        %v2459 = vsel %vm633, %v2454, %v2456
        %v2460 = vsel %vm633, %v2456, %v2458
        %v2464 = vadd.f32 %v2442, %v2459
        %v2465 = vadd.f32 %v2443, %v2460
        %v2466 = vadd.f32 %v2444, %v2458
        %s2467 = sld [smem:[#allocation3 + $0x1b]]
        %v2468 = vstv %s2467
        %v2469 = vmul.f32 %v2468, %v550
        %v2470 = vmul.f32 %v2468, %v546
        %v2471 = vmul.f32 %v2468, %v551
        %2475 = vrot.lane.b32.xlu0 %v2469, 80
        %v2476 = vpop.permute.xlu0 %2475
        %2477 = vrot.lane.b32.xlu0 %v2470, 80
        %v2478 = vpop.permute.xlu0 %2477
        %2479 = vrot.lane.b32.xlu0 %v2471, 80
        %v2480 = vpop.permute.xlu0 %2479
        %v2481 = vsel %vm674, %v2476, %v2478
        %v2482 = vsel %vm674, %v2478, %v2480
        %v2486 = vadd.f32 %v2464, %v2481
        %v2487 = vadd.f32 %v2465, %v2482
        %v2488 = vadd.f32 %v2466, %v2480
        %s2489 = sld [smem:[#allocation3 + $0x4c]]
        %v2490 = vstv %s2489
        %v2491 = vmul.f32 %v2490, %v562
        %v2492 = vmul.f32 %v2490, %v558
        %v2493 = vmul.f32 %v2490, %v563
        %2497 = vrot.lane.b32.xlu0 %v2491, 80
        %v2498 = vpop.permute.xlu0 %2497
        %2499 = vrot.lane.b32.xlu0 %v2492, 80
        %v2500 = vpop.permute.xlu0 %2499
        %2501 = vrot.lane.b32.xlu0 %v2493, 80
        %v2502 = vpop.permute.xlu0 %2501
        %v2503 = vsel %vm674, %v2498, %v2500
        %v2504 = vsel %vm674, %v2500, %v2502
        %v2508 = vadd.f32 %v2486, %v2503
        %v2509 = vadd.f32 %v2487, %v2504
        %v2510 = vadd.f32 %v2488, %v2502
        %s2511 = sld [smem:[#allocation3 + $0x22]]
        %v2512 = vstv %s2511
        %v2513 = vmul.f32 %v2512, %v550
        %v2514 = vmul.f32 %v2512, %v546
        %v2515 = vmul.f32 %v2512, %v551
        %2519 = vrot.lane.b32.xlu0 %v2513, 64
        %v2520 = vpop.permute.xlu0 %2519
        %2521 = vrot.lane.b32.xlu0 %v2514, 64
        %v2522 = vpop.permute.xlu0 %2521
        %2523 = vrot.lane.b32.xlu0 %v2515, 64
        %v2524 = vpop.permute.xlu0 %2523
        %v2525 = vsel %vm715, %v2520, %v2522
        %v2526 = vsel %vm715, %v2522, %v2524
        %v2530 = vadd.f32 %v2508, %v2525
        %v2531 = vadd.f32 %v2509, %v2526
        %v2532 = vadd.f32 %v2510, %v2524
        %s2533 = sld [smem:[#allocation3 + $0x53]]
        %v2534 = vstv %s2533
        %v2535 = vmul.f32 %v2534, %v562
        %v2536 = vmul.f32 %v2534, %v558
        %v2537 = vmul.f32 %v2534, %v563
        %2541 = vrot.lane.b32.xlu0 %v2535, 64
        %v2542 = vpop.permute.xlu0 %2541
        %2543 = vrot.lane.b32.xlu0 %v2536, 64
        %v2544 = vpop.permute.xlu0 %2543
        %2545 = vrot.lane.b32.xlu0 %v2537, 64
        %v2546 = vpop.permute.xlu0 %2545
        %v2547 = vsel %vm715, %v2542, %v2544
        %v2548 = vsel %vm715, %v2544, %v2546
        %v2552 = vadd.f32 %v2530, %v2547
        %v2553 = vadd.f32 %v2531, %v2548
        %v2554 = vadd.f32 %v2532, %v2546
        %s2555 = sld [smem:[#allocation3 + $0x29]]
        %v2556 = vstv %s2555
        %v2557 = vmul.f32 %v2556, %v550
        %v2558 = vmul.f32 %v2556, %v546
        %v2559 = vmul.f32 %v2556, %v551
        %2563 = vrot.lane.b32.xlu0 %v2557, 48
        %v2564 = vpop.permute.xlu0 %2563
        %2565 = vrot.lane.b32.xlu0 %v2558, 48
        %v2566 = vpop.permute.xlu0 %2565
        %2567 = vrot.lane.b32.xlu0 %v2559, 48
        %v2568 = vpop.permute.xlu0 %2567
        %v2569 = vsel %vm756, %v2564, %v2566
        %v2570 = vsel %vm756, %v2566, %v2568
        %v2574 = vadd.f32 %v2552, %v2569
        %v2575 = vadd.f32 %v2553, %v2570
        %v2576 = vadd.f32 %v2554, %v2568
        %s2577 = sld [smem:[#allocation3 + $0x5a]]
        %v2578 = vstv %s2577
        %v2579 = vmul.f32 %v2578, %v562
        %v2580 = vmul.f32 %v2578, %v558
        %v2581 = vmul.f32 %v2578, %v563
        %2585 = vrot.lane.b32.xlu0 %v2579, 48
        %v2586 = vpop.permute.xlu0 %2585
        %2587 = vrot.lane.b32.xlu0 %v2580, 48
        %v2588 = vpop.permute.xlu0 %2587
        %2589 = vrot.lane.b32.xlu0 %v2581, 48
        %v2590 = vpop.permute.xlu0 %2589
        %v2591 = vsel %vm756, %v2586, %v2588
        %v2592 = vsel %vm756, %v2588, %v2590
        %v2596 = vadd.f32 %v2574, %v2591
        %v2597 = vadd.f32 %v2575, %v2592
        %v2598 = vadd.f32 %v2576, %v2590
        %s2599 = sld [smem:[#allocation3 + $0x30]]
        %v2600 = vstv %s2599
        %v2601 = vmul.f32 %v2600, %v550
        %v2602 = vmul.f32 %v2600, %v546
        %v2603 = vmul.f32 %v2600, %v551
        %2607 = vrot.lane.b32.xlu0 %v2601, 32
        %v2608 = vpop.permute.xlu0 %2607
        %2609 = vrot.lane.b32.xlu0 %v2602, 32
        %v2610 = vpop.permute.xlu0 %2609
        %2611 = vrot.lane.b32.xlu0 %v2603, 32
        %v2612 = vpop.permute.xlu0 %2611
        %v2613 = vsel %vm797, %v2608, %v2610
        %v2614 = vsel %vm797, %v2610, %v2612
        %v2618 = vadd.f32 %v2596, %v2613
        %v2619 = vadd.f32 %v2597, %v2614
        %v2620 = vadd.f32 %v2598, %v2612
        %s2621 = sld [smem:[#allocation3 + $0x61]]
        %v2622 = vstv %s2621
        %v2623 = vmul.f32 %v2622, %v562
        %v2624 = vmul.f32 %v2622, %v558
        %v2625 = vmul.f32 %v2622, %v563
        %2629 = vrot.lane.b32.xlu0 %v2623, 32
        %v2630 = vpop.permute.xlu0 %2629
        %2631 = vrot.lane.b32.xlu0 %v2624, 32
        %v2632 = vpop.permute.xlu0 %2631
        %2633 = vrot.lane.b32.xlu0 %v2625, 32
        %v2634 = vpop.permute.xlu0 %2633
        %v2635 = vsel %vm797, %v2630, %v2632
        %v2636 = vsel %vm797, %v2632, %v2634
        %v2640 = vadd.f32 %v2618, %v2635
        %v2641 = vadd.f32 %v2619, %v2636
        %v2642 = vadd.f32 %v2620, %v2634
        %v2646 = vrot.slane %v2640, 2
        %v2647 = vrot.slane %v2641, 2
        %v2648 = vrot.slane %v2642, 2
        %2649 = vrot.lane.b32.xlu0 %v2646, 122
        %v2650 = vpop.permute.xlu0 %2649
        %2651 = vrot.lane.b32.xlu0 %v2647, 122
        %v2652 = vpop.permute.xlu0 %2651
        %2653 = vrot.lane.b32.xlu0 %v2648, 122
        %v2654 = vpop.permute.xlu0 %2653
        %vm2655 = vcmask 998400
        %v2656 = vsel %vm2655, %v2650, %v2652
        %v2657 = vsel %vm2655, %v2652, %v2654
        %v2660 = vmul.f32 %v564, %v2656
        %v2661 = vmul.f32 %v565, %v2657
        %v2664 = vrot.slane %v2660, 6
        %v2665 = vrot.slane %v2661, 6
        %v2668 = vadd.f32 %v2361, %v2664
        %v2669 = vadd.f32 %v2362, %v2665
        %s2670 = sld [smem:[#allocation2]]
        %v2671 = vstv %s2670
        %v2672 = vadd.f32 %v2668, %v2671
        %v2673 = vadd.f32 %v2669, %v2671
        %v2674 = vxor.u32 %v2672, 2147483648
        %v2675 = vxor.u32 %v2673, 2147483648
        %v2676 = vmul.f32 %v2674, 1.442695
        %v2677 = vpow.pop %v2676
        %v2678 = vmul.f32 %v2675, 1.442695
        %v2679 = vpow.pop %v2678
        %v2680 = vadd.f32 %v2677, 1.0
        %v2681 = vadd.f32 %v2679, 1.0
        %v2682 = vrcp.pop %v2680
        %v2683 = vmul.f32 %v2680, %v2682
        %v2684 = vsub.f32 1.0, %v2683
        %v2685 = vmul.f32 %v2682, %v2684
        %v2686 = vadd.f32 %v2682, %v2685
        %vm2687 = vweird.f32 %v2680
        %vm2688 = vweird.f32 %v2682
        %vm2689 = vmor %vm2687, %vm2688
        %v2690 = vsel %vm2689, %v2682, %v2686
        %v2691 = vand.u32 2147483647, %v2680
        %vm2692 = vcmp.eq.f32.partialorder %v2691, 8.507059e+37
        %v2693 = vand.u32 %v2680, 2147483648
        %v2694 = vor.u32 1.1754944e-38, %v2693
        %v2695 = vsel %vm2692, %v2694, %v2690
        %v2696 = vmul.f32 1.0, %v2695
        %v2697 = vrcp.pop %v2681
        %v2698 = vmul.f32 %v2681, %v2697
        %v2699 = vsub.f32 1.0, %v2698
        %v2700 = vmul.f32 %v2697, %v2699
        %v2701 = vadd.f32 %v2697, %v2700
        %vm2702 = vweird.f32 %v2681
        %vm2703 = vweird.f32 %v2697
        %vm2704 = vmor %vm2702, %vm2703
        %v2705 = vsel %vm2704, %v2697, %v2701
        %v2706 = vand.u32 2147483647, %v2681
        %vm2707 = vcmp.eq.f32.partialorder %v2706, 8.507059e+37
        %v2708 = vand.u32 %v2681, 2147483648
        %v2709 = vor.u32 1.1754944e-38, %v2708
        %v2710 = vsel %vm2707, %v2709, %v2705
        %v2711 = vmul.f32 1.0, %v2710
        %v2712 = vperm.slane %v2696, 0
        %v2713 = vperm.slane %v2711, 0
        %v2714 = vmul.f32 %v495, %v2712
        %v2715 = vmul.f32 %v496, %v2713
        %v2716 = vmul.f32 %v497, %v2712
        %v2717 = vmul.f32 %v498, %v2713
        %v2718 = vmul.f32 %v499, %v2712
        %v2719 = vmul.f32 %v500, %v2713
        %v2720 = vmul.f32 %v501, %v2712
        %v2721 = vmul.f32 %v502, %v2713
        %2722 = vst [vmem:[%s320] sm:$0xff] %v2714
        %2723 = vst [vmem:[%s320 + $0x8] sm:$0xff] %v2715
        %2724 = vst [vmem:[%s320 + $0x10] sm:$0xff] %v2716
        %2725 = vst [vmem:[%s320 + $0x18] sm:$0xff] %v2717
        %2726 = vst [vmem:[%s320 + $0x20] sm:$0xff] %v2718
        %2727 = vst [vmem:[%s320 + $0x28] sm:$0xff] %v2719
        %2728 = vst [vmem:[%s320 + $0x30] sm:$0xff] %v2720
        %2729 = vst [vmem:[%s320 + $0x38] sm:$0xff] %v2721
        %p2730 = scmp.lt.s32.totalorder %s21, 1
        %s2731 = scalar_select %p2730, %s21, 1
        %s2732 = smul.addr %s2731, 8
        %s2733 = smul.addr %s2732, 8
        %s2734 = scalar_lea.vmem %s8, %s2733
        // Predicated region
        $region57: #{cbam_pallas.1} parent=51 // pred_check
          %p2735 = pneg %p212
        $region58: #{cbam_pallas.1} parent=51 // pred_check_branch
          %2737 = sbr.rel (%p2735) target = $region60
        $region59: #{cbam_pallas.1} parent=51 // pred_region
          _
        $region60: #{cbam_pallas.1} parent=51 // pred_fallthru
          _
      $region52: #{cbam_pallas.1} parent=5 // pred_fallthru
        _
      %p2738 = scmp.le.s32.totalorder 2, %s16
      // Predicated region
      $region61: #{cbam_pallas.1} parent=5 // pred_check
        %p2739 = pneg %p2738
      $region62: #{cbam_pallas.1} parent=5 // pred_check_branch
        %2741 = sbr.rel (%p2739) target = $region64
      $region63: #{cbam_pallas.1} parent=5 // pred_region
        %s2742 = ssub.s32 %s16, 2
        // Predicated region
        $region65: #{cbam_pallas.1} parent=63 // pred_check
          %p2743 = pneg %p218
        $region66: #{cbam_pallas.1} parent=63 // pred_check_branch
          %2745 = sbr.rel (%p2743) target = $region68
        $region67: #{cbam_pallas.1} parent=63 // pred_region
          %p2746 = scmp.lt.s32.totalorder %s22, 1
          %s2747 = scalar_select %p2746, %s22, 1
          %s2748 = smul.addr %s2747, 8
          %s2749 = smul.addr %s2748, 8
          %s2750 = scalar_lea.vmem %s8, %s2749
        $region68: #{cbam_pallas.1} parent=63 // pred_fallthru
          _
      $region64: #{cbam_pallas.1} parent=5 // pred_fallthru
        _
    $region6: #{cbam_pallas.1} parent=1 // loop_footer
      %s20 = sadd.s32 1, %s16
    $region7: #{cbam_pallas.1} parent=1 // loop_footer_branch
      %15 = sbr.rel target = $region3
    $region8: #{cbam_pallas.1} parent=1 // loop_exit
      _
    %2751 = vsyncpa [#allocation4], 1
    %s2752 = scalar_lea.sflag [#allocation4], 1
    %2753 = vsyncpa %s2752, 1

</llo_original>
